<compile_context>
chip_gen: v7x
topology: tpu7x:2x2x1
jax: 0.10.0
libtpu: 0.0.40
codegen_flags: <defaults>
</compile_context>

<pallas_src>
import functools

import jax
import jax.numpy as jnp
import numpy as np
from jax import lax
from jax.experimental import pallas as pl
from jax.experimental.pallas import tpu as pltpu


def _shift_right(x, j):
    """Causal shift along time (last axis): out[..., t] = x[..., t - j], zero for t < j."""
    if j == 0:
        return x
    t = x.shape[-1]
    if j >= t:
        return jnp.zeros_like(x)
    pad = jnp.zeros(x.shape[:-1] + (j,), x.dtype)
    return jnp.concatenate([pad, x[..., : t - j]], axis=-1)


def _sensory_kernel(x_ref, ees_ref, amp_ref,
                    w1_ref, b1_ref, gamma_ref, beta_ref,
                    w2_ref, b2_ref, w3_ref, b3_ref,
                    out_ref, *, K1, K2, K3):
    Bb, Cin, T = x_ref.shape
    Cout = out_ref.shape[1]

    # ---- kinematic2afferent: causal conv1d (Cin -> Cout, kernel K1) + ReLU -------------
    # One MXU dot per batch row; taps folded into the output-row dim of the weight:
    #   p[j*Cout + c, t] = sum_cin w1[c, cin, K1-1-j] * x[cin, t]
    # then y[c, t] = sum_j p[j*Cout + c, t - j]  (Cout-aligned sublane slices + lane shifts).
    w1a = w1_ref[...]                                         # (K1*Cout, Cin)
    aff_rows = []
    for b in range(Bb):                                       # static unroll, Bb <= 8
        p = jnp.dot(w1a, x_ref[b], preferred_element_type=jnp.float32)   # (K1*Cout, T)
        acc = p[:Cout, :]
        for j in range(1, K1):
            acc = acc + _shift_right(p[j * Cout:(j + 1) * Cout, :], j)
        aff_rows.append(acc)
    aff = jnp.stack(aff_rows, axis=0)                         # (Bb, Cout, T)
    afferents = jnp.maximum(aff + b1_ref[...][None], 0.0)

    # ---- EES recruitment: sigmoid(gamma * amp + beta) ----------------------------------
    amp = amp_ref[0]                                          # (Bb, 1) — max(ees) from wrapper
    recruit = jax.nn.sigmoid(amp[:, None, :] * gamma_ref[...][None]
                             + beta_ref[...][None])           # (Bb, Cout, 1)

    # ---- spike2rate: causal conv1d (1 -> 1, kernel K2) + ReLU --------------------------
    # Batch rows are packed on the sublane dim: one (Bb, T) tile instead of Bb (1, T) rows.
    spike = jnp.minimum(ees_ref[0], 1.0)                      # clamp_(max=1), (Bb, T)
    rate = w2_ref[0, 0] * spike
    for j in range(1, K2):
        rate = rate + w2_ref[0, j] * _shift_right(spike, j)
    ees_rate = jnp.maximum(rate + b2_ref[0, 0], 0.0)          # (Bb, T)

    ees_ortho = recruit * ees_rate[:, None, :]                # (Bb, Cout, T)

    # ---- antidromic: causal conv1d (1 -> 1, kernel K3) over every (b, cout) row --------
    # All Bb*Cout rows processed at once with in-register lane shifts (no VMEM scratch).
    anti = w3_ref[0, 0] * ees_ortho
    for j in range(1, K3):
        anti = anti + w3_ref[0, j] * _shift_right(ees_ortho, j)
    ees_anti = jnp.maximum(anti + b3_ref[0, 0], 0.0)          # (Bb, Cout, T)

    out_ref[...] = ees_ortho + jnp.maximum(afferents - ees_anti, 0.0)


def _pick_block_batch(B):
    """Pack up to 8 batch rows per grid step, but keep >= 2 grid steps when B >= 2
    so the "parallel" grid axis can be split across both v7x TensorCores."""
    for bb in (8, 4, 2):
        if B % bb == 0 and B // bb >= 2:
            return bb
    return 1


def sensory_encoder_forward(x, ees, params):
    B, Cin, T = x.shape
    Cout, _, K1 = params["w1"].shape
    K2 = params["w2"].shape[-1]
    K3 = params["w3"].shape[-1]

    Bb = _pick_block_batch(B)
    nsteps = B // Bb

    x = x.astype(jnp.float32)
    ees = ees.astype(jnp.float32)

    # Tiny wrapper-side prep (no full-tensor HBM round trips of x; ees reshape is free).
    ees_amp = jnp.max(ees, axis=(1, 2)).reshape(nsteps, Bb, 1)        # before the clamp
    ees_pack = ees.reshape(nsteps, Bb, T)                             # batch -> sublanes

    # Kinematic weight: reverse taps and fold them into the output-row dim:
    #   w1a[j*Cout + c, cin] = w1[c, cin, K1-1-j]   (tap j multiplies x[:, t-j])
    w1a = jnp.transpose(params["w1"][:, :, ::-1], (2, 0, 1)).reshape(K1 * Cout, Cin)
    w1a = w1a.astype(jnp.float32)
    b1 = params["b1"].reshape(Cout, 1).astype(jnp.float32)
    gamma = params["gamma"].reshape(Cout, 1).astype(jnp.float32)
    beta = params["beta"].reshape(Cout, 1).astype(jnp.float32)
    # Reversed taps so tap j multiplies x[t-j].
    w2r = params["w2"].reshape(K2)[::-1].reshape(1, K2).astype(jnp.float32)
    b2 = params["b2"].reshape(1, 1).astype(jnp.float32)
    w3r = params["w3"].reshape(K3)[::-1].reshape(1, K3).astype(jnp.float32)
    b3 = params["b3"].reshape(1, 1).astype(jnp.float32)

    kernel = functools.partial(_sensory_kernel, K1=K1, K2=K2, K3=K3)
    vmem = pltpu.MemorySpace.VMEM
    smem = pltpu.MemorySpace.SMEM

    return pl.pallas_call(
        kernel,
        out_shape=jax.ShapeDtypeStruct((B, Cout, T), jnp.float32),
        grid=(nsteps,),
        in_specs=[
            pl.BlockSpec((Bb, Cin, T), lambda i: (i, 0, 0)),   # x block (Bb batches)
            pl.BlockSpec((1, Bb, T), lambda i: (i, 0, 0)),     # ees, batch on sublanes
            pl.BlockSpec((1, Bb, 1), lambda i: (i, 0, 0)),     # ees_amp per batch
            pl.BlockSpec(memory_space=vmem),   # w1a   (K1*Cout, Cin)
            pl.BlockSpec(memory_space=vmem),   # b1    (Cout, 1)
            pl.BlockSpec(memory_space=vmem),   # gamma (Cout, 1)
            pl.BlockSpec(memory_space=vmem),   # beta  (Cout, 1)
            pl.BlockSpec(memory_space=smem),   # w2 reversed (1, K2)
            pl.BlockSpec(memory_space=smem),   # b2 (1, 1)
            pl.BlockSpec(memory_space=smem),   # w3 reversed (1, K3)
            pl.BlockSpec(memory_space=smem),   # b3 (1, 1)
        ],
        out_specs=pl.BlockSpec((Bb, Cout, T), lambda i: (i, 0, 0)),
        compiler_params=pltpu.CompilerParams(dimension_semantics=("parallel",)),
    )(x, ees_pack, ees_amp, w1a, b1, gamma, beta, w2r, b2, w3r, b3)


# ----------------------------- pure-JAX reference -----------------------------
def _causal_conv1d_ref(x, w, b):
    # x: (N, Cin, T), w: (Cout, Cin, K), b: (Cout,)
    K = w.shape[-1]
    x_p = jnp.pad(x, ((0, 0), (0, 0), (K - 1, 0)))
    y = lax.conv_general_dilated(x_p, w, window_strides=(1,), padding="VALID",
                                 dimension_numbers=("NCH", "OIH", "NCH"))
    return y + b[None, :, None]


def sensory_encoder_ref(x, ees, params):
    B, _, T = x.shape
    Cout = params["w1"].shape[0]
    ees_amp = jnp.max(ees, axis=2)                                   # (B, 1)
    ees_spike = jnp.minimum(ees, 1.0)
    afferents = jax.nn.relu(_causal_conv1d_ref(x, params["w1"], params["b1"]))
    ees_amp_rep = jnp.broadcast_to(ees_amp, (B, Cout))               # .repeat(1, Cout)
    recruit = jax.nn.sigmoid(params["gamma"][None, :] * ees_amp_rep
                             + params["beta"][None, :])[:, :, None]
    ees_rate = jax.nn.relu(_causal_conv1d_ref(ees_spike, params["w2"], params["b2"]))
    ees_ortho = recruit * ees_rate
    anti_in = ees_ortho.reshape(-1, 1, T)
    ees_anti = jax.nn.relu(_causal_conv1d_ref(anti_in, params["w3"], params["b3"]))
    ees_anti = ees_anti.reshape(B, Cout, T)
    return ees_ortho + jax.nn.relu(afferents - ees_anti)


if __name__ == "__main__":
    B, Cin, Cout, T, K1 = 16, 4, 8, 128, 5     # Bb=8 per step, 2 parallel grid steps
    key = jax.random.PRNGKey(0)
    ks = jax.random.split(key, 8)
    params = {
        "w1": jax.random.normal(ks[0], (Cout, Cin, K1), jnp.float32) * 0.3,
        "b1": jax.random.normal(ks[1], (Cout,), jnp.float32) * 0.1,
        "w2": jax.random.normal(ks[2], (1, 1, 30), jnp.float32) * 0.2,   # spike2rate
        "b2": jax.random.normal(ks[3], (1,), jnp.float32) * 0.1,
        "w3": jax.random.normal(ks[4], (1, 1, 20), jnp.float32) * 0.2,   # antidromic
        "b3": jax.random.normal(ks[5], (1,), jnp.float32) * 0.1,
        "gamma": jnp.full((Cout,), 0.1, jnp.float32),    # Affine init_gamma=0.1
        "beta": jnp.full((Cout,), -26.0, jnp.float32),   # Affine init_beta=-26
    }
    x = jax.random.normal(ks[6], (B, Cin, T), jnp.float32)
    # Sparse stimulation spikes with amplitude 280 so sigmoid(0.1*amp - 26) is non-trivial.
    ees = (jax.random.uniform(ks[7], (B, 1, T)) < 0.3).astype(jnp.float32) * 280.0

    out = jax.block_until_ready(sensory_encoder_forward(x, ees, params))
    ref = sensory_encoder_ref(x, ees, params)
    np.testing.assert_allclose(np.asarray(out), np.asarray(ref), rtol=1e-4, atol=1e-4)
    print("KERNEL_OK")
</pallas_src>

<mosaic_0001>
module attributes {stable_mosaic.version = 11 : i64} {
  func.func @_sensory_kernel(%arg0: i32, %arg1: memref<8x4x128xf32, #tpu.memory_space<vmem>>, %arg2: memref<1x8x128xf32, #tpu.memory_space<vmem>>, %arg3: memref<1x8x1xf32, #tpu.memory_space<vmem>>, %arg4: memref<40x4xf32, #tpu.memory_space<vmem>>, %arg5: memref<8x1xf32, #tpu.memory_space<vmem>>, %arg6: memref<8x1xf32, #tpu.memory_space<vmem>>, %arg7: memref<8x1xf32, #tpu.memory_space<vmem>>, %arg8: memref<1x30xf32, #tpu.memory_space<smem>>, %arg9: memref<1x1xf32, #tpu.memory_space<smem>>, %arg10: memref<1x20xf32, #tpu.memory_space<smem>>, %arg11: memref<1x1xf32, #tpu.memory_space<smem>>, %arg12: memref<8x8x128xf32, #tpu.memory_space<vmem>>) attributes {dimension_semantics = [#tpu.dimension_semantics<parallel>], iteration_bounds = array<i64: 2>, scalar_prefetch = 0 : i64, scratch_operands = 0 : i64, tpu.core_type = #tpu.core_type<tc>, window_params = [{transform_indices = @transform_0, window_bounds = array<i64: 8, 4, 128>}, {transform_indices = @transform_1, window_bounds = array<i64: 1, 8, 128>}, {transform_indices = @transform_2, window_bounds = array<i64: 1, 8, 1>}, {pipeline_mode = #tpu.pipeline_mode<synchronous>, transform_indices = @transform_3, window_bounds = array<i64: 40, 4>}, {pipeline_mode = #tpu.pipeline_mode<synchronous>, transform_indices = @transform_4, window_bounds = array<i64: 8, 1>}, {pipeline_mode = #tpu.pipeline_mode<synchronous>, transform_indices = @transform_5, window_bounds = array<i64: 8, 1>}, {pipeline_mode = #tpu.pipeline_mode<synchronous>, transform_indices = @transform_6, window_bounds = array<i64: 8, 1>}, {transform_indices = @transform_7, window_bounds = array<i64: 1, 30>}, {transform_indices = @transform_8, window_bounds = array<i64: 1, 1>}, {transform_indices = @transform_9, window_bounds = array<i64: 1, 20>}, {transform_indices = @transform_10, window_bounds = array<i64: 1, 1>}, {transform_indices = @transform_11, window_bounds = array<i64: 8, 8, 128>}]} {
    %c0 = arith.constant 0 : index
    %c0_0 = arith.constant 0 : index
    %0 = vector.load %arg4[%c0, %c0_0] : memref<40x4xf32, #tpu.memory_space<vmem>>, vector<40x4xf32>
    %c0_1 = arith.constant 0 : index
    %c0_2 = arith.constant 0 : index
    %c0_3 = arith.constant 0 : index
    %1 = vector.load %arg1[%c0_1, %c0_2, %c0_3] : memref<8x4x128xf32, #tpu.memory_space<vmem>>, vector<1x4x128xf32>
    %2 = vector.shape_cast %1 : vector<1x4x128xf32> to vector<4x128xf32>
    %cst = arith.constant dense<0.000000e+00> : vector<40x128xf32>
    %3 = tpu.matmul %0, %2, %cst {dimension_numbers = #tpu.dot_dimension_numbers<[1], [0], [0], [1], [0, 0, 1, 1], [], []>} : vector<40x4xf32>, vector<4x128xf32>, vector<40x128xf32> -> vector<40x128xf32>
    %4 = vector.extract_strided_slice %3 {offsets = [0, 0], sizes = [8, 128], strides = [1, 1]} : vector<40x128xf32> to vector<8x128xf32>
    %5 = vector.extract_strided_slice %3 {offsets = [8, 0], sizes = [8, 128], strides = [1, 1]} : vector<40x128xf32> to vector<8x128xf32>
    %cst_4 = arith.constant 0.000000e+00 : f32
    %6 = vector.broadcast %cst_4 : f32 to vector<8x1xf32>
    %7 = vector.extract_strided_slice %5 {offsets = [0, 0], sizes = [8, 127], strides = [1, 1]} : vector<8x128xf32> to vector<8x127xf32>
    %8 = tpu.concatenate %6, %7 in 1 : vector<8x1xf32>, vector<8x127xf32> -> vector<8x128xf32>
    %9 = arith.addf %4, %8 : vector<8x128xf32>
    %10 = vector.extract_strided_slice %3 {offsets = [16, 0], sizes = [8, 128], strides = [1, 1]} : vector<40x128xf32> to vector<8x128xf32>
    %cst_5 = arith.constant 0.000000e+00 : f32
    %11 = vector.broadcast %cst_5 : f32 to vector<8x2xf32>
    %12 = vector.extract_strided_slice %10 {offsets = [0, 0], sizes = [8, 126], strides = [1, 1]} : vector<8x128xf32> to vector<8x126xf32>
    %13 = tpu.concatenate %11, %12 in 1 : vector<8x2xf32>, vector<8x126xf32> -> vector<8x128xf32>
    %14 = arith.addf %9, %13 : vector<8x128xf32>
    %15 = vector.extract_strided_slice %3 {offsets = [24, 0], sizes = [8, 128], strides = [1, 1]} : vector<40x128xf32> to vector<8x128xf32>
    %cst_6 = arith.constant 0.000000e+00 : f32
    %16 = vector.broadcast %cst_6 : f32 to vector<8x3xf32>
    %17 = vector.extract_strided_slice %15 {offsets = [0, 0], sizes = [8, 125], strides = [1, 1]} : vector<8x128xf32> to vector<8x125xf32>
    %18 = tpu.concatenate %16, %17 in 1 : vector<8x3xf32>, vector<8x125xf32> -> vector<8x128xf32>
    %19 = arith.addf %14, %18 : vector<8x128xf32>
    %20 = vector.extract_strided_slice %3 {offsets = [32, 0], sizes = [8, 128], strides = [1, 1]} : vector<40x128xf32> to vector<8x128xf32>
    %cst_7 = arith.constant 0.000000e+00 : f32
    %21 = vector.broadcast %cst_7 : f32 to vector<8x4xf32>
    %22 = vector.extract_strided_slice %20 {offsets = [0, 0], sizes = [8, 124], strides = [1, 1]} : vector<8x128xf32> to vector<8x124xf32>
    %23 = tpu.concatenate %21, %22 in 1 : vector<8x4xf32>, vector<8x124xf32> -> vector<8x128xf32>
    %24 = arith.addf %19, %23 : vector<8x128xf32>
    %c1 = arith.constant 1 : index
    %c0_8 = arith.constant 0 : index
    %c0_9 = arith.constant 0 : index
    %25 = vector.load %arg1[%c1, %c0_8, %c0_9] : memref<8x4x128xf32, #tpu.memory_space<vmem>>, vector<1x4x128xf32>
    %26 = vector.shape_cast %25 : vector<1x4x128xf32> to vector<4x128xf32>
    %cst_10 = arith.constant dense<0.000000e+00> : vector<40x128xf32>
    %27 = tpu.matmul %0, %26, %cst_10 {dimension_numbers = #tpu.dot_dimension_numbers<[1], [0], [0], [1], [0, 0, 1, 1], [], []>} : vector<40x4xf32>, vector<4x128xf32>, vector<40x128xf32> -> vector<40x128xf32>
    %28 = vector.extract_strided_slice %27 {offsets = [0, 0], sizes = [8, 128], strides = [1, 1]} : vector<40x128xf32> to vector<8x128xf32>
    %29 = vector.extract_strided_slice %27 {offsets = [8, 0], sizes = [8, 128], strides = [1, 1]} : vector<40x128xf32> to vector<8x128xf32>
    %cst_11 = arith.constant 0.000000e+00 : f32
    %30 = vector.broadcast %cst_11 : f32 to vector<8x1xf32>
    %31 = vector.extract_strided_slice %29 {offsets = [0, 0], sizes = [8, 127], strides = [1, 1]} : vector<8x128xf32> to vector<8x127xf32>
    %32 = tpu.concatenate %30, %31 in 1 : vector<8x1xf32>, vector<8x127xf32> -> vector<8x128xf32>
    %33 = arith.addf %28, %32 : vector<8x128xf32>
    %34 = vector.extract_strided_slice %27 {offsets = [16, 0], sizes = [8, 128], strides = [1, 1]} : vector<40x128xf32> to vector<8x128xf32>
    %cst_12 = arith.constant 0.000000e+00 : f32
    %35 = vector.broadcast %cst_12 : f32 to vector<8x2xf32>
    %36 = vector.extract_strided_slice %34 {offsets = [0, 0], sizes = [8, 126], strides = [1, 1]} : vector<8x128xf32> to vector<8x126xf32>
    %37 = tpu.concatenate %35, %36 in 1 : vector<8x2xf32>, vector<8x126xf32> -> vector<8x128xf32>
    %38 = arith.addf %33, %37 : vector<8x128xf32>
    %39 = vector.extract_strided_slice %27 {offsets = [24, 0], sizes = [8, 128], strides = [1, 1]} : vector<40x128xf32> to vector<8x128xf32>
    %cst_13 = arith.constant 0.000000e+00 : f32
    %40 = vector.broadcast %cst_13 : f32 to vector<8x3xf32>
    %41 = vector.extract_strided_slice %39 {offsets = [0, 0], sizes = [8, 125], strides = [1, 1]} : vector<8x128xf32> to vector<8x125xf32>
    %42 = tpu.concatenate %40, %41 in 1 : vector<8x3xf32>, vector<8x125xf32> -> vector<8x128xf32>
    %43 = arith.addf %38, %42 : vector<8x128xf32>
    %44 = vector.extract_strided_slice %27 {offsets = [32, 0], sizes = [8, 128], strides = [1, 1]} : vector<40x128xf32> to vector<8x128xf32>
    %cst_14 = arith.constant 0.000000e+00 : f32
    %45 = vector.broadcast %cst_14 : f32 to vector<8x4xf32>
    %46 = vector.extract_strided_slice %44 {offsets = [0, 0], sizes = [8, 124], strides = [1, 1]} : vector<8x128xf32> to vector<8x124xf32>
    %47 = tpu.concatenate %45, %46 in 1 : vector<8x4xf32>, vector<8x124xf32> -> vector<8x128xf32>
    %48 = arith.addf %43, %47 : vector<8x128xf32>
    %c2 = arith.constant 2 : index
    %c0_15 = arith.constant 0 : index
    %c0_16 = arith.constant 0 : index
    %49 = vector.load %arg1[%c2, %c0_15, %c0_16] : memref<8x4x128xf32, #tpu.memory_space<vmem>>, vector<1x4x128xf32>
    %50 = vector.shape_cast %49 : vector<1x4x128xf32> to vector<4x128xf32>
    %cst_17 = arith.constant dense<0.000000e+00> : vector<40x128xf32>
    %51 = tpu.matmul %0, %50, %cst_17 {dimension_numbers = #tpu.dot_dimension_numbers<[1], [0], [0], [1], [0, 0, 1, 1], [], []>} : vector<40x4xf32>, vector<4x128xf32>, vector<40x128xf32> -> vector<40x128xf32>
    %52 = vector.extract_strided_slice %51 {offsets = [0, 0], sizes = [8, 128], strides = [1, 1]} : vector<40x128xf32> to vector<8x128xf32>
    %53 = vector.extract_strided_slice %51 {offsets = [8, 0], sizes = [8, 128], strides = [1, 1]} : vector<40x128xf32> to vector<8x128xf32>
    %cst_18 = arith.constant 0.000000e+00 : f32
    %54 = vector.broadcast %cst_18 : f32 to vector<8x1xf32>
    %55 = vector.extract_strided_slice %53 {offsets = [0, 0], sizes = [8, 127], strides = [1, 1]} : vector<8x128xf32> to vector<8x127xf32>
    %56 = tpu.concatenate %54, %55 in 1 : vector<8x1xf32>, vector<8x127xf32> -> vector<8x128xf32>
    %57 = arith.addf %52, %56 : vector<8x128xf32>
    %58 = vector.extract_strided_slice %51 {offsets = [16, 0], sizes = [8, 128], strides = [1, 1]} : vector<40x128xf32> to vector<8x128xf32>
    %cst_19 = arith.constant 0.000000e+00 : f32
    %59 = vector.broadcast %cst_19 : f32 to vector<8x2xf32>
    %60 = vector.extract_strided_slice %58 {offsets = [0, 0], sizes = [8, 126], strides = [1, 1]} : vector<8x128xf32> to vector<8x126xf32>
    %61 = tpu.concatenate %59, %60 in 1 : vector<8x2xf32>, vector<8x126xf32> -> vector<8x128xf32>
    %62 = arith.addf %57, %61 : vector<8x128xf32>
    %63 = vector.extract_strided_slice %51 {offsets = [24, 0], sizes = [8, 128], strides = [1, 1]} : vector<40x128xf32> to vector<8x128xf32>
    %cst_20 = arith.constant 0.000000e+00 : f32
    %64 = vector.broadcast %cst_20 : f32 to vector<8x3xf32>
    %65 = vector.extract_strided_slice %63 {offsets = [0, 0], sizes = [8, 125], strides = [1, 1]} : vector<8x128xf32> to vector<8x125xf32>
    %66 = tpu.concatenate %64, %65 in 1 : vector<8x3xf32>, vector<8x125xf32> -> vector<8x128xf32>
    %67 = arith.addf %62, %66 : vector<8x128xf32>
    %68 = vector.extract_strided_slice %51 {offsets = [32, 0], sizes = [8, 128], strides = [1, 1]} : vector<40x128xf32> to vector<8x128xf32>
    %cst_21 = arith.constant 0.000000e+00 : f32
    %69 = vector.broadcast %cst_21 : f32 to vector<8x4xf32>
    %70 = vector.extract_strided_slice %68 {offsets = [0, 0], sizes = [8, 124], strides = [1, 1]} : vector<8x128xf32> to vector<8x124xf32>
    %71 = tpu.concatenate %69, %70 in 1 : vector<8x4xf32>, vector<8x124xf32> -> vector<8x128xf32>
    %72 = arith.addf %67, %71 : vector<8x128xf32>
    %c3 = arith.constant 3 : index
    %c0_22 = arith.constant 0 : index
    %c0_23 = arith.constant 0 : index
    %73 = vector.load %arg1[%c3, %c0_22, %c0_23] : memref<8x4x128xf32, #tpu.memory_space<vmem>>, vector<1x4x128xf32>
    %74 = vector.shape_cast %73 : vector<1x4x128xf32> to vector<4x128xf32>
    %cst_24 = arith.constant dense<0.000000e+00> : vector<40x128xf32>
    %75 = tpu.matmul %0, %74, %cst_24 {dimension_numbers = #tpu.dot_dimension_numbers<[1], [0], [0], [1], [0, 0, 1, 1], [], []>} : vector<40x4xf32>, vector<4x128xf32>, vector<40x128xf32> -> vector<40x128xf32>
    %76 = vector.extract_strided_slice %75 {offsets = [0, 0], sizes = [8, 128], strides = [1, 1]} : vector<40x128xf32> to vector<8x128xf32>
    %77 = vector.extract_strided_slice %75 {offsets = [8, 0], sizes = [8, 128], strides = [1, 1]} : vector<40x128xf32> to vector<8x128xf32>
    %cst_25 = arith.constant 0.000000e+00 : f32
    %78 = vector.broadcast %cst_25 : f32 to vector<8x1xf32>
    %79 = vector.extract_strided_slice %77 {offsets = [0, 0], sizes = [8, 127], strides = [1, 1]} : vector<8x128xf32> to vector<8x127xf32>
    %80 = tpu.concatenate %78, %79 in 1 : vector<8x1xf32>, vector<8x127xf32> -> vector<8x128xf32>
    %81 = arith.addf %76, %80 : vector<8x128xf32>
    %82 = vector.extract_strided_slice %75 {offsets = [16, 0], sizes = [8, 128], strides = [1, 1]} : vector<40x128xf32> to vector<8x128xf32>
    %cst_26 = arith.constant 0.000000e+00 : f32
    %83 = vector.broadcast %cst_26 : f32 to vector<8x2xf32>
    %84 = vector.extract_strided_slice %82 {offsets = [0, 0], sizes = [8, 126], strides = [1, 1]} : vector<8x128xf32> to vector<8x126xf32>
    %85 = tpu.concatenate %83, %84 in 1 : vector<8x2xf32>, vector<8x126xf32> -> vector<8x128xf32>
    %86 = arith.addf %81, %85 : vector<8x128xf32>
    %87 = vector.extract_strided_slice %75 {offsets = [24, 0], sizes = [8, 128], strides = [1, 1]} : vector<40x128xf32> to vector<8x128xf32>
    %cst_27 = arith.constant 0.000000e+00 : f32
    %88 = vector.broadcast %cst_27 : f32 to vector<8x3xf32>
    %89 = vector.extract_strided_slice %87 {offsets = [0, 0], sizes = [8, 125], strides = [1, 1]} : vector<8x128xf32> to vector<8x125xf32>
    %90 = tpu.concatenate %88, %89 in 1 : vector<8x3xf32>, vector<8x125xf32> -> vector<8x128xf32>
    %91 = arith.addf %86, %90 : vector<8x128xf32>
    %92 = vector.extract_strided_slice %75 {offsets = [32, 0], sizes = [8, 128], strides = [1, 1]} : vector<40x128xf32> to vector<8x128xf32>
    %cst_28 = arith.constant 0.000000e+00 : f32
    %93 = vector.broadcast %cst_28 : f32 to vector<8x4xf32>
    %94 = vector.extract_strided_slice %92 {offsets = [0, 0], sizes = [8, 124], strides = [1, 1]} : vector<8x128xf32> to vector<8x124xf32>
    %95 = tpu.concatenate %93, %94 in 1 : vector<8x4xf32>, vector<8x124xf32> -> vector<8x128xf32>
    %96 = arith.addf %91, %95 : vector<8x128xf32>
    %c4 = arith.constant 4 : index
    %c0_29 = arith.constant 0 : index
    %c0_30 = arith.constant 0 : index
    %97 = vector.load %arg1[%c4, %c0_29, %c0_30] : memref<8x4x128xf32, #tpu.memory_space<vmem>>, vector<1x4x128xf32>
    %98 = vector.shape_cast %97 : vector<1x4x128xf32> to vector<4x128xf32>
    %cst_31 = arith.constant dense<0.000000e+00> : vector<40x128xf32>
    %99 = tpu.matmul %0, %98, %cst_31 {dimension_numbers = #tpu.dot_dimension_numbers<[1], [0], [0], [1], [0, 0, 1, 1], [], []>} : vector<40x4xf32>, vector<4x128xf32>, vector<40x128xf32> -> vector<40x128xf32>
    %100 = vector.extract_strided_slice %99 {offsets = [0, 0], sizes = [8, 128], strides = [1, 1]} : vector<40x128xf32> to vector<8x128xf32>
    %101 = vector.extract_strided_slice %99 {offsets = [8, 0], sizes = [8, 128], strides = [1, 1]} : vector<40x128xf32> to vector<8x128xf32>
    %cst_32 = arith.constant 0.000000e+00 : f32
    %102 = vector.broadcast %cst_32 : f32 to vector<8x1xf32>
    %103 = vector.extract_strided_slice %101 {offsets = [0, 0], sizes = [8, 127], strides = [1, 1]} : vector<8x128xf32> to vector<8x127xf32>
    %104 = tpu.concatenate %102, %103 in 1 : vector<8x1xf32>, vector<8x127xf32> -> vector<8x128xf32>
    %105 = arith.addf %100, %104 : vector<8x128xf32>
    %106 = vector.extract_strided_slice %99 {offsets = [16, 0], sizes = [8, 128], strides = [1, 1]} : vector<40x128xf32> to vector<8x128xf32>
    %cst_33 = arith.constant 0.000000e+00 : f32
    %107 = vector.broadcast %cst_33 : f32 to vector<8x2xf32>
    %108 = vector.extract_strided_slice %106 {offsets = [0, 0], sizes = [8, 126], strides = [1, 1]} : vector<8x128xf32> to vector<8x126xf32>
    %109 = tpu.concatenate %107, %108 in 1 : vector<8x2xf32>, vector<8x126xf32> -> vector<8x128xf32>
    %110 = arith.addf %105, %109 : vector<8x128xf32>
    %111 = vector.extract_strided_slice %99 {offsets = [24, 0], sizes = [8, 128], strides = [1, 1]} : vector<40x128xf32> to vector<8x128xf32>
    %cst_34 = arith.constant 0.000000e+00 : f32
    %112 = vector.broadcast %cst_34 : f32 to vector<8x3xf32>
    %113 = vector.extract_strided_slice %111 {offsets = [0, 0], sizes = [8, 125], strides = [1, 1]} : vector<8x128xf32> to vector<8x125xf32>
    %114 = tpu.concatenate %112, %113 in 1 : vector<8x3xf32>, vector<8x125xf32> -> vector<8x128xf32>
    %115 = arith.addf %110, %114 : vector<8x128xf32>
    %116 = vector.extract_strided_slice %99 {offsets = [32, 0], sizes = [8, 128], strides = [1, 1]} : vector<40x128xf32> to vector<8x128xf32>
    %cst_35 = arith.constant 0.000000e+00 : f32
    %117 = vector.broadcast %cst_35 : f32 to vector<8x4xf32>
    %118 = vector.extract_strided_slice %116 {offsets = [0, 0], sizes = [8, 124], strides = [1, 1]} : vector<8x128xf32> to vector<8x124xf32>
    %119 = tpu.concatenate %117, %118 in 1 : vector<8x4xf32>, vector<8x124xf32> -> vector<8x128xf32>
    %120 = arith.addf %115, %119 : vector<8x128xf32>
    %c5 = arith.constant 5 : index
    %c0_36 = arith.constant 0 : index
    %c0_37 = arith.constant 0 : index
    %121 = vector.load %arg1[%c5, %c0_36, %c0_37] : memref<8x4x128xf32, #tpu.memory_space<vmem>>, vector<1x4x128xf32>
    %122 = vector.shape_cast %121 : vector<1x4x128xf32> to vector<4x128xf32>
    %cst_38 = arith.constant dense<0.000000e+00> : vector<40x128xf32>
    %123 = tpu.matmul %0, %122, %cst_38 {dimension_numbers = #tpu.dot_dimension_numbers<[1], [0], [0], [1], [0, 0, 1, 1], [], []>} : vector<40x4xf32>, vector<4x128xf32>, vector<40x128xf32> -> vector<40x128xf32>
    %124 = vector.extract_strided_slice %123 {offsets = [0, 0], sizes = [8, 128], strides = [1, 1]} : vector<40x128xf32> to vector<8x128xf32>
    %125 = vector.extract_strided_slice %123 {offsets = [8, 0], sizes = [8, 128], strides = [1, 1]} : vector<40x128xf32> to vector<8x128xf32>
    %cst_39 = arith.constant 0.000000e+00 : f32
    %126 = vector.broadcast %cst_39 : f32 to vector<8x1xf32>
    %127 = vector.extract_strided_slice %125 {offsets = [0, 0], sizes = [8, 127], strides = [1, 1]} : vector<8x128xf32> to vector<8x127xf32>
    %128 = tpu.concatenate %126, %127 in 1 : vector<8x1xf32>, vector<8x127xf32> -> vector<8x128xf32>
    %129 = arith.addf %124, %128 : vector<8x128xf32>
    %130 = vector.extract_strided_slice %123 {offsets = [16, 0], sizes = [8, 128], strides = [1, 1]} : vector<40x128xf32> to vector<8x128xf32>
    %cst_40 = arith.constant 0.000000e+00 : f32
    %131 = vector.broadcast %cst_40 : f32 to vector<8x2xf32>
    %132 = vector.extract_strided_slice %130 {offsets = [0, 0], sizes = [8, 126], strides = [1, 1]} : vector<8x128xf32> to vector<8x126xf32>
    %133 = tpu.concatenate %131, %132 in 1 : vector<8x2xf32>, vector<8x126xf32> -> vector<8x128xf32>
    %134 = arith.addf %129, %133 : vector<8x128xf32>
    %135 = vector.extract_strided_slice %123 {offsets = [24, 0], sizes = [8, 128], strides = [1, 1]} : vector<40x128xf32> to vector<8x128xf32>
    %cst_41 = arith.constant 0.000000e+00 : f32
    %136 = vector.broadcast %cst_41 : f32 to vector<8x3xf32>
    %137 = vector.extract_strided_slice %135 {offsets = [0, 0], sizes = [8, 125], strides = [1, 1]} : vector<8x128xf32> to vector<8x125xf32>
    %138 = tpu.concatenate %136, %137 in 1 : vector<8x3xf32>, vector<8x125xf32> -> vector<8x128xf32>
    %139 = arith.addf %134, %138 : vector<8x128xf32>
    %140 = vector.extract_strided_slice %123 {offsets = [32, 0], sizes = [8, 128], strides = [1, 1]} : vector<40x128xf32> to vector<8x128xf32>
    %cst_42 = arith.constant 0.000000e+00 : f32
    %141 = vector.broadcast %cst_42 : f32 to vector<8x4xf32>
    %142 = vector.extract_strided_slice %140 {offsets = [0, 0], sizes = [8, 124], strides = [1, 1]} : vector<8x128xf32> to vector<8x124xf32>
    %143 = tpu.concatenate %141, %142 in 1 : vector<8x4xf32>, vector<8x124xf32> -> vector<8x128xf32>
    %144 = arith.addf %139, %143 : vector<8x128xf32>
    %c6 = arith.constant 6 : index
    %c0_43 = arith.constant 0 : index
    %c0_44 = arith.constant 0 : index
    %145 = vector.load %arg1[%c6, %c0_43, %c0_44] : memref<8x4x128xf32, #tpu.memory_space<vmem>>, vector<1x4x128xf32>
    %146 = vector.shape_cast %145 : vector<1x4x128xf32> to vector<4x128xf32>
    %cst_45 = arith.constant dense<0.000000e+00> : vector<40x128xf32>
    %147 = tpu.matmul %0, %146, %cst_45 {dimension_numbers = #tpu.dot_dimension_numbers<[1], [0], [0], [1], [0, 0, 1, 1], [], []>} : vector<40x4xf32>, vector<4x128xf32>, vector<40x128xf32> -> vector<40x128xf32>
    %148 = vector.extract_strided_slice %147 {offsets = [0, 0], sizes = [8, 128], strides = [1, 1]} : vector<40x128xf32> to vector<8x128xf32>
    %149 = vector.extract_strided_slice %147 {offsets = [8, 0], sizes = [8, 128], strides = [1, 1]} : vector<40x128xf32> to vector<8x128xf32>
    %cst_46 = arith.constant 0.000000e+00 : f32
    %150 = vector.broadcast %cst_46 : f32 to vector<8x1xf32>
    %151 = vector.extract_strided_slice %149 {offsets = [0, 0], sizes = [8, 127], strides = [1, 1]} : vector<8x128xf32> to vector<8x127xf32>
    %152 = tpu.concatenate %150, %151 in 1 : vector<8x1xf32>, vector<8x127xf32> -> vector<8x128xf32>
    %153 = arith.addf %148, %152 : vector<8x128xf32>
    %154 = vector.extract_strided_slice %147 {offsets = [16, 0], sizes = [8, 128], strides = [1, 1]} : vector<40x128xf32> to vector<8x128xf32>
    %cst_47 = arith.constant 0.000000e+00 : f32
    %155 = vector.broadcast %cst_47 : f32 to vector<8x2xf32>
    %156 = vector.extract_strided_slice %154 {offsets = [0, 0], sizes = [8, 126], strides = [1, 1]} : vector<8x128xf32> to vector<8x126xf32>
    %157 = tpu.concatenate %155, %156 in 1 : vector<8x2xf32>, vector<8x126xf32> -> vector<8x128xf32>
    %158 = arith.addf %153, %157 : vector<8x128xf32>
    %159 = vector.extract_strided_slice %147 {offsets = [24, 0], sizes = [8, 128], strides = [1, 1]} : vector<40x128xf32> to vector<8x128xf32>
    %cst_48 = arith.constant 0.000000e+00 : f32
    %160 = vector.broadcast %cst_48 : f32 to vector<8x3xf32>
    %161 = vector.extract_strided_slice %159 {offsets = [0, 0], sizes = [8, 125], strides = [1, 1]} : vector<8x128xf32> to vector<8x125xf32>
    %162 = tpu.concatenate %160, %161 in 1 : vector<8x3xf32>, vector<8x125xf32> -> vector<8x128xf32>
    %163 = arith.addf %158, %162 : vector<8x128xf32>
    %164 = vector.extract_strided_slice %147 {offsets = [32, 0], sizes = [8, 128], strides = [1, 1]} : vector<40x128xf32> to vector<8x128xf32>
    %cst_49 = arith.constant 0.000000e+00 : f32
    %165 = vector.broadcast %cst_49 : f32 to vector<8x4xf32>
    %166 = vector.extract_strided_slice %164 {offsets = [0, 0], sizes = [8, 124], strides = [1, 1]} : vector<8x128xf32> to vector<8x124xf32>
    %167 = tpu.concatenate %165, %166 in 1 : vector<8x4xf32>, vector<8x124xf32> -> vector<8x128xf32>
    %168 = arith.addf %163, %167 : vector<8x128xf32>
    %c7 = arith.constant 7 : index
    %c0_50 = arith.constant 0 : index
    %c0_51 = arith.constant 0 : index
    %169 = vector.load %arg1[%c7, %c0_50, %c0_51] : memref<8x4x128xf32, #tpu.memory_space<vmem>>, vector<1x4x128xf32>
    %170 = vector.shape_cast %169 : vector<1x4x128xf32> to vector<4x128xf32>
    %cst_52 = arith.constant dense<0.000000e+00> : vector<40x128xf32>
    %171 = tpu.matmul %0, %170, %cst_52 {dimension_numbers = #tpu.dot_dimension_numbers<[1], [0], [0], [1], [0, 0, 1, 1], [], []>} : vector<40x4xf32>, vector<4x128xf32>, vector<40x128xf32> -> vector<40x128xf32>
    %172 = vector.extract_strided_slice %171 {offsets = [0, 0], sizes = [8, 128], strides = [1, 1]} : vector<40x128xf32> to vector<8x128xf32>
    %173 = vector.extract_strided_slice %171 {offsets = [8, 0], sizes = [8, 128], strides = [1, 1]} : vector<40x128xf32> to vector<8x128xf32>
    %cst_53 = arith.constant 0.000000e+00 : f32
    %174 = vector.broadcast %cst_53 : f32 to vector<8x1xf32>
    %175 = vector.extract_strided_slice %173 {offsets = [0, 0], sizes = [8, 127], strides = [1, 1]} : vector<8x128xf32> to vector<8x127xf32>
    %176 = tpu.concatenate %174, %175 in 1 : vector<8x1xf32>, vector<8x127xf32> -> vector<8x128xf32>
    %177 = arith.addf %172, %176 : vector<8x128xf32>
    %178 = vector.extract_strided_slice %171 {offsets = [16, 0], sizes = [8, 128], strides = [1, 1]} : vector<40x128xf32> to vector<8x128xf32>
    %cst_54 = arith.constant 0.000000e+00 : f32
    %179 = vector.broadcast %cst_54 : f32 to vector<8x2xf32>
    %180 = vector.extract_strided_slice %178 {offsets = [0, 0], sizes = [8, 126], strides = [1, 1]} : vector<8x128xf32> to vector<8x126xf32>
    %181 = tpu.concatenate %179, %180 in 1 : vector<8x2xf32>, vector<8x126xf32> -> vector<8x128xf32>
    %182 = arith.addf %177, %181 : vector<8x128xf32>
    %183 = vector.extract_strided_slice %171 {offsets = [24, 0], sizes = [8, 128], strides = [1, 1]} : vector<40x128xf32> to vector<8x128xf32>
    %cst_55 = arith.constant 0.000000e+00 : f32
    %184 = vector.broadcast %cst_55 : f32 to vector<8x3xf32>
    %185 = vector.extract_strided_slice %183 {offsets = [0, 0], sizes = [8, 125], strides = [1, 1]} : vector<8x128xf32> to vector<8x125xf32>
    %186 = tpu.concatenate %184, %185 in 1 : vector<8x3xf32>, vector<8x125xf32> -> vector<8x128xf32>
    %187 = arith.addf %182, %186 : vector<8x128xf32>
    %188 = vector.extract_strided_slice %171 {offsets = [32, 0], sizes = [8, 128], strides = [1, 1]} : vector<40x128xf32> to vector<8x128xf32>
    %cst_56 = arith.constant 0.000000e+00 : f32
    %189 = vector.broadcast %cst_56 : f32 to vector<8x4xf32>
    %190 = vector.extract_strided_slice %188 {offsets = [0, 0], sizes = [8, 124], strides = [1, 1]} : vector<8x128xf32> to vector<8x124xf32>
    %191 = tpu.concatenate %189, %190 in 1 : vector<8x4xf32>, vector<8x124xf32> -> vector<8x128xf32>
    %192 = arith.addf %187, %191 : vector<8x128xf32>
    %193 = vector.shape_cast %24 : vector<8x128xf32> to vector<1x8x128xf32>
    %194 = vector.shape_cast %48 : vector<8x128xf32> to vector<1x8x128xf32>
    %195 = vector.shape_cast %72 : vector<8x128xf32> to vector<1x8x128xf32>
    %196 = vector.shape_cast %96 : vector<8x128xf32> to vector<1x8x128xf32>
    %197 = vector.shape_cast %120 : vector<8x128xf32> to vector<1x8x128xf32>
    %198 = vector.shape_cast %144 : vector<8x128xf32> to vector<1x8x128xf32>
    %199 = vector.shape_cast %168 : vector<8x128xf32> to vector<1x8x128xf32>
    %200 = vector.shape_cast %192 : vector<8x128xf32> to vector<1x8x128xf32>
    %201 = tpu.concatenate %193, %194, %195, %196, %197, %198, %199, %200 in 0 : vector<1x8x128xf32>, vector<1x8x128xf32>, vector<1x8x128xf32>, vector<1x8x128xf32>, vector<1x8x128xf32>, vector<1x8x128xf32>, vector<1x8x128xf32>, vector<1x8x128xf32> -> vector<8x8x128xf32>
    %c0_57 = arith.constant 0 : index
    %c0_58 = arith.constant 0 : index
    %202 = vector.load %arg5[%c0_57, %c0_58] : memref<8x1xf32, #tpu.memory_space<vmem>>, vector<8x1xf32>
    %203 = vector.shape_cast %202 : vector<8x1xf32> to vector<1x8x1xf32>
    %204 = vector.broadcast %203 : vector<1x8x1xf32> to vector<8x8x128xf32>
    %205 = arith.addf %201, %204 : vector<8x8x128xf32>
    %cst_59 = arith.constant 0.000000e+00 : f32
    %206 = vector.broadcast %cst_59 : f32 to vector<8x8x128xf32>
    %207 = arith.maximumf %205, %206 : vector<8x8x128xf32>
    %c0_60 = arith.constant 0 : index
    %c0_61 = arith.constant 0 : index
    %c0_62 = arith.constant 0 : index
    %208 = vector.load %arg3[%c0_60, %c0_61, %c0_62] : memref<1x8x1xf32, #tpu.memory_space<vmem>>, vector<1x8x1xf32>
    %209 = vector.shape_cast %208 : vector<1x8x1xf32> to vector<8x1xf32>
    %210 = vector.shape_cast %209 : vector<8x1xf32> to vector<8x1x1xf32>
    %c0_63 = arith.constant 0 : index
    %c0_64 = arith.constant 0 : index
    %211 = vector.load %arg6[%c0_63, %c0_64] : memref<8x1xf32, #tpu.memory_space<vmem>>, vector<8x1xf32>
    %212 = vector.shape_cast %211 : vector<8x1xf32> to vector<1x8x1xf32>
    %213 = vector.broadcast %210 : vector<8x1x1xf32> to vector<8x8x1xf32>
    %214 = vector.broadcast %212 : vector<1x8x1xf32> to vector<8x8x1xf32>
    %215 = arith.mulf %213, %214 : vector<8x8x1xf32>
    %c0_65 = arith.constant 0 : index
    %c0_66 = arith.constant 0 : index
    %216 = vector.load %arg7[%c0_65, %c0_66] : memref<8x1xf32, #tpu.memory_space<vmem>>, vector<8x1xf32>
    %217 = vector.shape_cast %216 : vector<8x1xf32> to vector<1x8x1xf32>
    %218 = vector.broadcast %217 : vector<1x8x1xf32> to vector<8x8x1xf32>
    %219 = arith.addf %215, %218 : vector<8x8x1xf32>
    %220 = arith.negf %219 : vector<8x8x1xf32>
    %221 = math.exp %220 : vector<8x8x1xf32>
    %cst_67 = arith.constant 1.000000e+00 : f32
    %222 = vector.broadcast %cst_67 : f32 to vector<8x8x1xf32>
    %223 = arith.addf %222, %221 : vector<8x8x1xf32>
    %224 = arith.divf %222, %223 : vector<8x8x1xf32>
    %c0_68 = arith.constant 0 : index
    %c0_69 = arith.constant 0 : index
    %c0_70 = arith.constant 0 : index
    %225 = vector.load %arg2[%c0_68, %c0_69, %c0_70] : memref<1x8x128xf32, #tpu.memory_space<vmem>>, vector<1x8x128xf32>
    %226 = vector.shape_cast %225 : vector<1x8x128xf32> to vector<8x128xf32>
    %cst_71 = arith.constant 1.000000e+00 : f32
    %227 = vector.broadcast %cst_71 : f32 to vector<8x128xf32>
    %228 = arith.minimumf %226, %227 : vector<8x128xf32>
    %c0_72 = arith.constant 0 : index
    %c0_73 = arith.constant 0 : index
    %229 = memref.load %arg8[%c0_72, %c0_73] : memref<1x30xf32, #tpu.memory_space<smem>>
    %230 = vector.broadcast %229 : f32 to vector<8x128xf32>
    %231 = arith.mulf %230, %228 : vector<8x128xf32>
    %c0_74 = arith.constant 0 : index
    %c1_75 = arith.constant 1 : index
    %232 = memref.load %arg8[%c0_74, %c1_75] : memref<1x30xf32, #tpu.memory_space<smem>>
    %cst_76 = arith.constant 0.000000e+00 : f32
    %233 = vector.broadcast %cst_76 : f32 to vector<8x1xf32>
    %234 = vector.extract_strided_slice %228 {offsets = [0, 0], sizes = [8, 127], strides = [1, 1]} : vector<8x128xf32> to vector<8x127xf32>
    %235 = tpu.concatenate %233, %234 in 1 : vector<8x1xf32>, vector<8x127xf32> -> vector<8x128xf32>
    %236 = vector.broadcast %232 : f32 to vector<8x128xf32>
    %237 = arith.mulf %236, %235 : vector<8x128xf32>
    %238 = arith.addf %231, %237 : vector<8x128xf32>
    %c0_77 = arith.constant 0 : index
    %c2_78 = arith.constant 2 : index
    %239 = memref.load %arg8[%c0_77, %c2_78] : memref<1x30xf32, #tpu.memory_space<smem>>
    %cst_79 = arith.constant 0.000000e+00 : f32
    %240 = vector.broadcast %cst_79 : f32 to vector<8x2xf32>
    %241 = vector.extract_strided_slice %228 {offsets = [0, 0], sizes = [8, 126], strides = [1, 1]} : vector<8x128xf32> to vector<8x126xf32>
    %242 = tpu.concatenate %240, %241 in 1 : vector<8x2xf32>, vector<8x126xf32> -> vector<8x128xf32>
    %243 = vector.broadcast %239 : f32 to vector<8x128xf32>
    %244 = arith.mulf %243, %242 : vector<8x128xf32>
    %245 = arith.addf %238, %244 : vector<8x128xf32>
    %c0_80 = arith.constant 0 : index
    %c3_81 = arith.constant 3 : index
    %246 = memref.load %arg8[%c0_80, %c3_81] : memref<1x30xf32, #tpu.memory_space<smem>>
    %cst_82 = arith.constant 0.000000e+00 : f32
    %247 = vector.broadcast %cst_82 : f32 to vector<8x3xf32>
    %248 = vector.extract_strided_slice %228 {offsets = [0, 0], sizes = [8, 125], strides = [1, 1]} : vector<8x128xf32> to vector<8x125xf32>
    %249 = tpu.concatenate %247, %248 in 1 : vector<8x3xf32>, vector<8x125xf32> -> vector<8x128xf32>
    %250 = vector.broadcast %246 : f32 to vector<8x128xf32>
    %251 = arith.mulf %250, %249 : vector<8x128xf32>
    %252 = arith.addf %245, %251 : vector<8x128xf32>
    %c0_83 = arith.constant 0 : index
    %c4_84 = arith.constant 4 : index
    %253 = memref.load %arg8[%c0_83, %c4_84] : memref<1x30xf32, #tpu.memory_space<smem>>
    %cst_85 = arith.constant 0.000000e+00 : f32
    %254 = vector.broadcast %cst_85 : f32 to vector<8x4xf32>
    %255 = vector.extract_strided_slice %228 {offsets = [0, 0], sizes = [8, 124], strides = [1, 1]} : vector<8x128xf32> to vector<8x124xf32>
    %256 = tpu.concatenate %254, %255 in 1 : vector<8x4xf32>, vector<8x124xf32> -> vector<8x128xf32>
    %257 = vector.broadcast %253 : f32 to vector<8x128xf32>
    %258 = arith.mulf %257, %256 : vector<8x128xf32>
    %259 = arith.addf %252, %258 : vector<8x128xf32>
    %c0_86 = arith.constant 0 : index
    %c5_87 = arith.constant 5 : index
    %260 = memref.load %arg8[%c0_86, %c5_87] : memref<1x30xf32, #tpu.memory_space<smem>>
    %cst_88 = arith.constant 0.000000e+00 : f32
    %261 = vector.broadcast %cst_88 : f32 to vector<8x5xf32>
    %262 = vector.extract_strided_slice %228 {offsets = [0, 0], sizes = [8, 123], strides = [1, 1]} : vector<8x128xf32> to vector<8x123xf32>
    %263 = tpu.concatenate %261, %262 in 1 : vector<8x5xf32>, vector<8x123xf32> -> vector<8x128xf32>
    %264 = vector.broadcast %260 : f32 to vector<8x128xf32>
    %265 = arith.mulf %264, %263 : vector<8x128xf32>
    %266 = arith.addf %259, %265 : vector<8x128xf32>
    %c0_89 = arith.constant 0 : index
    %c6_90 = arith.constant 6 : index
    %267 = memref.load %arg8[%c0_89, %c6_90] : memref<1x30xf32, #tpu.memory_space<smem>>
    %cst_91 = arith.constant 0.000000e+00 : f32
    %268 = vector.broadcast %cst_91 : f32 to vector<8x6xf32>
    %269 = vector.extract_strided_slice %228 {offsets = [0, 0], sizes = [8, 122], strides = [1, 1]} : vector<8x128xf32> to vector<8x122xf32>
    %270 = tpu.concatenate %268, %269 in 1 : vector<8x6xf32>, vector<8x122xf32> -> vector<8x128xf32>
    %271 = vector.broadcast %267 : f32 to vector<8x128xf32>
    %272 = arith.mulf %271, %270 : vector<8x128xf32>
    %273 = arith.addf %266, %272 : vector<8x128xf32>
    %c0_92 = arith.constant 0 : index
    %c7_93 = arith.constant 7 : index
    %274 = memref.load %arg8[%c0_92, %c7_93] : memref<1x30xf32, #tpu.memory_space<smem>>
    %cst_94 = arith.constant 0.000000e+00 : f32
    %275 = vector.broadcast %cst_94 : f32 to vector<8x7xf32>
    %276 = vector.extract_strided_slice %228 {offsets = [0, 0], sizes = [8, 121], strides = [1, 1]} : vector<8x128xf32> to vector<8x121xf32>
    %277 = tpu.concatenate %275, %276 in 1 : vector<8x7xf32>, vector<8x121xf32> -> vector<8x128xf32>
    %278 = vector.broadcast %274 : f32 to vector<8x128xf32>
    %279 = arith.mulf %278, %277 : vector<8x128xf32>
    %280 = arith.addf %273, %279 : vector<8x128xf32>
    %c0_95 = arith.constant 0 : index
    %c8 = arith.constant 8 : index
    %281 = memref.load %arg8[%c0_95, %c8] : memref<1x30xf32, #tpu.memory_space<smem>>
    %cst_96 = arith.constant 0.000000e+00 : f32
    %282 = vector.broadcast %cst_96 : f32 to vector<8x8xf32>
    %283 = vector.extract_strided_slice %228 {offsets = [0, 0], sizes = [8, 120], strides = [1, 1]} : vector<8x128xf32> to vector<8x120xf32>
    %284 = tpu.concatenate %282, %283 in 1 : vector<8x8xf32>, vector<8x120xf32> -> vector<8x128xf32>
    %285 = vector.broadcast %281 : f32 to vector<8x128xf32>
    %286 = arith.mulf %285, %284 : vector<8x128xf32>
    %287 = arith.addf %280, %286 : vector<8x128xf32>
    %c0_97 = arith.constant 0 : index
    %c9 = arith.constant 9 : index
    %288 = memref.load %arg8[%c0_97, %c9] : memref<1x30xf32, #tpu.memory_space<smem>>
    %cst_98 = arith.constant 0.000000e+00 : f32
    %289 = vector.broadcast %cst_98 : f32 to vector<8x9xf32>
    %290 = vector.extract_strided_slice %228 {offsets = [0, 0], sizes = [8, 119], strides = [1, 1]} : vector<8x128xf32> to vector<8x119xf32>
    %291 = tpu.concatenate %289, %290 in 1 : vector<8x9xf32>, vector<8x119xf32> -> vector<8x128xf32>
    %292 = vector.broadcast %288 : f32 to vector<8x128xf32>
    %293 = arith.mulf %292, %291 : vector<8x128xf32>
    %294 = arith.addf %287, %293 : vector<8x128xf32>
    %c0_99 = arith.constant 0 : index
    %c10 = arith.constant 10 : index
    %295 = memref.load %arg8[%c0_99, %c10] : memref<1x30xf32, #tpu.memory_space<smem>>
    %cst_100 = arith.constant 0.000000e+00 : f32
    %296 = vector.broadcast %cst_100 : f32 to vector<8x10xf32>
    %297 = vector.extract_strided_slice %228 {offsets = [0, 0], sizes = [8, 118], strides = [1, 1]} : vector<8x128xf32> to vector<8x118xf32>
    %298 = tpu.concatenate %296, %297 in 1 : vector<8x10xf32>, vector<8x118xf32> -> vector<8x128xf32>
    %299 = vector.broadcast %295 : f32 to vector<8x128xf32>
    %300 = arith.mulf %299, %298 : vector<8x128xf32>
    %301 = arith.addf %294, %300 : vector<8x128xf32>
    %c0_101 = arith.constant 0 : index
    %c11 = arith.constant 11 : index
    %302 = memref.load %arg8[%c0_101, %c11] : memref<1x30xf32, #tpu.memory_space<smem>>
    %cst_102 = arith.constant 0.000000e+00 : f32
    %303 = vector.broadcast %cst_102 : f32 to vector<8x11xf32>
    %304 = vector.extract_strided_slice %228 {offsets = [0, 0], sizes = [8, 117], strides = [1, 1]} : vector<8x128xf32> to vector<8x117xf32>
    %305 = tpu.concatenate %303, %304 in 1 : vector<8x11xf32>, vector<8x117xf32> -> vector<8x128xf32>
    %306 = vector.broadcast %302 : f32 to vector<8x128xf32>
    %307 = arith.mulf %306, %305 : vector<8x128xf32>
    %308 = arith.addf %301, %307 : vector<8x128xf32>
    %c0_103 = arith.constant 0 : index
    %c12 = arith.constant 12 : index
    %309 = memref.load %arg8[%c0_103, %c12] : memref<1x30xf32, #tpu.memory_space<smem>>
    %cst_104 = arith.constant 0.000000e+00 : f32
    %310 = vector.broadcast %cst_104 : f32 to vector<8x12xf32>
    %311 = vector.extract_strided_slice %228 {offsets = [0, 0], sizes = [8, 116], strides = [1, 1]} : vector<8x128xf32> to vector<8x116xf32>
    %312 = tpu.concatenate %310, %311 in 1 : vector<8x12xf32>, vector<8x116xf32> -> vector<8x128xf32>
    %313 = vector.broadcast %309 : f32 to vector<8x128xf32>
    %314 = arith.mulf %313, %312 : vector<8x128xf32>
    %315 = arith.addf %308, %314 : vector<8x128xf32>
    %c0_105 = arith.constant 0 : index
    %c13 = arith.constant 13 : index
    %316 = memref.load %arg8[%c0_105, %c13] : memref<1x30xf32, #tpu.memory_space<smem>>
    %cst_106 = arith.constant 0.000000e+00 : f32
    %317 = vector.broadcast %cst_106 : f32 to vector<8x13xf32>
    %318 = vector.extract_strided_slice %228 {offsets = [0, 0], sizes = [8, 115], strides = [1, 1]} : vector<8x128xf32> to vector<8x115xf32>
    %319 = tpu.concatenate %317, %318 in 1 : vector<8x13xf32>, vector<8x115xf32> -> vector<8x128xf32>
    %320 = vector.broadcast %316 : f32 to vector<8x128xf32>
    %321 = arith.mulf %320, %319 : vector<8x128xf32>
    %322 = arith.addf %315, %321 : vector<8x128xf32>
    %c0_107 = arith.constant 0 : index
    %c14 = arith.constant 14 : index
    %323 = memref.load %arg8[%c0_107, %c14] : memref<1x30xf32, #tpu.memory_space<smem>>
    %cst_108 = arith.constant 0.000000e+00 : f32
    %324 = vector.broadcast %cst_108 : f32 to vector<8x14xf32>
    %325 = vector.extract_strided_slice %228 {offsets = [0, 0], sizes = [8, 114], strides = [1, 1]} : vector<8x128xf32> to vector<8x114xf32>
    %326 = tpu.concatenate %324, %325 in 1 : vector<8x14xf32>, vector<8x114xf32> -> vector<8x128xf32>
    %327 = vector.broadcast %323 : f32 to vector<8x128xf32>
    %328 = arith.mulf %327, %326 : vector<8x128xf32>
    %329 = arith.addf %322, %328 : vector<8x128xf32>
    %c0_109 = arith.constant 0 : index
    %c15 = arith.constant 15 : index
    %330 = memref.load %arg8[%c0_109, %c15] : memref<1x30xf32, #tpu.memory_space<smem>>
    %cst_110 = arith.constant 0.000000e+00 : f32
    %331 = vector.broadcast %cst_110 : f32 to vector<8x15xf32>
    %332 = vector.extract_strided_slice %228 {offsets = [0, 0], sizes = [8, 113], strides = [1, 1]} : vector<8x128xf32> to vector<8x113xf32>
    %333 = tpu.concatenate %331, %332 in 1 : vector<8x15xf32>, vector<8x113xf32> -> vector<8x128xf32>
    %334 = vector.broadcast %330 : f32 to vector<8x128xf32>
    %335 = arith.mulf %334, %333 : vector<8x128xf32>
    %336 = arith.addf %329, %335 : vector<8x128xf32>
    %c0_111 = arith.constant 0 : index
    %c16 = arith.constant 16 : index
    %337 = memref.load %arg8[%c0_111, %c16] : memref<1x30xf32, #tpu.memory_space<smem>>
    %cst_112 = arith.constant 0.000000e+00 : f32
    %338 = vector.broadcast %cst_112 : f32 to vector<8x16xf32>
    %339 = vector.extract_strided_slice %228 {offsets = [0, 0], sizes = [8, 112], strides = [1, 1]} : vector<8x128xf32> to vector<8x112xf32>
    %340 = tpu.concatenate %338, %339 in 1 : vector<8x16xf32>, vector<8x112xf32> -> vector<8x128xf32>
    %341 = vector.broadcast %337 : f32 to vector<8x128xf32>
    %342 = arith.mulf %341, %340 : vector<8x128xf32>
    %343 = arith.addf %336, %342 : vector<8x128xf32>
    %c0_113 = arith.constant 0 : index
    %c17 = arith.constant 17 : index
    %344 = memref.load %arg8[%c0_113, %c17] : memref<1x30xf32, #tpu.memory_space<smem>>
    %cst_114 = arith.constant 0.000000e+00 : f32
    %345 = vector.broadcast %cst_114 : f32 to vector<8x17xf32>
    %346 = vector.extract_strided_slice %228 {offsets = [0, 0], sizes = [8, 111], strides = [1, 1]} : vector<8x128xf32> to vector<8x111xf32>
    %347 = tpu.concatenate %345, %346 in 1 : vector<8x17xf32>, vector<8x111xf32> -> vector<8x128xf32>
    %348 = vector.broadcast %344 : f32 to vector<8x128xf32>
    %349 = arith.mulf %348, %347 : vector<8x128xf32>
    %350 = arith.addf %343, %349 : vector<8x128xf32>
    %c0_115 = arith.constant 0 : index
    %c18 = arith.constant 18 : index
    %351 = memref.load %arg8[%c0_115, %c18] : memref<1x30xf32, #tpu.memory_space<smem>>
    %cst_116 = arith.constant 0.000000e+00 : f32
    %352 = vector.broadcast %cst_116 : f32 to vector<8x18xf32>
    %353 = vector.extract_strided_slice %228 {offsets = [0, 0], sizes = [8, 110], strides = [1, 1]} : vector<8x128xf32> to vector<8x110xf32>
    %354 = tpu.concatenate %352, %353 in 1 : vector<8x18xf32>, vector<8x110xf32> -> vector<8x128xf32>
    %355 = vector.broadcast %351 : f32 to vector<8x128xf32>
    %356 = arith.mulf %355, %354 : vector<8x128xf32>
    %357 = arith.addf %350, %356 : vector<8x128xf32>
    %c0_117 = arith.constant 0 : index
    %c19 = arith.constant 19 : index
    %358 = memref.load %arg8[%c0_117, %c19] : memref<1x30xf32, #tpu.memory_space<smem>>
    %cst_118 = arith.constant 0.000000e+00 : f32
    %359 = vector.broadcast %cst_118 : f32 to vector<8x19xf32>
    %360 = vector.extract_strided_slice %228 {offsets = [0, 0], sizes = [8, 109], strides = [1, 1]} : vector<8x128xf32> to vector<8x109xf32>
    %361 = tpu.concatenate %359, %360 in 1 : vector<8x19xf32>, vector<8x109xf32> -> vector<8x128xf32>
    %362 = vector.broadcast %358 : f32 to vector<8x128xf32>
    %363 = arith.mulf %362, %361 : vector<8x128xf32>
    %364 = arith.addf %357, %363 : vector<8x128xf32>
    %c0_119 = arith.constant 0 : index
    %c20 = arith.constant 20 : index
    %365 = memref.load %arg8[%c0_119, %c20] : memref<1x30xf32, #tpu.memory_space<smem>>
    %cst_120 = arith.constant 0.000000e+00 : f32
    %366 = vector.broadcast %cst_120 : f32 to vector<8x20xf32>
    %367 = vector.extract_strided_slice %228 {offsets = [0, 0], sizes = [8, 108], strides = [1, 1]} : vector<8x128xf32> to vector<8x108xf32>
    %368 = tpu.concatenate %366, %367 in 1 : vector<8x20xf32>, vector<8x108xf32> -> vector<8x128xf32>
    %369 = vector.broadcast %365 : f32 to vector<8x128xf32>
    %370 = arith.mulf %369, %368 : vector<8x128xf32>
    %371 = arith.addf %364, %370 : vector<8x128xf32>
    %c0_121 = arith.constant 0 : index
    %c21 = arith.constant 21 : index
    %372 = memref.load %arg8[%c0_121, %c21] : memref<1x30xf32, #tpu.memory_space<smem>>
    %cst_122 = arith.constant 0.000000e+00 : f32
    %373 = vector.broadcast %cst_122 : f32 to vector<8x21xf32>
    %374 = vector.extract_strided_slice %228 {offsets = [0, 0], sizes = [8, 107], strides = [1, 1]} : vector<8x128xf32> to vector<8x107xf32>
    %375 = tpu.concatenate %373, %374 in 1 : vector<8x21xf32>, vector<8x107xf32> -> vector<8x128xf32>
    %376 = vector.broadcast %372 : f32 to vector<8x128xf32>
    %377 = arith.mulf %376, %375 : vector<8x128xf32>
    %378 = arith.addf %371, %377 : vector<8x128xf32>
    %c0_123 = arith.constant 0 : index
    %c22 = arith.constant 22 : index
    %379 = memref.load %arg8[%c0_123, %c22] : memref<1x30xf32, #tpu.memory_space<smem>>
    %cst_124 = arith.constant 0.000000e+00 : f32
    %380 = vector.broadcast %cst_124 : f32 to vector<8x22xf32>
    %381 = vector.extract_strided_slice %228 {offsets = [0, 0], sizes = [8, 106], strides = [1, 1]} : vector<8x128xf32> to vector<8x106xf32>
    %382 = tpu.concatenate %380, %381 in 1 : vector<8x22xf32>, vector<8x106xf32> -> vector<8x128xf32>
    %383 = vector.broadcast %379 : f32 to vector<8x128xf32>
    %384 = arith.mulf %383, %382 : vector<8x128xf32>
    %385 = arith.addf %378, %384 : vector<8x128xf32>
    %c0_125 = arith.constant 0 : index
    %c23 = arith.constant 23 : index
    %386 = memref.load %arg8[%c0_125, %c23] : memref<1x30xf32, #tpu.memory_space<smem>>
    %cst_126 = arith.constant 0.000000e+00 : f32
    %387 = vector.broadcast %cst_126 : f32 to vector<8x23xf32>
    %388 = vector.extract_strided_slice %228 {offsets = [0, 0], sizes = [8, 105], strides = [1, 1]} : vector<8x128xf32> to vector<8x105xf32>
    %389 = tpu.concatenate %387, %388 in 1 : vector<8x23xf32>, vector<8x105xf32> -> vector<8x128xf32>
    %390 = vector.broadcast %386 : f32 to vector<8x128xf32>
    %391 = arith.mulf %390, %389 : vector<8x128xf32>
    %392 = arith.addf %385, %391 : vector<8x128xf32>
    %c0_127 = arith.constant 0 : index
    %c24 = arith.constant 24 : index
    %393 = memref.load %arg8[%c0_127, %c24] : memref<1x30xf32, #tpu.memory_space<smem>>
    %cst_128 = arith.constant 0.000000e+00 : f32
    %394 = vector.broadcast %cst_128 : f32 to vector<8x24xf32>
    %395 = vector.extract_strided_slice %228 {offsets = [0, 0], sizes = [8, 104], strides = [1, 1]} : vector<8x128xf32> to vector<8x104xf32>
    %396 = tpu.concatenate %394, %395 in 1 : vector<8x24xf32>, vector<8x104xf32> -> vector<8x128xf32>
    %397 = vector.broadcast %393 : f32 to vector<8x128xf32>
    %398 = arith.mulf %397, %396 : vector<8x128xf32>
    %399 = arith.addf %392, %398 : vector<8x128xf32>
    %c0_129 = arith.constant 0 : index
    %c25 = arith.constant 25 : index
    %400 = memref.load %arg8[%c0_129, %c25] : memref<1x30xf32, #tpu.memory_space<smem>>
    %cst_130 = arith.constant 0.000000e+00 : f32
    %401 = vector.broadcast %cst_130 : f32 to vector<8x25xf32>
    %402 = vector.extract_strided_slice %228 {offsets = [0, 0], sizes = [8, 103], strides = [1, 1]} : vector<8x128xf32> to vector<8x103xf32>
    %403 = tpu.concatenate %401, %402 in 1 : vector<8x25xf32>, vector<8x103xf32> -> vector<8x128xf32>
    %404 = vector.broadcast %400 : f32 to vector<8x128xf32>
    %405 = arith.mulf %404, %403 : vector<8x128xf32>
    %406 = arith.addf %399, %405 : vector<8x128xf32>
    %c0_131 = arith.constant 0 : index
    %c26 = arith.constant 26 : index
    %407 = memref.load %arg8[%c0_131, %c26] : memref<1x30xf32, #tpu.memory_space<smem>>
    %cst_132 = arith.constant 0.000000e+00 : f32
    %408 = vector.broadcast %cst_132 : f32 to vector<8x26xf32>
    %409 = vector.extract_strided_slice %228 {offsets = [0, 0], sizes = [8, 102], strides = [1, 1]} : vector<8x128xf32> to vector<8x102xf32>
    %410 = tpu.concatenate %408, %409 in 1 : vector<8x26xf32>, vector<8x102xf32> -> vector<8x128xf32>
    %411 = vector.broadcast %407 : f32 to vector<8x128xf32>
    %412 = arith.mulf %411, %410 : vector<8x128xf32>
    %413 = arith.addf %406, %412 : vector<8x128xf32>
    %c0_133 = arith.constant 0 : index
    %c27 = arith.constant 27 : index
    %414 = memref.load %arg8[%c0_133, %c27] : memref<1x30xf32, #tpu.memory_space<smem>>
    %cst_134 = arith.constant 0.000000e+00 : f32
    %415 = vector.broadcast %cst_134 : f32 to vector<8x27xf32>
    %416 = vector.extract_strided_slice %228 {offsets = [0, 0], sizes = [8, 101], strides = [1, 1]} : vector<8x128xf32> to vector<8x101xf32>
    %417 = tpu.concatenate %415, %416 in 1 : vector<8x27xf32>, vector<8x101xf32> -> vector<8x128xf32>
    %418 = vector.broadcast %414 : f32 to vector<8x128xf32>
    %419 = arith.mulf %418, %417 : vector<8x128xf32>
    %420 = arith.addf %413, %419 : vector<8x128xf32>
    %c0_135 = arith.constant 0 : index
    %c28 = arith.constant 28 : index
    %421 = memref.load %arg8[%c0_135, %c28] : memref<1x30xf32, #tpu.memory_space<smem>>
    %cst_136 = arith.constant 0.000000e+00 : f32
    %422 = vector.broadcast %cst_136 : f32 to vector<8x28xf32>
    %423 = vector.extract_strided_slice %228 {offsets = [0, 0], sizes = [8, 100], strides = [1, 1]} : vector<8x128xf32> to vector<8x100xf32>
    %424 = tpu.concatenate %422, %423 in 1 : vector<8x28xf32>, vector<8x100xf32> -> vector<8x128xf32>
    %425 = vector.broadcast %421 : f32 to vector<8x128xf32>
    %426 = arith.mulf %425, %424 : vector<8x128xf32>
    %427 = arith.addf %420, %426 : vector<8x128xf32>
    %c0_137 = arith.constant 0 : index
    %c29 = arith.constant 29 : index
    %428 = memref.load %arg8[%c0_137, %c29] : memref<1x30xf32, #tpu.memory_space<smem>>
    %cst_138 = arith.constant 0.000000e+00 : f32
    %429 = vector.broadcast %cst_138 : f32 to vector<8x29xf32>
    %430 = vector.extract_strided_slice %228 {offsets = [0, 0], sizes = [8, 99], strides = [1, 1]} : vector<8x128xf32> to vector<8x99xf32>
    %431 = tpu.concatenate %429, %430 in 1 : vector<8x29xf32>, vector<8x99xf32> -> vector<8x128xf32>
    %432 = vector.broadcast %428 : f32 to vector<8x128xf32>
    %433 = arith.mulf %432, %431 : vector<8x128xf32>
    %434 = arith.addf %427, %433 : vector<8x128xf32>
    %c0_139 = arith.constant 0 : index
    %c0_140 = arith.constant 0 : index
    %435 = memref.load %arg9[%c0_139, %c0_140] : memref<1x1xf32, #tpu.memory_space<smem>>
    %436 = vector.broadcast %435 : f32 to vector<8x128xf32>
    %437 = arith.addf %434, %436 : vector<8x128xf32>
    %cst_141 = arith.constant 0.000000e+00 : f32
    %438 = vector.broadcast %cst_141 : f32 to vector<8x128xf32>
    %439 = arith.maximumf %437, %438 : vector<8x128xf32>
    %440 = vector.shape_cast %439 : vector<8x128xf32> to vector<8x1x128xf32>
    %441 = vector.broadcast %224 : vector<8x8x1xf32> to vector<8x8x128xf32>
    %442 = vector.broadcast %440 : vector<8x1x128xf32> to vector<8x8x128xf32>
    %443 = arith.mulf %441, %442 : vector<8x8x128xf32>
    %c0_142 = arith.constant 0 : index
    %c0_143 = arith.constant 0 : index
    %444 = memref.load %arg10[%c0_142, %c0_143] : memref<1x20xf32, #tpu.memory_space<smem>>
    %445 = vector.broadcast %444 : f32 to vector<8x8x128xf32>
    %446 = arith.mulf %445, %443 : vector<8x8x128xf32>
    %c0_144 = arith.constant 0 : index
    %c1_145 = arith.constant 1 : index
    %447 = memref.load %arg10[%c0_144, %c1_145] : memref<1x20xf32, #tpu.memory_space<smem>>
    %cst_146 = arith.constant 0.000000e+00 : f32
    %448 = vector.broadcast %cst_146 : f32 to vector<8x8x1xf32>
    %449 = vector.extract_strided_slice %443 {offsets = [0, 0, 0], sizes = [8, 8, 127], strides = [1, 1, 1]} : vector<8x8x128xf32> to vector<8x8x127xf32>
    %450 = tpu.concatenate %448, %449 in 2 : vector<8x8x1xf32>, vector<8x8x127xf32> -> vector<8x8x128xf32>
    %451 = vector.broadcast %447 : f32 to vector<8x8x128xf32>
    %452 = arith.mulf %451, %450 : vector<8x8x128xf32>
    %453 = arith.addf %446, %452 : vector<8x8x128xf32>
    %c0_147 = arith.constant 0 : index
    %c2_148 = arith.constant 2 : index
    %454 = memref.load %arg10[%c0_147, %c2_148] : memref<1x20xf32, #tpu.memory_space<smem>>
    %cst_149 = arith.constant 0.000000e+00 : f32
    %455 = vector.broadcast %cst_149 : f32 to vector<8x8x2xf32>
    %456 = vector.extract_strided_slice %443 {offsets = [0, 0, 0], sizes = [8, 8, 126], strides = [1, 1, 1]} : vector<8x8x128xf32> to vector<8x8x126xf32>
    %457 = tpu.concatenate %455, %456 in 2 : vector<8x8x2xf32>, vector<8x8x126xf32> -> vector<8x8x128xf32>
    %458 = vector.broadcast %454 : f32 to vector<8x8x128xf32>
    %459 = arith.mulf %458, %457 : vector<8x8x128xf32>
    %460 = arith.addf %453, %459 : vector<8x8x128xf32>
    %c0_150 = arith.constant 0 : index
    %c3_151 = arith.constant 3 : index
    %461 = memref.load %arg10[%c0_150, %c3_151] : memref<1x20xf32, #tpu.memory_space<smem>>
    %cst_152 = arith.constant 0.000000e+00 : f32
    %462 = vector.broadcast %cst_152 : f32 to vector<8x8x3xf32>
    %463 = vector.extract_strided_slice %443 {offsets = [0, 0, 0], sizes = [8, 8, 125], strides = [1, 1, 1]} : vector<8x8x128xf32> to vector<8x8x125xf32>
    %464 = tpu.concatenate %462, %463 in 2 : vector<8x8x3xf32>, vector<8x8x125xf32> -> vector<8x8x128xf32>
    %465 = vector.broadcast %461 : f32 to vector<8x8x128xf32>
    %466 = arith.mulf %465, %464 : vector<8x8x128xf32>
    %467 = arith.addf %460, %466 : vector<8x8x128xf32>
    %c0_153 = arith.constant 0 : index
    %c4_154 = arith.constant 4 : index
    %468 = memref.load %arg10[%c0_153, %c4_154] : memref<1x20xf32, #tpu.memory_space<smem>>
    %cst_155 = arith.constant 0.000000e+00 : f32
    %469 = vector.broadcast %cst_155 : f32 to vector<8x8x4xf32>
    %470 = vector.extract_strided_slice %443 {offsets = [0, 0, 0], sizes = [8, 8, 124], strides = [1, 1, 1]} : vector<8x8x128xf32> to vector<8x8x124xf32>
    %471 = tpu.concatenate %469, %470 in 2 : vector<8x8x4xf32>, vector<8x8x124xf32> -> vector<8x8x128xf32>
    %472 = vector.broadcast %468 : f32 to vector<8x8x128xf32>
    %473 = arith.mulf %472, %471 : vector<8x8x128xf32>
    %474 = arith.addf %467, %473 : vector<8x8x128xf32>
    %c0_156 = arith.constant 0 : index
    %c5_157 = arith.constant 5 : index
    %475 = memref.load %arg10[%c0_156, %c5_157] : memref<1x20xf32, #tpu.memory_space<smem>>
    %cst_158 = arith.constant 0.000000e+00 : f32
    %476 = vector.broadcast %cst_158 : f32 to vector<8x8x5xf32>
    %477 = vector.extract_strided_slice %443 {offsets = [0, 0, 0], sizes = [8, 8, 123], strides = [1, 1, 1]} : vector<8x8x128xf32> to vector<8x8x123xf32>
    %478 = tpu.concatenate %476, %477 in 2 : vector<8x8x5xf32>, vector<8x8x123xf32> -> vector<8x8x128xf32>
    %479 = vector.broadcast %475 : f32 to vector<8x8x128xf32>
    %480 = arith.mulf %479, %478 : vector<8x8x128xf32>
    %481 = arith.addf %474, %480 : vector<8x8x128xf32>
    %c0_159 = arith.constant 0 : index
    %c6_160 = arith.constant 6 : index
    %482 = memref.load %arg10[%c0_159, %c6_160] : memref<1x20xf32, #tpu.memory_space<smem>>
    %cst_161 = arith.constant 0.000000e+00 : f32
    %483 = vector.broadcast %cst_161 : f32 to vector<8x8x6xf32>
    %484 = vector.extract_strided_slice %443 {offsets = [0, 0, 0], sizes = [8, 8, 122], strides = [1, 1, 1]} : vector<8x8x128xf32> to vector<8x8x122xf32>
    %485 = tpu.concatenate %483, %484 in 2 : vector<8x8x6xf32>, vector<8x8x122xf32> -> vector<8x8x128xf32>
    %486 = vector.broadcast %482 : f32 to vector<8x8x128xf32>
    %487 = arith.mulf %486, %485 : vector<8x8x128xf32>
    %488 = arith.addf %481, %487 : vector<8x8x128xf32>
    %c0_162 = arith.constant 0 : index
    %c7_163 = arith.constant 7 : index
    %489 = memref.load %arg10[%c0_162, %c7_163] : memref<1x20xf32, #tpu.memory_space<smem>>
    %cst_164 = arith.constant 0.000000e+00 : f32
    %490 = vector.broadcast %cst_164 : f32 to vector<8x8x7xf32>
    %491 = vector.extract_strided_slice %443 {offsets = [0, 0, 0], sizes = [8, 8, 121], strides = [1, 1, 1]} : vector<8x8x128xf32> to vector<8x8x121xf32>
    %492 = tpu.concatenate %490, %491 in 2 : vector<8x8x7xf32>, vector<8x8x121xf32> -> vector<8x8x128xf32>
    %493 = vector.broadcast %489 : f32 to vector<8x8x128xf32>
    %494 = arith.mulf %493, %492 : vector<8x8x128xf32>
    %495 = arith.addf %488, %494 : vector<8x8x128xf32>
    %c0_165 = arith.constant 0 : index
    %c8_166 = arith.constant 8 : index
    %496 = memref.load %arg10[%c0_165, %c8_166] : memref<1x20xf32, #tpu.memory_space<smem>>
    %cst_167 = arith.constant 0.000000e+00 : f32
    %497 = vector.broadcast %cst_167 : f32 to vector<8x8x8xf32>
    %498 = vector.extract_strided_slice %443 {offsets = [0, 0, 0], sizes = [8, 8, 120], strides = [1, 1, 1]} : vector<8x8x128xf32> to vector<8x8x120xf32>
    %499 = tpu.concatenate %497, %498 in 2 : vector<8x8x8xf32>, vector<8x8x120xf32> -> vector<8x8x128xf32>
    %500 = vector.broadcast %496 : f32 to vector<8x8x128xf32>
    %501 = arith.mulf %500, %499 : vector<8x8x128xf32>
    %502 = arith.addf %495, %501 : vector<8x8x128xf32>
    %c0_168 = arith.constant 0 : index
    %c9_169 = arith.constant 9 : index
    %503 = memref.load %arg10[%c0_168, %c9_169] : memref<1x20xf32, #tpu.memory_space<smem>>
    %cst_170 = arith.constant 0.000000e+00 : f32
    %504 = vector.broadcast %cst_170 : f32 to vector<8x8x9xf32>
    %505 = vector.extract_strided_slice %443 {offsets = [0, 0, 0], sizes = [8, 8, 119], strides = [1, 1, 1]} : vector<8x8x128xf32> to vector<8x8x119xf32>
    %506 = tpu.concatenate %504, %505 in 2 : vector<8x8x9xf32>, vector<8x8x119xf32> -> vector<8x8x128xf32>
    %507 = vector.broadcast %503 : f32 to vector<8x8x128xf32>
    %508 = arith.mulf %507, %506 : vector<8x8x128xf32>
    %509 = arith.addf %502, %508 : vector<8x8x128xf32>
    %c0_171 = arith.constant 0 : index
    %c10_172 = arith.constant 10 : index
    %510 = memref.load %arg10[%c0_171, %c10_172] : memref<1x20xf32, #tpu.memory_space<smem>>
    %cst_173 = arith.constant 0.000000e+00 : f32
    %511 = vector.broadcast %cst_173 : f32 to vector<8x8x10xf32>
    %512 = vector.extract_strided_slice %443 {offsets = [0, 0, 0], sizes = [8, 8, 118], strides = [1, 1, 1]} : vector<8x8x128xf32> to vector<8x8x118xf32>
    %513 = tpu.concatenate %511, %512 in 2 : vector<8x8x10xf32>, vector<8x8x118xf32> -> vector<8x8x128xf32>
    %514 = vector.broadcast %510 : f32 to vector<8x8x128xf32>
    %515 = arith.mulf %514, %513 : vector<8x8x128xf32>
    %516 = arith.addf %509, %515 : vector<8x8x128xf32>
    %c0_174 = arith.constant 0 : index
    %c11_175 = arith.constant 11 : index
    %517 = memref.load %arg10[%c0_174, %c11_175] : memref<1x20xf32, #tpu.memory_space<smem>>
    %cst_176 = arith.constant 0.000000e+00 : f32
    %518 = vector.broadcast %cst_176 : f32 to vector<8x8x11xf32>
    %519 = vector.extract_strided_slice %443 {offsets = [0, 0, 0], sizes = [8, 8, 117], strides = [1, 1, 1]} : vector<8x8x128xf32> to vector<8x8x117xf32>
    %520 = tpu.concatenate %518, %519 in 2 : vector<8x8x11xf32>, vector<8x8x117xf32> -> vector<8x8x128xf32>
    %521 = vector.broadcast %517 : f32 to vector<8x8x128xf32>
    %522 = arith.mulf %521, %520 : vector<8x8x128xf32>
    %523 = arith.addf %516, %522 : vector<8x8x128xf32>
    %c0_177 = arith.constant 0 : index
    %c12_178 = arith.constant 12 : index
    %524 = memref.load %arg10[%c0_177, %c12_178] : memref<1x20xf32, #tpu.memory_space<smem>>
    %cst_179 = arith.constant 0.000000e+00 : f32
    %525 = vector.broadcast %cst_179 : f32 to vector<8x8x12xf32>
    %526 = vector.extract_strided_slice %443 {offsets = [0, 0, 0], sizes = [8, 8, 116], strides = [1, 1, 1]} : vector<8x8x128xf32> to vector<8x8x116xf32>
    %527 = tpu.concatenate %525, %526 in 2 : vector<8x8x12xf32>, vector<8x8x116xf32> -> vector<8x8x128xf32>
    %528 = vector.broadcast %524 : f32 to vector<8x8x128xf32>
    %529 = arith.mulf %528, %527 : vector<8x8x128xf32>
    %530 = arith.addf %523, %529 : vector<8x8x128xf32>
    %c0_180 = arith.constant 0 : index
    %c13_181 = arith.constant 13 : index
    %531 = memref.load %arg10[%c0_180, %c13_181] : memref<1x20xf32, #tpu.memory_space<smem>>
    %cst_182 = arith.constant 0.000000e+00 : f32
    %532 = vector.broadcast %cst_182 : f32 to vector<8x8x13xf32>
    %533 = vector.extract_strided_slice %443 {offsets = [0, 0, 0], sizes = [8, 8, 115], strides = [1, 1, 1]} : vector<8x8x128xf32> to vector<8x8x115xf32>
    %534 = tpu.concatenate %532, %533 in 2 : vector<8x8x13xf32>, vector<8x8x115xf32> -> vector<8x8x128xf32>
    %535 = vector.broadcast %531 : f32 to vector<8x8x128xf32>
    %536 = arith.mulf %535, %534 : vector<8x8x128xf32>
    %537 = arith.addf %530, %536 : vector<8x8x128xf32>
    %c0_183 = arith.constant 0 : index
    %c14_184 = arith.constant 14 : index
    %538 = memref.load %arg10[%c0_183, %c14_184] : memref<1x20xf32, #tpu.memory_space<smem>>
    %cst_185 = arith.constant 0.000000e+00 : f32
    %539 = vector.broadcast %cst_185 : f32 to vector<8x8x14xf32>
    %540 = vector.extract_strided_slice %443 {offsets = [0, 0, 0], sizes = [8, 8, 114], strides = [1, 1, 1]} : vector<8x8x128xf32> to vector<8x8x114xf32>
    %541 = tpu.concatenate %539, %540 in 2 : vector<8x8x14xf32>, vector<8x8x114xf32> -> vector<8x8x128xf32>
    %542 = vector.broadcast %538 : f32 to vector<8x8x128xf32>
    %543 = arith.mulf %542, %541 : vector<8x8x128xf32>
    %544 = arith.addf %537, %543 : vector<8x8x128xf32>
    %c0_186 = arith.constant 0 : index
    %c15_187 = arith.constant 15 : index
    %545 = memref.load %arg10[%c0_186, %c15_187] : memref<1x20xf32, #tpu.memory_space<smem>>
    %cst_188 = arith.constant 0.000000e+00 : f32
    %546 = vector.broadcast %cst_188 : f32 to vector<8x8x15xf32>
    %547 = vector.extract_strided_slice %443 {offsets = [0, 0, 0], sizes = [8, 8, 113], strides = [1, 1, 1]} : vector<8x8x128xf32> to vector<8x8x113xf32>
    %548 = tpu.concatenate %546, %547 in 2 : vector<8x8x15xf32>, vector<8x8x113xf32> -> vector<8x8x128xf32>
    %549 = vector.broadcast %545 : f32 to vector<8x8x128xf32>
    %550 = arith.mulf %549, %548 : vector<8x8x128xf32>
    %551 = arith.addf %544, %550 : vector<8x8x128xf32>
    %c0_189 = arith.constant 0 : index
    %c16_190 = arith.constant 16 : index
    %552 = memref.load %arg10[%c0_189, %c16_190] : memref<1x20xf32, #tpu.memory_space<smem>>
    %cst_191 = arith.constant 0.000000e+00 : f32
    %553 = vector.broadcast %cst_191 : f32 to vector<8x8x16xf32>
    %554 = vector.extract_strided_slice %443 {offsets = [0, 0, 0], sizes = [8, 8, 112], strides = [1, 1, 1]} : vector<8x8x128xf32> to vector<8x8x112xf32>
    %555 = tpu.concatenate %553, %554 in 2 : vector<8x8x16xf32>, vector<8x8x112xf32> -> vector<8x8x128xf32>
    %556 = vector.broadcast %552 : f32 to vector<8x8x128xf32>
    %557 = arith.mulf %556, %555 : vector<8x8x128xf32>
    %558 = arith.addf %551, %557 : vector<8x8x128xf32>
    %c0_192 = arith.constant 0 : index
    %c17_193 = arith.constant 17 : index
    %559 = memref.load %arg10[%c0_192, %c17_193] : memref<1x20xf32, #tpu.memory_space<smem>>
    %cst_194 = arith.constant 0.000000e+00 : f32
    %560 = vector.broadcast %cst_194 : f32 to vector<8x8x17xf32>
    %561 = vector.extract_strided_slice %443 {offsets = [0, 0, 0], sizes = [8, 8, 111], strides = [1, 1, 1]} : vector<8x8x128xf32> to vector<8x8x111xf32>
    %562 = tpu.concatenate %560, %561 in 2 : vector<8x8x17xf32>, vector<8x8x111xf32> -> vector<8x8x128xf32>
    %563 = vector.broadcast %559 : f32 to vector<8x8x128xf32>
    %564 = arith.mulf %563, %562 : vector<8x8x128xf32>
    %565 = arith.addf %558, %564 : vector<8x8x128xf32>
    %c0_195 = arith.constant 0 : index
    %c18_196 = arith.constant 18 : index
    %566 = memref.load %arg10[%c0_195, %c18_196] : memref<1x20xf32, #tpu.memory_space<smem>>
    %cst_197 = arith.constant 0.000000e+00 : f32
    %567 = vector.broadcast %cst_197 : f32 to vector<8x8x18xf32>
    %568 = vector.extract_strided_slice %443 {offsets = [0, 0, 0], sizes = [8, 8, 110], strides = [1, 1, 1]} : vector<8x8x128xf32> to vector<8x8x110xf32>
    %569 = tpu.concatenate %567, %568 in 2 : vector<8x8x18xf32>, vector<8x8x110xf32> -> vector<8x8x128xf32>
    %570 = vector.broadcast %566 : f32 to vector<8x8x128xf32>
    %571 = arith.mulf %570, %569 : vector<8x8x128xf32>
    %572 = arith.addf %565, %571 : vector<8x8x128xf32>
    %c0_198 = arith.constant 0 : index
    %c19_199 = arith.constant 19 : index
    %573 = memref.load %arg10[%c0_198, %c19_199] : memref<1x20xf32, #tpu.memory_space<smem>>
    %cst_200 = arith.constant 0.000000e+00 : f32
    %574 = vector.broadcast %cst_200 : f32 to vector<8x8x19xf32>
    %575 = vector.extract_strided_slice %443 {offsets = [0, 0, 0], sizes = [8, 8, 109], strides = [1, 1, 1]} : vector<8x8x128xf32> to vector<8x8x109xf32>
    %576 = tpu.concatenate %574, %575 in 2 : vector<8x8x19xf32>, vector<8x8x109xf32> -> vector<8x8x128xf32>
    %577 = vector.broadcast %573 : f32 to vector<8x8x128xf32>
    %578 = arith.mulf %577, %576 : vector<8x8x128xf32>
    %579 = arith.addf %572, %578 : vector<8x8x128xf32>
    %c0_201 = arith.constant 0 : index
    %c0_202 = arith.constant 0 : index
    %580 = memref.load %arg11[%c0_201, %c0_202] : memref<1x1xf32, #tpu.memory_space<smem>>
    %581 = vector.broadcast %580 : f32 to vector<8x8x128xf32>
    %582 = arith.addf %579, %581 : vector<8x8x128xf32>
    %cst_203 = arith.constant 0.000000e+00 : f32
    %583 = vector.broadcast %cst_203 : f32 to vector<8x8x128xf32>
    %584 = arith.maximumf %582, %583 : vector<8x8x128xf32>
    %585 = arith.subf %207, %584 : vector<8x8x128xf32>
    %cst_204 = arith.constant 0.000000e+00 : f32
    %586 = vector.broadcast %cst_204 : f32 to vector<8x8x128xf32>
    %587 = arith.maximumf %585, %586 : vector<8x8x128xf32>
    %588 = arith.addf %443, %587 : vector<8x8x128xf32>
    %c0_205 = arith.constant 0 : index
    %c0_206 = arith.constant 0 : index
    %c0_207 = arith.constant 0 : index
    %589 = vector.load %arg12[%c0_205, %c0_206, %c0_207] : memref<8x8x128xf32, #tpu.memory_space<vmem>>, vector<8x8x128xf32>
    tpu.vector_store %arg12[%c0_205, %c0_206, %c0_207], %588 {strides = array<i32>} : memref<8x8x128xf32, #tpu.memory_space<vmem>>, vector<8x8x128xf32>,
    return
  }
  func.func @transform_0(%arg0: i32) -> (i32, i32, i32) {
    %c0_i32 = arith.constant 0 : i32
    %c0_i32_0 = arith.constant 0 : i32
    %c0_i32_1 = arith.constant 0 : i32
    return %arg0, %c0_i32, %c0_i32_0 : i32, i32, i32
  }
  func.func @transform_1(%arg0: i32) -> (i32, i32, i32) {
    %c0_i32 = arith.constant 0 : i32
    %c0_i32_0 = arith.constant 0 : i32
    %c0_i32_1 = arith.constant 0 : i32
    return %arg0, %c0_i32, %c0_i32_0 : i32, i32, i32
  }
  func.func @transform_2(%arg0: i32) -> (i32, i32, i32) {
    %c0_i32 = arith.constant 0 : i32
    %c0_i32_0 = arith.constant 0 : i32
    %c0_i32_1 = arith.constant 0 : i32
    return %arg0, %c0_i32, %c0_i32_0 : i32, i32, i32
  }
  func.func @transform_3(%arg0: i32) -> (i32, i32) {
    %c0_i32 = arith.constant 0 : i32
    %c0_i32_0 = arith.constant 0 : i32
    %c0_i32_1 = arith.constant 0 : i32
    return %c0_i32, %c0_i32_0 : i32, i32
  }
  func.func @transform_4(%arg0: i32) -> (i32, i32) {
    %c0_i32 = arith.constant 0 : i32
    %c0_i32_0 = arith.constant 0 : i32
    %c0_i32_1 = arith.constant 0 : i32
    return %c0_i32, %c0_i32_0 : i32, i32
  }
  func.func @transform_5(%arg0: i32) -> (i32, i32) {
    %c0_i32 = arith.constant 0 : i32
    %c0_i32_0 = arith.constant 0 : i32
    %c0_i32_1 = arith.constant 0 : i32
    return %c0_i32, %c0_i32_0 : i32, i32
  }
  func.func @transform_6(%arg0: i32) -> (i32, i32) {
    %c0_i32 = arith.constant 0 : i32
    %c0_i32_0 = arith.constant 0 : i32
    %c0_i32_1 = arith.constant 0 : i32
    return %c0_i32, %c0_i32_0 : i32, i32
  }
  func.func @transform_7(%arg0: i32) -> (i32, i32) {
    %c0_i32 = arith.constant 0 : i32
    %c0_i32_0 = arith.constant 0 : i32
    %c0_i32_1 = arith.constant 0 : i32
    return %c0_i32, %c0_i32_0 : i32, i32
  }
  func.func @transform_8(%arg0: i32) -> (i32, i32) {
    %c0_i32 = arith.constant 0 : i32
    %c0_i32_0 = arith.constant 0 : i32
    %c0_i32_1 = arith.constant 0 : i32
    return %c0_i32, %c0_i32_0 : i32, i32
  }
  func.func @transform_9(%arg0: i32) -> (i32, i32) {
    %c0_i32 = arith.constant 0 : i32
    %c0_i32_0 = arith.constant 0 : i32
    %c0_i32_1 = arith.constant 0 : i32
    return %c0_i32, %c0_i32_0 : i32, i32
  }
  func.func @transform_10(%arg0: i32) -> (i32, i32) {
    %c0_i32 = arith.constant 0 : i32
    %c0_i32_0 = arith.constant 0 : i32
    %c0_i32_1 = arith.constant 0 : i32
    return %c0_i32, %c0_i32_0 : i32, i32
  }
  func.func @transform_11(%arg0: i32) -> (i32, i32, i32) {
    %c0_i32 = arith.constant 0 : i32
    %c0_i32_0 = arith.constant 0 : i32
    %c0_i32_1 = arith.constant 0 : i32
    return %arg0, %c0_i32, %c0_i32_0 : i32, i32, i32
  }
}

</mosaic_0001>

<llo_original>
// kernel: tpu_custom_call.1
$region0: #{tpu_custom_call.1}
  #allocation0 [shape = 'u32[]', space=smem, size = 0x4, offset = 0x4, fixed_abs, tag = 'smem constant byte address 0x4 - core index']
  #allocation1 [shape = 'u32[144,128]{1,0:T(1,128)}', space=vmem, size = 0x12000, scoped, tag = 'internal scratch']
  #allocation2 [shape = 'f32[1,1]{1,0:T(1,128)S(6)}', space=smem, size = 0x200, scoped, tag = 'scoped memory for tpu_custom_call.1']
  #allocation3 [shape = 'f32[1,1]{1,0:T(1,128)S(6)}', space=smem, size = 0x200, scoped, tag = 'scoped memory for tpu_custom_call.1']
  %s0 = inlined_call_operand.vmem [shape: f32[16,4,128], index: 0, kind: input, shape index: {}]
  %s1 = inlined_call_operand.vmem [shape: f32[2,8,128], index: 1, kind: input, shape index: {}]
  %s2 = inlined_call_operand.vmem [shape: f32[2,8,1], index: 2, kind: input, shape index: {}]
  %s3 = inlined_call_operand.vmem [shape: f32[40,4], index: 3, kind: input, shape index: {}]
  %s4 = inlined_call_operand.vmem [shape: f32[8,1], index: 4, kind: input, shape index: {}]
  %s5 = inlined_call_operand.vmem [shape: f32[8,1], index: 5, kind: input, shape index: {}]
  %s6 = inlined_call_operand.vmem [shape: f32[8,1], index: 6, kind: input, shape index: {}]
  %s7 = inlined_call_operand.vmem [shape: f32[1,30], index: 7, kind: input, shape index: {}]
  %s8 = inlined_call_operand.<no memory space> [shape: f32[1,1], index: 8, kind: input, shape index: {}]
  %s9 = inlined_call_operand.vmem [shape: f32[1,20], index: 9, kind: input, shape index: {}]
  %s10 = inlined_call_operand.<no memory space> [shape: f32[1,1], index: 10, kind: input, shape index: {}]
  %s11 = inlined_call_operand.hbm [shape: f32[16,8,128], index: 11, kind: output, shape index: {}]
  %s12 = sld [smem:[#allocation0]]
  $region85: #{tpu_custom_call.1} parent=0
    _
  %s14 = ssub.s32 1, %s12
  %s15 = scalar_select 0, %s14, %s12
  %16 = sst [smem:[#allocation2]] %s8
  %17 = sst [smem:[#allocation3]] %s10
  $region1: #{tpu_custom_call.1} parent=0
    #allocation4 [shape = 'u8[512]{0}', space=smem, size = 0x200, scoped, tag = 'input window, operand 7, single buffered']
    #allocation5 [shape = 's32[2]{0}', space=sflag, size = 0x8, scoped, tag = 'scoped memory for tpu_custom_call.1']
    #allocation6 [shape = 's32[2]{0}', space=sflag, size = 0x8, scoped, tag = 'scoped memory for tpu_custom_call.1']
    #allocation7 [shape = 'u8[512]{0}', space=smem, size = 0x200, scoped, tag = 'input window, operand 9, single buffered']
    #allocation8 [shape = 's32[1]{0}', space=sflag, size = 0x4, scoped, tag = 'scoped memory for tpu_custom_call.1']
    #allocation9 [shape = 'u8[65536]{0}', space=vmem, size = 0x10000, scoped, tag = 'output window, operand 0']
    %18 = vsyncpa [#allocation6], 0
    %19 = vsyncpa [#allocation8], 0
    %20 = vsyncpa [#allocation5], 0
    %s21 = scalar_lea.sflag [#allocation5], 1
    %22 = vsyncpa %s21, 0
    loop: start=0, step=1, limit=4
    $region2: #{tpu_custom_call.1} parent=1 // loop_pre_header
      _
    $region3: #{tpu_custom_call.1} parent=1 // loop_header
      %s24 = sphi 0, %s28
      %p25 = scmp.ge.s32.totalorder %s24, 4
      %s34 = sphi 0, %s36
      %s37 = sphi 0, %s34
      %s38 = sphi 0, %s37
      %s54 = sphi 0, %s38
      %s60 = sphi 0, %s62
      %s63 = sphi 0, %s60
      %s64 = sphi 0, %s63
      %s80 = sphi 0, %s64
      %s86 = sphi 0, %s88
      %s89 = sphi 0, %s86
      %s90 = sphi 0, %s89
      %s106 = sphi 0, %s90
      %s110 = sphi 0, %s110
      %s112 = sphi 0, %s110
      %s113 = sphi 0, %s112
      %s127 = sphi 0, %s113
      %s131 = sphi 0, %s131
      %s133 = sphi 0, %s131
      %s134 = sphi 0, %s133
      %s148 = sphi 0, %s134
      %s152 = sphi 0, %s152
      %s154 = sphi 0, %s152
      %s155 = sphi 0, %s154
      %s169 = sphi 0, %s155
      %s173 = sphi 0, %s173
      %s175 = sphi 0, %s173
      %s176 = sphi 0, %s175
      %s190 = sphi 0, %s176
      %s194 = sphi 0, %s194
      %s196 = sphi 0, %s194
      %s197 = sphi 0, %s196
      %s211 = sphi 0, %s197
      %s215 = sphi 0, %s215
      %s217 = sphi 0, %s215
      %s218 = sphi 0, %s217
      %s232 = sphi 0, %s218
      %s236 = sphi 0, %s236
      %s238 = sphi 0, %s236
      %s239 = sphi 0, %s238
      %s253 = sphi 0, %s239
      %s257 = sphi 0, %s257
      %s259 = sphi 0, %s257
      %s260 = sphi 0, %s259
      %s274 = sphi 0, %s260
      %s280 = sphi 0, %s282
      %s283 = sphi 0, %s280
      %s284 = sphi 0, %s283
      %s300 = sphi 0, %s284
    $region4: #{tpu_custom_call.1} parent=1 // loop_header_branch
      %27 = sbr.rel (%p25) target = $region8
    $region5: #{tpu_custom_call.1} parent=1 // loop_body
      %s29 = ssub.s32 %s24, 1
      %s30 = ssub.s32 %s24, 2
      %s31 = sadd.s32 %s24, 1
      %s32 = ssub.s32 %s24, %s31
      %p33 = scmp.eq.s32.totalorder %s32, 0
      %s35 = sadd.s32 %s34, 1
      %s36 = scalar_select %p33, %s34, %s35
      %p39 = pneg %p33
      %p40 = scmp.eq.s32.totalorder %s24, 1
      %p41 = por %p39, %p40
      %p42 = scmp.ne.s32.totalorder %s34, %s37
      %p43 = scmp.eq.s32.totalorder %s24, 0
      %p44 = por %p42, %p43
      %p45 = scmp.ne.s32.totalorder %s34, %s37
      %p46 = scmp.eq.s32.totalorder %s29, 1
      %p47 = por %p45, %p46
      %p48 = scmp.ne.s32.totalorder %s37, %s38
      %p49 = scmp.eq.s32.totalorder %s29, 0
      %p50 = por %p48, %p49
      %p51 = scmp.ne.s32.totalorder %s37, %s38
      %p52 = scmp.eq.s32.totalorder %s30, 1
      %p53 = por %p51, %p52
      %p55 = scmp.ne.s32.totalorder %s38, %s54
      %p56 = scmp.eq.s32.totalorder %s30, 0
      %p57 = por %p55, %p56
      %s58 = ssub.s32 %s24, %s31
      %p59 = scmp.eq.s32.totalorder %s58, 0
      %s61 = sadd.s32 %s60, 1
      %s62 = scalar_select %p59, %s60, %s61
      %p65 = pneg %p59
      %p66 = scmp.eq.s32.totalorder %s24, 1
      %p67 = por %p65, %p66
      %p68 = scmp.ne.s32.totalorder %s60, %s63
      %p69 = scmp.eq.s32.totalorder %s24, 0
      %p70 = por %p68, %p69
      %p71 = scmp.ne.s32.totalorder %s60, %s63
      %p72 = scmp.eq.s32.totalorder %s29, 1
      %p73 = por %p71, %p72
      %p74 = scmp.ne.s32.totalorder %s63, %s64
      %p75 = scmp.eq.s32.totalorder %s29, 0
      %p76 = por %p74, %p75
      %p77 = scmp.ne.s32.totalorder %s63, %s64
      %p78 = scmp.eq.s32.totalorder %s30, 1
      %p79 = por %p77, %p78
      %p81 = scmp.ne.s32.totalorder %s64, %s80
      %p82 = scmp.eq.s32.totalorder %s30, 0
      %p83 = por %p81, %p82
      %s84 = ssub.s32 %s24, %s31
      %p85 = scmp.eq.s32.totalorder %s84, 0
      %s87 = sadd.s32 %s86, 1
      %s88 = scalar_select %p85, %s86, %s87
      %p91 = pneg %p85
      %p92 = scmp.eq.s32.totalorder %s24, 1
      %p93 = por %p91, %p92
      %p94 = scmp.ne.s32.totalorder %s86, %s89
      %p95 = scmp.eq.s32.totalorder %s24, 0
      %p96 = por %p94, %p95
      %p97 = scmp.ne.s32.totalorder %s86, %s89
      %p98 = scmp.eq.s32.totalorder %s29, 1
      %p99 = por %p97, %p98
      %p100 = scmp.ne.s32.totalorder %s89, %s90
      %p101 = scmp.eq.s32.totalorder %s29, 0
      %p102 = por %p100, %p101
      %p103 = scmp.ne.s32.totalorder %s89, %s90
      %p104 = scmp.eq.s32.totalorder %s30, 1
      %p105 = por %p103, %p104
      %p107 = scmp.ne.s32.totalorder %s90, %s106
      %p108 = scmp.eq.s32.totalorder %s30, 0
      %p109 = por %p107, %p108
      %s111 = sadd.s32 %s110, 1
      %p114 = scmp.eq.s32.totalorder %s24, 1
      %p115 = scmp.ne.s32.totalorder %s110, %s112
      %p116 = scmp.eq.s32.totalorder %s24, 0
      %p117 = por %p115, %p116
      %p118 = scmp.ne.s32.totalorder %s110, %s112
      %p119 = scmp.eq.s32.totalorder %s29, 1
      %p120 = por %p118, %p119
      %p121 = scmp.ne.s32.totalorder %s112, %s113
      %p122 = scmp.eq.s32.totalorder %s29, 0
      %p123 = por %p121, %p122
      %p124 = scmp.ne.s32.totalorder %s112, %s113
      %p125 = scmp.eq.s32.totalorder %s30, 1
      %p126 = por %p124, %p125
      %p128 = scmp.ne.s32.totalorder %s113, %s127
      %p129 = scmp.eq.s32.totalorder %s30, 0
      %p130 = por %p128, %p129
      %s132 = sadd.s32 %s131, 1
      %p135 = scmp.eq.s32.totalorder %s24, 1
      %p136 = scmp.ne.s32.totalorder %s131, %s133
      %p137 = scmp.eq.s32.totalorder %s24, 0
      %p138 = por %p136, %p137
      %p139 = scmp.ne.s32.totalorder %s131, %s133
      %p140 = scmp.eq.s32.totalorder %s29, 1
      %p141 = por %p139, %p140
      %p142 = scmp.ne.s32.totalorder %s133, %s134
      %p143 = scmp.eq.s32.totalorder %s29, 0
      %p144 = por %p142, %p143
      %p145 = scmp.ne.s32.totalorder %s133, %s134
      %p146 = scmp.eq.s32.totalorder %s30, 1
      %p147 = por %p145, %p146
      %p149 = scmp.ne.s32.totalorder %s134, %s148
      %p150 = scmp.eq.s32.totalorder %s30, 0
      %p151 = por %p149, %p150
      %s153 = sadd.s32 %s152, 1
      %p156 = scmp.eq.s32.totalorder %s24, 1
      %p157 = scmp.ne.s32.totalorder %s152, %s154
      %p158 = scmp.eq.s32.totalorder %s24, 0
      %p159 = por %p157, %p158
      %p160 = scmp.ne.s32.totalorder %s152, %s154
      %p161 = scmp.eq.s32.totalorder %s29, 1
      %p162 = por %p160, %p161
      %p163 = scmp.ne.s32.totalorder %s154, %s155
      %p164 = scmp.eq.s32.totalorder %s29, 0
      %p165 = por %p163, %p164
      %p166 = scmp.ne.s32.totalorder %s154, %s155
      %p167 = scmp.eq.s32.totalorder %s30, 1
      %p168 = por %p166, %p167
      %p170 = scmp.ne.s32.totalorder %s155, %s169
      %p171 = scmp.eq.s32.totalorder %s30, 0
      %p172 = por %p170, %p171
      %s174 = sadd.s32 %s173, 1
      %p177 = scmp.eq.s32.totalorder %s24, 1
      %p178 = scmp.ne.s32.totalorder %s173, %s175
      %p179 = scmp.eq.s32.totalorder %s24, 0
      %p180 = por %p178, %p179
      %p181 = scmp.ne.s32.totalorder %s173, %s175
      %p182 = scmp.eq.s32.totalorder %s29, 1
      %p183 = por %p181, %p182
      %p184 = scmp.ne.s32.totalorder %s175, %s176
      %p185 = scmp.eq.s32.totalorder %s29, 0
      %p186 = por %p184, %p185
      %p187 = scmp.ne.s32.totalorder %s175, %s176
      %p188 = scmp.eq.s32.totalorder %s30, 1
      %p189 = por %p187, %p188
      %p191 = scmp.ne.s32.totalorder %s176, %s190
      %p192 = scmp.eq.s32.totalorder %s30, 0
      %p193 = por %p191, %p192
      %s195 = sadd.s32 %s194, 1
      %p198 = scmp.eq.s32.totalorder %s24, 1
      %p199 = scmp.ne.s32.totalorder %s194, %s196
      %p200 = scmp.eq.s32.totalorder %s24, 0
      %p201 = por %p199, %p200
      %p202 = scmp.ne.s32.totalorder %s194, %s196
      %p203 = scmp.eq.s32.totalorder %s29, 1
      %p204 = por %p202, %p203
      %p205 = scmp.ne.s32.totalorder %s196, %s197
      %p206 = scmp.eq.s32.totalorder %s29, 0
      %p207 = por %p205, %p206
      %p208 = scmp.ne.s32.totalorder %s196, %s197
      %p209 = scmp.eq.s32.totalorder %s30, 1
      %p210 = por %p208, %p209
      %p212 = scmp.ne.s32.totalorder %s197, %s211
      %p213 = scmp.eq.s32.totalorder %s30, 0
      %p214 = por %p212, %p213
      %s216 = sadd.s32 %s215, 1
      %p219 = scmp.eq.s32.totalorder %s24, 1
      %p220 = scmp.ne.s32.totalorder %s215, %s217
      %p221 = scmp.eq.s32.totalorder %s24, 0
      %p222 = por %p220, %p221
      %p223 = scmp.ne.s32.totalorder %s215, %s217
      %p224 = scmp.eq.s32.totalorder %s29, 1
      %p225 = por %p223, %p224
      %p226 = scmp.ne.s32.totalorder %s217, %s218
      %p227 = scmp.eq.s32.totalorder %s29, 0
      %p228 = por %p226, %p227
      %p229 = scmp.ne.s32.totalorder %s217, %s218
      %p230 = scmp.eq.s32.totalorder %s30, 1
      %p231 = por %p229, %p230
      %p233 = scmp.ne.s32.totalorder %s218, %s232
      %p234 = scmp.eq.s32.totalorder %s30, 0
      %p235 = por %p233, %p234
      %s237 = sadd.s32 %s236, 1
      %p240 = scmp.eq.s32.totalorder %s24, 1
      %p241 = scmp.ne.s32.totalorder %s236, %s238
      %p242 = scmp.eq.s32.totalorder %s24, 0
      %p243 = por %p241, %p242
      %p244 = scmp.ne.s32.totalorder %s236, %s238
      %p245 = scmp.eq.s32.totalorder %s29, 1
      %p246 = por %p244, %p245
      %p247 = scmp.ne.s32.totalorder %s238, %s239
      %p248 = scmp.eq.s32.totalorder %s29, 0
      %p249 = por %p247, %p248
      %p250 = scmp.ne.s32.totalorder %s238, %s239
      %p251 = scmp.eq.s32.totalorder %s30, 1
      %p252 = por %p250, %p251
      %p254 = scmp.ne.s32.totalorder %s239, %s253
      %p255 = scmp.eq.s32.totalorder %s30, 0
      %p256 = por %p254, %p255
      %s258 = sadd.s32 %s257, 1
      %p261 = scmp.eq.s32.totalorder %s24, 1
      %p262 = scmp.ne.s32.totalorder %s257, %s259
      %p263 = scmp.eq.s32.totalorder %s24, 0
      %p264 = por %p262, %p263
      %p265 = scmp.ne.s32.totalorder %s257, %s259
      %p266 = scmp.eq.s32.totalorder %s29, 1
      %p267 = por %p265, %p266
      %p268 = scmp.ne.s32.totalorder %s259, %s260
      %p269 = scmp.eq.s32.totalorder %s29, 0
      %p270 = por %p268, %p269
      %p271 = scmp.ne.s32.totalorder %s259, %s260
      %p272 = scmp.eq.s32.totalorder %s30, 1
      %p273 = por %p271, %p272
      %p275 = scmp.ne.s32.totalorder %s260, %s274
      %p276 = scmp.eq.s32.totalorder %s30, 0
      %p277 = por %p275, %p276
      %s278 = ssub.s32 %s24, %s31
      %p279 = scmp.eq.s32.totalorder %s278, 0
      %s281 = sadd.s32 %s280, 1
      %s282 = scalar_select %p279, %s280, %s281
      %p285 = pneg %p279
      %p286 = scmp.eq.s32.totalorder %s24, 1
      %p287 = por %p285, %p286
      %p288 = scmp.ne.s32.totalorder %s280, %s283
      %p289 = scmp.eq.s32.totalorder %s24, 0
      %p290 = por %p288, %p289
      %p291 = scmp.ne.s32.totalorder %s280, %s283
      %p292 = scmp.eq.s32.totalorder %s29, 1
      %p293 = por %p291, %p292
      %p294 = scmp.ne.s32.totalorder %s283, %s284
      %p295 = scmp.eq.s32.totalorder %s29, 0
      %p296 = por %p294, %p295
      %p297 = scmp.ne.s32.totalorder %s283, %s284
      %p298 = scmp.eq.s32.totalorder %s30, 1
      %p299 = por %p297, %p298
      %p301 = scmp.ne.s32.totalorder %s284, %s300
      %p302 = scmp.eq.s32.totalorder %s30, 0
      %p303 = por %p301, %p302
      %p304 = scmp.le.s32.totalorder 1, %s24
      %p305 = scmp.lt.s32.totalorder %s24, 3
      %p306 = pnand %p304, %p305
      %p307 = pneg %p306
      // Predicated region
      $region9: #{tpu_custom_call.1} parent=5 // pred_check
        _
      $region10: #{tpu_custom_call.1} parent=5 // pred_check_branch
        %309 = sbr.rel (%p306) target = $region12
      $region11: #{tpu_custom_call.1} parent=5 // pred_region
        %s310 = ssub.s32 %s24, 1
        // Predicated region
        $region13: #{tpu_custom_call.1} parent=11 // pred_check
          %p311 = pneg %p123
        $region14: #{tpu_custom_call.1} parent=11 // pred_check_branch
          %313 = sbr.rel (%p311) target = $region16
        $region15: #{tpu_custom_call.1} parent=11 // pred_region
          _
        $region16: #{tpu_custom_call.1} parent=11 // pred_fallthru
          _
        // Predicated region
        $region17: #{tpu_custom_call.1} parent=11 // pred_check
          %p314 = pneg %p144
        $region18: #{tpu_custom_call.1} parent=11 // pred_check_branch
          %316 = sbr.rel (%p314) target = $region20
        $region19: #{tpu_custom_call.1} parent=11 // pred_region
          _
        $region20: #{tpu_custom_call.1} parent=11 // pred_fallthru
          _
        // Predicated region
        $region21: #{tpu_custom_call.1} parent=11 // pred_check
          %p317 = pneg %p165
        $region22: #{tpu_custom_call.1} parent=11 // pred_check_branch
          %319 = sbr.rel (%p317) target = $region24
        $region23: #{tpu_custom_call.1} parent=11 // pred_region
          _
        $region24: #{tpu_custom_call.1} parent=11 // pred_fallthru
          _
        // Predicated region
        $region25: #{tpu_custom_call.1} parent=11 // pred_check
          %p320 = pneg %p186
        $region26: #{tpu_custom_call.1} parent=11 // pred_check_branch
          %322 = sbr.rel (%p320) target = $region28
        $region27: #{tpu_custom_call.1} parent=11 // pred_region
          _
        $region28: #{tpu_custom_call.1} parent=11 // pred_fallthru
          _
        // Predicated region
        $region29: #{tpu_custom_call.1} parent=11 // pred_check
          %p323 = pneg %p207
        $region30: #{tpu_custom_call.1} parent=11 // pred_check_branch
          %325 = sbr.rel (%p323) target = $region32
        $region31: #{tpu_custom_call.1} parent=11 // pred_region
          %s327 = ssub.s32 16, 16
          %328 = vsyncadd [#allocation6], %s327
          %s330 = sshll.u32 %s7, 4
          %s331 = int_to_ptr.vmem [resolvable:$true] %s330
          %333 = dma.vmem_to_smem %s331, 16, [#allocation4], [#allocation6]
        $region32: #{tpu_custom_call.1} parent=11 // pred_fallthru
          _
        // Predicated region
        $region33: #{tpu_custom_call.1} parent=11 // pred_check
          %p334 = pneg %p228
        $region34: #{tpu_custom_call.1} parent=11 // pred_check_branch
          %336 = sbr.rel (%p334) target = $region36
        $region35: #{tpu_custom_call.1} parent=11 // pred_region
          _
        $region36: #{tpu_custom_call.1} parent=11 // pred_fallthru
          _
        // Predicated region
        $region37: #{tpu_custom_call.1} parent=11 // pred_check
          %p337 = pneg %p249
        $region38: #{tpu_custom_call.1} parent=11 // pred_check_branch
          %339 = sbr.rel (%p337) target = $region40
        $region39: #{tpu_custom_call.1} parent=11 // pred_region
          %s341 = ssub.s32 16, 16
          %342 = vsyncadd [#allocation8], %s341
          %s344 = sshll.u32 %s9, 4
          %s345 = int_to_ptr.vmem [resolvable:$true] %s344
          %347 = dma.vmem_to_smem %s345, 16, [#allocation7], [#allocation8]
        $region40: #{tpu_custom_call.1} parent=11 // pred_fallthru
          _
        // Predicated region
        $region41: #{tpu_custom_call.1} parent=11 // pred_check
          %p348 = pneg %p270
        $region42: #{tpu_custom_call.1} parent=11 // pred_check_branch
          %350 = sbr.rel (%p348) target = $region44
        $region43: #{tpu_custom_call.1} parent=11 // pred_region
          _
        $region44: #{tpu_custom_call.1} parent=11 // pred_fallthru
          _
      $region12: #{tpu_custom_call.1} parent=5 // pred_fallthru
        _
      %p351 = scmp.lt.s32.totalorder %s24, 2
      // Predicated region
      $region45: #{tpu_custom_call.1} parent=5 // pred_check
        %p352 = pneg %p351
      $region46: #{tpu_custom_call.1} parent=5 // pred_check_branch
        %354 = sbr.rel (%p352) target = $region48
      $region47: #{tpu_custom_call.1} parent=5 // pred_region
        // Predicated region
        $region49: #{tpu_custom_call.1} parent=47 // pred_check
          %p355 = pneg %p44
        $region50: #{tpu_custom_call.1} parent=47 // pred_check_branch
          %357 = sbr.rel (%p355) target = $region52
        $region51: #{tpu_custom_call.1} parent=47 // pred_region
          %s358 = smul.u32 8, %s24
          %p359 = scmp.lt.s32.totalorder %s358, 15
          %s360 = scalar_select %p359, %s358, 15
          %s361 = smul.addr %s360, 4
          %s362 = scalar_lea.vmem %s0, %s361
          %s363 = smul.u32 8, %s24
        $region52: #{tpu_custom_call.1} parent=47 // pred_fallthru
          _
        // Predicated region
        $region53: #{tpu_custom_call.1} parent=47 // pred_check
          %p364 = pneg %p70
        $region54: #{tpu_custom_call.1} parent=47 // pred_check_branch
          %366 = sbr.rel (%p364) target = $region56
        $region55: #{tpu_custom_call.1} parent=47 // pred_region
          %p367 = scmp.lt.s32.totalorder %s24, 1
          %s368 = scalar_select %p367, %s24, 1
          %s369 = smul.addr %s368, 8
          %s370 = scalar_lea.vmem %s1, %s369
        $region56: #{tpu_custom_call.1} parent=47 // pred_fallthru
          _
        // Predicated region
        $region57: #{tpu_custom_call.1} parent=47 // pred_check
          %p371 = pneg %p96
        $region58: #{tpu_custom_call.1} parent=47 // pred_check_branch
          %373 = sbr.rel (%p371) target = $region60
        $region59: #{tpu_custom_call.1} parent=47 // pred_region
          %p374 = scmp.lt.s32.totalorder %s24, 1
          %s375 = scalar_select %p374, %s24, 1
          %s376 = smul.addr %s375, 8
          %s377 = scalar_lea.vmem %s2, %s376
        $region60: #{tpu_custom_call.1} parent=47 // pred_fallthru
          _
      $region48: #{tpu_custom_call.1} parent=5 // pred_fallthru
        _
      %p378 = scmp.le.s32.totalorder 1, %s24
      %p379 = scmp.lt.s32.totalorder %s24, 3
      %p380 = pnand %p378, %p379
      %p381 = pneg %p380
      // Predicated region
      $region61: #{tpu_custom_call.1} parent=5 // pred_check
        _
      $region62: #{tpu_custom_call.1} parent=5 // pred_check_branch
        %383 = sbr.rel (%p380) target = $region64
      $region63: #{tpu_custom_call.1} parent=5 // pred_region
        %s384 = ssub.s32 %s24, 1
        // Predicated region
        $region65: #{tpu_custom_call.1} parent=63 // pred_check
          %p385 = pneg %p207
        $region66: #{tpu_custom_call.1} parent=63 // pred_check_branch
          %387 = sbr.rel (%p385) target = $region68
        $region67: #{tpu_custom_call.1} parent=63 // pred_region
          %388 = dma.done [#allocation6], 16
        $region68: #{tpu_custom_call.1} parent=63 // pred_fallthru
          _
        // Predicated region
        $region69: #{tpu_custom_call.1} parent=63 // pred_check
          %p389 = pneg %p249
        $region70: #{tpu_custom_call.1} parent=63 // pred_check_branch
          %391 = sbr.rel (%p389) target = $region72
        $region71: #{tpu_custom_call.1} parent=63 // pred_region
          %392 = dma.done [#allocation8], 16
        $region72: #{tpu_custom_call.1} parent=63 // pred_fallthru
          _
        %393 = sfence
        %s394 = smul.u32 8, %s29
        %p395 = scmp.lt.s32.totalorder %s394, 15
        %s396 = scalar_select %p395, %s394, 15
        %s397 = smul.addr %s396, 4
        %s398 = scalar_lea.vmem %s0, %s397
        %p399 = pneg %p50
        %p400 = pneg %p47
        %p401 = scmp.lt.s32.totalorder %s29, 1
        %s402 = scalar_select %p401, %s29, 1
        %s403 = smul.addr %s402, 8
        %s404 = scalar_lea.vmem %s1, %s403
        %p405 = pneg %p76
        %p406 = pneg %p73
        %p407 = scmp.lt.s32.totalorder %s29, 1
        %s408 = scalar_select %p407, %s29, 1
        %s409 = smul.addr %s408, 8
        %s410 = scalar_lea.vmem %s2, %s409
        %p411 = pneg %p102
        %p412 = pneg %p99
        %p413 = pneg %p123
        %p414 = pneg %p120
        %p415 = pneg %p144
        %p416 = pneg %p141
        %p417 = pneg %p165
        %p418 = pneg %p162
        %p419 = pneg %p186
        %p420 = pneg %p183
        %p421 = pneg %p207
        %p422 = pneg %p204
        %p423 = pneg %p228
        %p424 = pneg %p225
        %p425 = pneg %p249
        %p426 = pneg %p246
        %p427 = pneg %p270
        %p428 = pneg %p267
        %p429 = pneg %p296
        %p430 = pneg %p293
        %s431 = sand.u32 %s283, 1
        %s432 = scalar_lea.sflag [#allocation5], %s431
        %s433 = sand.u32 %s283, 1
        %s434 = smul.addr %s433, 64
        %s435 = scalar_lea.vmem [#allocation9], %s434
        %s436 = smul.u32 8, %s29
        %p437 = scmp.lt.s32.totalorder %s436, 15
        %s438 = scalar_select %p437, %s436, 15
        %s439 = smul.addr %s438, 4
        %s440 = scalar_lea.vmem %s0, %s439
        %s441 = smul.u32 8, %s29
        %p442 = scmp.lt.s32.totalorder %s29, 1
        %s443 = scalar_select %p442, %s29, 1
        %s444 = smul.addr %s443, 8
        %s445 = scalar_lea.vmem %s1, %s444
        %p446 = scmp.lt.s32.totalorder %s29, 1
        %s447 = scalar_select %p446, %s29, 1
        %s448 = smul.addr %s447, 8
        %s449 = scalar_lea.vmem %s2, %s448
        %s450 = smul.u32 8, %s29
        %v451 = vld [vmem:[%s3] sm:$0xff]
        %v452 = vld [vmem:[%s3 + $0x8] sm:$0xff]
        %v453 = vld [vmem:[%s3 + $0x10] sm:$0xff]
        %v454 = vld [vmem:[%s3 + $0x18] sm:$0xff]
        %v455 = vld [vmem:[%s3 + $0x20] sm:$0xff]
        %v456 = vld [vmem:[%s440] sm:$0xf]
        %vm457 = vcmask 31744
        %v459 = vsel %vm457, %v451, 0
        %v462 = vsel %vm457, %v452, 0
        %v465 = vsel %vm457, %v453, 0
        %v468 = vsel %vm457, %v454, 0
        %v471 = vsel %vm457, %v455, 0
        %vm473 = vcmask 1043456
        %v475 = vsel %vm473, %v456, 0
        %477 = vmatprep.subr.mxu0 0.0
        %478 = vmatpush1.msra.mxu0 %v475
        %479 = vmatprep.subr.mxu0 0.0
        %480 = vmatpush1.msra.mxu0 0.0
        %481 = vmatprep.subr.mxu0 0.0
        %482 = vmatpush1.msra.mxu0 0.0
        %483 = vmatprep.subr.mxu0 0.0
        %484 = vmatpush1.msra.mxu0 0.0
        %485 = vmatprep.subr.mxu0 0.0
        %486 = vmatpush1.msra.mxu0 0.0
        %487 = vmatprep.subr.mxu0 0.0
        %488 = vmatpush1.msra.mxu0 0.0
        %489 = vmatprep.subr.mxu0 0.0
        %490 = vmatpush1.msra.mxu0 0.0
        %491 = vmatprep.subr.mxu0 0.0
        %492 = vmatpush1.msra.mxu0 0.0
        %493 = vmatprep.subr.mxu0 0.0
        %494 = vmatpush1.msra.mxu0 0.0
        %495 = vmatprep.subr.mxu0 0.0
        %496 = vmatpush1.msra.mxu0 0.0
        %497 = vmatprep.subr.mxu0 0.0
        %498 = vmatpush1.msra.mxu0 0.0
        %499 = vmatprep.subr.mxu0 0.0
        %500 = vmatpush1.msra.mxu0 0.0
        %501 = vmatprep.subr.mxu0 0.0
        %502 = vmatpush1.msra.mxu0 0.0
        %503 = vmatprep.subr.mxu0 0.0
        %504 = vmatpush1.msra.mxu0 0.0
        %505 = vmatprep.subr.mxu0 0.0
        %506 = vmatpush1.msra.mxu0 0.0
        %507 = vmatprep.subr.mxu0 0.0
        %508 = vmatpush1.msra.mxu0 0.0
        %509 = vmatprep.subr.mxu0 0.0
        %510 = vmatpush1.msra.mxu0 0.0
        %511 = vmatprep.subr.mxu0 0.0
        %512 = vmatpush1.msra.mxu0 0.0
        %513 = vmatprep.subr.mxu0 0.0
        %514 = vmatpush1.msra.mxu0 0.0
        %515 = vmatprep.subr.mxu0 0.0
        %516 = vmatpush1.msra.mxu0 0.0
        %517 = vmatprep.subr.mxu0 0.0
        %518 = vmatpush1.msra.mxu0 0.0
        %519 = vmatprep.subr.mxu0 0.0
        %520 = vmatpush1.msra.mxu0 0.0
        %521 = vmatprep.subr.mxu0 0.0
        %522 = vmatpush1.msra.mxu0 0.0
        %523 = vmatprep.subr.mxu0 0.0
        %524 = vmatpush1.msra.mxu0 0.0
        %525 = vmatprep.subr.mxu0 0.0
        %526 = vmatpush1.msra.mxu0 0.0
        %527 = vmatprep.subr.mxu0 0.0
        %528 = vmatpush1.msra.mxu0 0.0
        %529 = vmatprep.subr.mxu0 0.0
        %530 = vmatpush1.msra.mxu0 0.0
        %531 = vmatprep.subr.mxu0 0.0
        %532 = vmatpush1.msra.mxu0 0.0
        %533 = vmatprep.subr.mxu0 0.0
        %534 = vmatpush1.msra.mxu0 0.0
        %535 = vmatprep.subr.mxu0 0.0
        %536 = vmatpush1.msra.mxu0 0.0
        %537 = vmatprep.subr.mxu0 0.0
        %538 = vmatpush1.msra.mxu0 0.0
        %539 = vmatprep.subr.mxu0 0.0
        %540 = vmatpush1.msra.mxu0 0.0
        %541 = vmatprep.mubr.f32.mxu0 0.0
        %542 = vmatmul.mubr.f32.gmra.mrb[0].mxu0 %v459
        %v543 = vpop.f32.mrb[0].mxu0
        %v544 = vadd.f32 0.0, %v543
        %v545 = vpop.f32.mrb[0].mxu0
        %546 = vmatprep.mubr.f32.mxu0 0.0
        %547 = vmatmul.mubr.f32.gmra.mrb[0].mxu0 %v462
        %v548 = vpop.f32.mrb[0].mxu0
        %v549 = vadd.f32 0.0, %v548
        %v550 = vpop.f32.mrb[0].mxu0
        %551 = vmatprep.mubr.f32.mxu0 0.0
        %552 = vmatmul.mubr.f32.gmra.mrb[0].mxu0 %v465
        %v553 = vpop.f32.mrb[0].mxu0
        %v554 = vadd.f32 0.0, %v553
        %v555 = vpop.f32.mrb[0].mxu0
        %556 = vmatprep.mubr.f32.mxu0 0.0
        %557 = vmatmul.mubr.f32.gmra.mrb[0].mxu0 %v468
        %v558 = vpop.f32.mrb[0].mxu0
        %v559 = vadd.f32 0.0, %v558
        %v560 = vpop.f32.mrb[0].mxu0
        %561 = vmatprep.mubr.f32.mxu0 0.0
        %562 = vmatmul.mubr.f32.gmra.mrb[0].mxu0 %v471
        %v563 = vpop.f32.mrb[0].mxu0
        %v564 = vadd.f32 0.0, %v563
        %v565 = vpop.f32.mrb[0].mxu0
        %566 = vdwg.mxu0
        %568 = vrot.lane.b32.xlu0 %v549, 1
        %v569 = vpop.permute.xlu0 %568
        %vm571 = vcmask 7168
        %v572 = vsel %vm571, 0.0, %v569
        %v573 = vadd.f32 %v544, %v572
        %575 = vrot.lane.b32.xlu0 %v554, 2
        %v576 = vpop.permute.xlu0 %575
        %vm578 = vcmask 15360
        %v579 = vsel %vm578, 0.0, %v576
        %v580 = vadd.f32 %v573, %v579
        %582 = vrot.lane.b32.xlu0 %v559, 3
        %v583 = vpop.permute.xlu0 %582
        %vm585 = vcmask 23552
        %v586 = vsel %vm585, 0.0, %v583
        %v587 = vadd.f32 %v580, %v586
        %589 = vrot.lane.b32.xlu0 %v564, 4
        %v590 = vpop.permute.xlu0 %589
        %v592 = vsel %vm457, 0.0, %v590
        %v593 = vadd.f32 %v587, %v592
        %s594 = scalar_lea.vmem %s440, 4
        %v595 = vld [vmem:[%s594] sm:$0xf]
        %v597 = vsel %vm473, %v595, 0
        %599 = vmatprep.subr.mxu0 0.0
        %600 = vmatpush1.msra.mxu0 %v597
        %601 = vmatprep.subr.mxu0 0.0
        %602 = vmatpush1.msra.mxu0 0.0
        %603 = vmatprep.subr.mxu0 0.0
        %604 = vmatpush1.msra.mxu0 0.0
        %605 = vmatprep.subr.mxu0 0.0
        %606 = vmatpush1.msra.mxu0 0.0
        %607 = vmatprep.subr.mxu0 0.0
        %608 = vmatpush1.msra.mxu0 0.0
        %609 = vmatprep.subr.mxu0 0.0
        %610 = vmatpush1.msra.mxu0 0.0
        %611 = vmatprep.subr.mxu0 0.0
        %612 = vmatpush1.msra.mxu0 0.0
        %613 = vmatprep.subr.mxu0 0.0
        %614 = vmatpush1.msra.mxu0 0.0
        %615 = vmatprep.subr.mxu0 0.0
        %616 = vmatpush1.msra.mxu0 0.0
        %617 = vmatprep.subr.mxu0 0.0
        %618 = vmatpush1.msra.mxu0 0.0
        %619 = vmatprep.subr.mxu0 0.0
        %620 = vmatpush1.msra.mxu0 0.0
        %621 = vmatprep.subr.mxu0 0.0
        %622 = vmatpush1.msra.mxu0 0.0
        %623 = vmatprep.subr.mxu0 0.0
        %624 = vmatpush1.msra.mxu0 0.0
        %625 = vmatprep.subr.mxu0 0.0
        %626 = vmatpush1.msra.mxu0 0.0
        %627 = vmatprep.subr.mxu0 0.0
        %628 = vmatpush1.msra.mxu0 0.0
        %629 = vmatprep.subr.mxu0 0.0
        %630 = vmatpush1.msra.mxu0 0.0
        %631 = vmatprep.subr.mxu0 0.0
        %632 = vmatpush1.msra.mxu0 0.0
        %633 = vmatprep.subr.mxu0 0.0
        %634 = vmatpush1.msra.mxu0 0.0
        %635 = vmatprep.subr.mxu0 0.0
        %636 = vmatpush1.msra.mxu0 0.0
        %637 = vmatprep.subr.mxu0 0.0
        %638 = vmatpush1.msra.mxu0 0.0
        %639 = vmatprep.subr.mxu0 0.0
        %640 = vmatpush1.msra.mxu0 0.0
        %641 = vmatprep.subr.mxu0 0.0
        %642 = vmatpush1.msra.mxu0 0.0
        %643 = vmatprep.subr.mxu0 0.0
        %644 = vmatpush1.msra.mxu0 0.0
        %645 = vmatprep.subr.mxu0 0.0
        %646 = vmatpush1.msra.mxu0 0.0
        %647 = vmatprep.subr.mxu0 0.0
        %648 = vmatpush1.msra.mxu0 0.0
        %649 = vmatprep.subr.mxu0 0.0
        %650 = vmatpush1.msra.mxu0 0.0
        %651 = vmatprep.subr.mxu0 0.0
        %652 = vmatpush1.msra.mxu0 0.0
        %653 = vmatprep.subr.mxu0 0.0
        %654 = vmatpush1.msra.mxu0 0.0
        %655 = vmatprep.subr.mxu0 0.0
        %656 = vmatpush1.msra.mxu0 0.0
        %657 = vmatprep.subr.mxu0 0.0
        %658 = vmatpush1.msra.mxu0 0.0
        %659 = vmatprep.subr.mxu0 0.0
        %660 = vmatpush1.msra.mxu0 0.0
        %661 = vmatprep.subr.mxu0 0.0
        %662 = vmatpush1.msra.mxu0 0.0
        %663 = vmatprep.mubr.f32.mxu0 0.0
        %664 = vmatmul.mubr.f32.gmra.mrb[0].mxu0 %v459
        %v665 = vpop.f32.mrb[0].mxu0
        %v666 = vadd.f32 0.0, %v665
        %v667 = vpop.f32.mrb[0].mxu0
        %668 = vmatprep.mubr.f32.mxu0 0.0
        %669 = vmatmul.mubr.f32.gmra.mrb[0].mxu0 %v462
        %v670 = vpop.f32.mrb[0].mxu0
        %v671 = vadd.f32 0.0, %v670
        %v672 = vpop.f32.mrb[0].mxu0
        %673 = vmatprep.mubr.f32.mxu0 0.0
        %674 = vmatmul.mubr.f32.gmra.mrb[0].mxu0 %v465
        %v675 = vpop.f32.mrb[0].mxu0
        %v676 = vadd.f32 0.0, %v675
        %v677 = vpop.f32.mrb[0].mxu0
        %678 = vmatprep.mubr.f32.mxu0 0.0
        %679 = vmatmul.mubr.f32.gmra.mrb[0].mxu0 %v468
        %v680 = vpop.f32.mrb[0].mxu0
        %v681 = vadd.f32 0.0, %v680
        %v682 = vpop.f32.mrb[0].mxu0
        %683 = vmatprep.mubr.f32.mxu0 0.0
        %684 = vmatmul.mubr.f32.gmra.mrb[0].mxu0 %v471
        %v685 = vpop.f32.mrb[0].mxu0
        %v686 = vadd.f32 0.0, %v685
        %v687 = vpop.f32.mrb[0].mxu0
        %688 = vdwg.mxu0
        %690 = vrot.lane.b32.xlu0 %v671, 1
        %v691 = vpop.permute.xlu0 %690
        %v693 = vsel %vm571, 0.0, %v691
        %v694 = vadd.f32 %v666, %v693
        %696 = vrot.lane.b32.xlu0 %v676, 2
        %v697 = vpop.permute.xlu0 %696
        %v699 = vsel %vm578, 0.0, %v697
        %v700 = vadd.f32 %v694, %v699
        %702 = vrot.lane.b32.xlu0 %v681, 3
        %v703 = vpop.permute.xlu0 %702
        %v705 = vsel %vm585, 0.0, %v703
        %v706 = vadd.f32 %v700, %v705
        %708 = vrot.lane.b32.xlu0 %v686, 4
        %v709 = vpop.permute.xlu0 %708
        %v711 = vsel %vm457, 0.0, %v709
        %v712 = vadd.f32 %v706, %v711
        %s713 = scalar_lea.vmem %s440, 8
        %v714 = vld [vmem:[%s713] sm:$0xf]
        %v716 = vsel %vm473, %v714, 0
        %718 = vmatprep.subr.mxu0 0.0
        %719 = vmatpush1.msra.mxu0 %v716
        %720 = vmatprep.subr.mxu0 0.0
        %721 = vmatpush1.msra.mxu0 0.0
        %722 = vmatprep.subr.mxu0 0.0
        %723 = vmatpush1.msra.mxu0 0.0
        %724 = vmatprep.subr.mxu0 0.0
        %725 = vmatpush1.msra.mxu0 0.0
        %726 = vmatprep.subr.mxu0 0.0
        %727 = vmatpush1.msra.mxu0 0.0
        %728 = vmatprep.subr.mxu0 0.0
        %729 = vmatpush1.msra.mxu0 0.0
        %730 = vmatprep.subr.mxu0 0.0
        %731 = vmatpush1.msra.mxu0 0.0
        %732 = vmatprep.subr.mxu0 0.0
        %733 = vmatpush1.msra.mxu0 0.0
        %734 = vmatprep.subr.mxu0 0.0
        %735 = vmatpush1.msra.mxu0 0.0
        %736 = vmatprep.subr.mxu0 0.0
        %737 = vmatpush1.msra.mxu0 0.0
        %738 = vmatprep.subr.mxu0 0.0
        %739 = vmatpush1.msra.mxu0 0.0
        %740 = vmatprep.subr.mxu0 0.0
        %741 = vmatpush1.msra.mxu0 0.0
        %742 = vmatprep.subr.mxu0 0.0
        %743 = vmatpush1.msra.mxu0 0.0
        %744 = vmatprep.subr.mxu0 0.0
        %745 = vmatpush1.msra.mxu0 0.0
        %746 = vmatprep.subr.mxu0 0.0
        %747 = vmatpush1.msra.mxu0 0.0
        %748 = vmatprep.subr.mxu0 0.0
        %749 = vmatpush1.msra.mxu0 0.0
        %750 = vmatprep.subr.mxu0 0.0
        %751 = vmatpush1.msra.mxu0 0.0
        %752 = vmatprep.subr.mxu0 0.0
        %753 = vmatpush1.msra.mxu0 0.0
        %754 = vmatprep.subr.mxu0 0.0
        %755 = vmatpush1.msra.mxu0 0.0
        %756 = vmatprep.subr.mxu0 0.0
        %757 = vmatpush1.msra.mxu0 0.0
        %758 = vmatprep.subr.mxu0 0.0
        %759 = vmatpush1.msra.mxu0 0.0
        %760 = vmatprep.subr.mxu0 0.0
        %761 = vmatpush1.msra.mxu0 0.0
        %762 = vmatprep.subr.mxu0 0.0
        %763 = vmatpush1.msra.mxu0 0.0
        %764 = vmatprep.subr.mxu0 0.0
        %765 = vmatpush1.msra.mxu0 0.0
        %766 = vmatprep.subr.mxu0 0.0
        %767 = vmatpush1.msra.mxu0 0.0
        %768 = vmatprep.subr.mxu0 0.0
        %769 = vmatpush1.msra.mxu0 0.0
        %770 = vmatprep.subr.mxu0 0.0
        %771 = vmatpush1.msra.mxu0 0.0
        %772 = vmatprep.subr.mxu0 0.0
        %773 = vmatpush1.msra.mxu0 0.0
        %774 = vmatprep.subr.mxu0 0.0
        %775 = vmatpush1.msra.mxu0 0.0
        %776 = vmatprep.subr.mxu0 0.0
        %777 = vmatpush1.msra.mxu0 0.0
        %778 = vmatprep.subr.mxu0 0.0
        %779 = vmatpush1.msra.mxu0 0.0
        %780 = vmatprep.subr.mxu0 0.0
        %781 = vmatpush1.msra.mxu0 0.0
        %782 = vmatprep.mubr.f32.mxu0 0.0
        %783 = vmatmul.mubr.f32.gmra.mrb[0].mxu0 %v459
        %v784 = vpop.f32.mrb[0].mxu0
        %v785 = vadd.f32 0.0, %v784
        %v786 = vpop.f32.mrb[0].mxu0
        %787 = vmatprep.mubr.f32.mxu0 0.0
        %788 = vmatmul.mubr.f32.gmra.mrb[0].mxu0 %v462
        %v789 = vpop.f32.mrb[0].mxu0
        %v790 = vadd.f32 0.0, %v789
        %v791 = vpop.f32.mrb[0].mxu0
        %792 = vmatprep.mubr.f32.mxu0 0.0
        %793 = vmatmul.mubr.f32.gmra.mrb[0].mxu0 %v465
        %v794 = vpop.f32.mrb[0].mxu0
        %v795 = vadd.f32 0.0, %v794
        %v796 = vpop.f32.mrb[0].mxu0
        %797 = vmatprep.mubr.f32.mxu0 0.0
        %798 = vmatmul.mubr.f32.gmra.mrb[0].mxu0 %v468
        %v799 = vpop.f32.mrb[0].mxu0
        %v800 = vadd.f32 0.0, %v799
        %v801 = vpop.f32.mrb[0].mxu0
        %802 = vmatprep.mubr.f32.mxu0 0.0
        %803 = vmatmul.mubr.f32.gmra.mrb[0].mxu0 %v471
        %v804 = vpop.f32.mrb[0].mxu0
        %v805 = vadd.f32 0.0, %v804
        %v806 = vpop.f32.mrb[0].mxu0
        %807 = vdwg.mxu0
        %809 = vrot.lane.b32.xlu0 %v790, 1
        %v810 = vpop.permute.xlu0 %809
        %v812 = vsel %vm571, 0.0, %v810
        %v813 = vadd.f32 %v785, %v812
        %815 = vrot.lane.b32.xlu0 %v795, 2
        %v816 = vpop.permute.xlu0 %815
        %v818 = vsel %vm578, 0.0, %v816
        %v819 = vadd.f32 %v813, %v818
        %821 = vrot.lane.b32.xlu0 %v800, 3
        %v822 = vpop.permute.xlu0 %821
        %v824 = vsel %vm585, 0.0, %v822
        %v825 = vadd.f32 %v819, %v824
        %827 = vrot.lane.b32.xlu0 %v805, 4
        %v828 = vpop.permute.xlu0 %827
        %v830 = vsel %vm457, 0.0, %v828
        %v831 = vadd.f32 %v825, %v830
        %s832 = scalar_lea.vmem %s440, 12
        %v833 = vld [vmem:[%s832] sm:$0xf]
        %v835 = vsel %vm473, %v833, 0
        %837 = vmatprep.subr.mxu0 0.0
        %838 = vmatpush1.msra.mxu0 %v835
        %839 = vmatprep.subr.mxu0 0.0
        %840 = vmatpush1.msra.mxu0 0.0
        %841 = vmatprep.subr.mxu0 0.0
        %842 = vmatpush1.msra.mxu0 0.0
        %843 = vmatprep.subr.mxu0 0.0
        %844 = vmatpush1.msra.mxu0 0.0
        %845 = vmatprep.subr.mxu0 0.0
        %846 = vmatpush1.msra.mxu0 0.0
        %847 = vmatprep.subr.mxu0 0.0
        %848 = vmatpush1.msra.mxu0 0.0
        %849 = vmatprep.subr.mxu0 0.0
        %850 = vmatpush1.msra.mxu0 0.0
        %851 = vmatprep.subr.mxu0 0.0
        %852 = vmatpush1.msra.mxu0 0.0
        %853 = vmatprep.subr.mxu0 0.0
        %854 = vmatpush1.msra.mxu0 0.0
        %855 = vmatprep.subr.mxu0 0.0
        %856 = vmatpush1.msra.mxu0 0.0
        %857 = vmatprep.subr.mxu0 0.0
        %858 = vmatpush1.msra.mxu0 0.0
        %859 = vmatprep.subr.mxu0 0.0
        %860 = vmatpush1.msra.mxu0 0.0
        %861 = vmatprep.subr.mxu0 0.0
        %862 = vmatpush1.msra.mxu0 0.0
        %863 = vmatprep.subr.mxu0 0.0
        %864 = vmatpush1.msra.mxu0 0.0
        %865 = vmatprep.subr.mxu0 0.0
        %866 = vmatpush1.msra.mxu0 0.0
        %867 = vmatprep.subr.mxu0 0.0
        %868 = vmatpush1.msra.mxu0 0.0
        %869 = vmatprep.subr.mxu0 0.0
        %870 = vmatpush1.msra.mxu0 0.0
        %871 = vmatprep.subr.mxu0 0.0
        %872 = vmatpush1.msra.mxu0 0.0
        %873 = vmatprep.subr.mxu0 0.0
        %874 = vmatpush1.msra.mxu0 0.0
        %875 = vmatprep.subr.mxu0 0.0
        %876 = vmatpush1.msra.mxu0 0.0
        %877 = vmatprep.subr.mxu0 0.0
        %878 = vmatpush1.msra.mxu0 0.0
        %879 = vmatprep.subr.mxu0 0.0
        %880 = vmatpush1.msra.mxu0 0.0
        %881 = vmatprep.subr.mxu0 0.0
        %882 = vmatpush1.msra.mxu0 0.0
        %883 = vmatprep.subr.mxu0 0.0
        %884 = vmatpush1.msra.mxu0 0.0
        %885 = vmatprep.subr.mxu0 0.0
        %886 = vmatpush1.msra.mxu0 0.0
        %887 = vmatprep.subr.mxu0 0.0
        %888 = vmatpush1.msra.mxu0 0.0
        %889 = vmatprep.subr.mxu0 0.0
        %890 = vmatpush1.msra.mxu0 0.0
        %891 = vmatprep.subr.mxu0 0.0
        %892 = vmatpush1.msra.mxu0 0.0
        %893 = vmatprep.subr.mxu0 0.0
        %894 = vmatpush1.msra.mxu0 0.0
        %895 = vmatprep.subr.mxu0 0.0
        %896 = vmatpush1.msra.mxu0 0.0
        %897 = vmatprep.subr.mxu0 0.0
        %898 = vmatpush1.msra.mxu0 0.0
        %899 = vmatprep.subr.mxu0 0.0
        %900 = vmatpush1.msra.mxu0 0.0
        %901 = vmatprep.mubr.f32.mxu0 0.0
        %902 = vmatmul.mubr.f32.gmra.mrb[0].mxu0 %v459
        %v903 = vpop.f32.mrb[0].mxu0
        %v904 = vadd.f32 0.0, %v903
        %v905 = vpop.f32.mrb[0].mxu0
        %906 = vmatprep.mubr.f32.mxu0 0.0
        %907 = vmatmul.mubr.f32.gmra.mrb[0].mxu0 %v462
        %v908 = vpop.f32.mrb[0].mxu0
        %v909 = vadd.f32 0.0, %v908
        %v910 = vpop.f32.mrb[0].mxu0
        %911 = vmatprep.mubr.f32.mxu0 0.0
        %912 = vmatmul.mubr.f32.gmra.mrb[0].mxu0 %v465
        %v913 = vpop.f32.mrb[0].mxu0
        %v914 = vadd.f32 0.0, %v913
        %v915 = vpop.f32.mrb[0].mxu0
        %916 = vmatprep.mubr.f32.mxu0 0.0
        %917 = vmatmul.mubr.f32.gmra.mrb[0].mxu0 %v468
        %v918 = vpop.f32.mrb[0].mxu0
        %v919 = vadd.f32 0.0, %v918
        %v920 = vpop.f32.mrb[0].mxu0
        %921 = vmatprep.mubr.f32.mxu0 0.0
        %922 = vmatmul.mubr.f32.gmra.mrb[0].mxu0 %v471
        %v923 = vpop.f32.mrb[0].mxu0
        %v924 = vadd.f32 0.0, %v923
        %v925 = vpop.f32.mrb[0].mxu0
        %926 = vdwg.mxu0
        %928 = vrot.lane.b32.xlu0 %v909, 1
        %v929 = vpop.permute.xlu0 %928
        %v931 = vsel %vm571, 0.0, %v929
        %v932 = vadd.f32 %v904, %v931
        %934 = vrot.lane.b32.xlu0 %v914, 2
        %v935 = vpop.permute.xlu0 %934
        %v937 = vsel %vm578, 0.0, %v935
        %v938 = vadd.f32 %v932, %v937
        %940 = vrot.lane.b32.xlu0 %v919, 3
        %v941 = vpop.permute.xlu0 %940
        %v943 = vsel %vm585, 0.0, %v941
        %v944 = vadd.f32 %v938, %v943
        %946 = vrot.lane.b32.xlu0 %v924, 4
        %v947 = vpop.permute.xlu0 %946
        %v949 = vsel %vm457, 0.0, %v947
        %v950 = vadd.f32 %v944, %v949
        %s951 = scalar_lea.vmem %s440, 16
        %v952 = vld [vmem:[%s951] sm:$0xf]
        %v954 = vsel %vm473, %v952, 0
        %956 = vmatprep.subr.mxu0 0.0
        %957 = vmatpush1.msra.mxu0 %v954
        %958 = vmatprep.subr.mxu0 0.0
        %959 = vmatpush1.msra.mxu0 0.0
        %960 = vmatprep.subr.mxu0 0.0
        %961 = vmatpush1.msra.mxu0 0.0
        %962 = vmatprep.subr.mxu0 0.0
        %963 = vmatpush1.msra.mxu0 0.0
        %964 = vmatprep.subr.mxu0 0.0
        %965 = vmatpush1.msra.mxu0 0.0
        %966 = vmatprep.subr.mxu0 0.0
        %967 = vmatpush1.msra.mxu0 0.0
        %968 = vmatprep.subr.mxu0 0.0
        %969 = vmatpush1.msra.mxu0 0.0
        %970 = vmatprep.subr.mxu0 0.0
        %971 = vmatpush1.msra.mxu0 0.0
        %972 = vmatprep.subr.mxu0 0.0
        %973 = vmatpush1.msra.mxu0 0.0
        %974 = vmatprep.subr.mxu0 0.0
        %975 = vmatpush1.msra.mxu0 0.0
        %976 = vmatprep.subr.mxu0 0.0
        %977 = vmatpush1.msra.mxu0 0.0
        %978 = vmatprep.subr.mxu0 0.0
        %979 = vmatpush1.msra.mxu0 0.0
        %980 = vmatprep.subr.mxu0 0.0
        %981 = vmatpush1.msra.mxu0 0.0
        %982 = vmatprep.subr.mxu0 0.0
        %983 = vmatpush1.msra.mxu0 0.0
        %984 = vmatprep.subr.mxu0 0.0
        %985 = vmatpush1.msra.mxu0 0.0
        %986 = vmatprep.subr.mxu0 0.0
        %987 = vmatpush1.msra.mxu0 0.0
        %988 = vmatprep.subr.mxu0 0.0
        %989 = vmatpush1.msra.mxu0 0.0
        %990 = vmatprep.subr.mxu0 0.0
        %991 = vmatpush1.msra.mxu0 0.0
        %992 = vmatprep.subr.mxu0 0.0
        %993 = vmatpush1.msra.mxu0 0.0
        %994 = vmatprep.subr.mxu0 0.0
        %995 = vmatpush1.msra.mxu0 0.0
        %996 = vmatprep.subr.mxu0 0.0
        %997 = vmatpush1.msra.mxu0 0.0
        %998 = vmatprep.subr.mxu0 0.0
        %999 = vmatpush1.msra.mxu0 0.0
        %1000 = vmatprep.subr.mxu0 0.0
        %1001 = vmatpush1.msra.mxu0 0.0
        %1002 = vmatprep.subr.mxu0 0.0
        %1003 = vmatpush1.msra.mxu0 0.0
        %1004 = vmatprep.subr.mxu0 0.0
        %1005 = vmatpush1.msra.mxu0 0.0
        %1006 = vmatprep.subr.mxu0 0.0
        %1007 = vmatpush1.msra.mxu0 0.0
        %1008 = vmatprep.subr.mxu0 0.0
        %1009 = vmatpush1.msra.mxu0 0.0
        %1010 = vmatprep.subr.mxu0 0.0
        %1011 = vmatpush1.msra.mxu0 0.0
        %1012 = vmatprep.subr.mxu0 0.0
        %1013 = vmatpush1.msra.mxu0 0.0
        %1014 = vmatprep.subr.mxu0 0.0
        %1015 = vmatpush1.msra.mxu0 0.0
        %1016 = vmatprep.subr.mxu0 0.0
        %1017 = vmatpush1.msra.mxu0 0.0
        %1018 = vmatprep.subr.mxu0 0.0
        %1019 = vmatpush1.msra.mxu0 0.0
        %1020 = vmatprep.mubr.f32.mxu0 0.0
        %1021 = vmatmul.mubr.f32.gmra.mrb[0].mxu0 %v459
        %v1022 = vpop.f32.mrb[0].mxu0
        %v1023 = vadd.f32 0.0, %v1022
        %v1024 = vpop.f32.mrb[0].mxu0
        %1025 = vmatprep.mubr.f32.mxu0 0.0
        %1026 = vmatmul.mubr.f32.gmra.mrb[0].mxu0 %v462
        %v1027 = vpop.f32.mrb[0].mxu0
        %v1028 = vadd.f32 0.0, %v1027
        %v1029 = vpop.f32.mrb[0].mxu0
        %1030 = vmatprep.mubr.f32.mxu0 0.0
        %1031 = vmatmul.mubr.f32.gmra.mrb[0].mxu0 %v465
        %v1032 = vpop.f32.mrb[0].mxu0
        %v1033 = vadd.f32 0.0, %v1032
        %v1034 = vpop.f32.mrb[0].mxu0
        %1035 = vmatprep.mubr.f32.mxu0 0.0
        %1036 = vmatmul.mubr.f32.gmra.mrb[0].mxu0 %v468
        %v1037 = vpop.f32.mrb[0].mxu0
        %v1038 = vadd.f32 0.0, %v1037
        %v1039 = vpop.f32.mrb[0].mxu0
        %1040 = vmatprep.mubr.f32.mxu0 0.0
        %1041 = vmatmul.mubr.f32.gmra.mrb[0].mxu0 %v471
        %v1042 = vpop.f32.mrb[0].mxu0
        %v1043 = vadd.f32 0.0, %v1042
        %v1044 = vpop.f32.mrb[0].mxu0
        %1045 = vdwg.mxu0
        %1047 = vrot.lane.b32.xlu0 %v1028, 1
        %v1048 = vpop.permute.xlu0 %1047
        %v1050 = vsel %vm571, 0.0, %v1048
        %v1051 = vadd.f32 %v1023, %v1050
        %1053 = vrot.lane.b32.xlu0 %v1033, 2
        %v1054 = vpop.permute.xlu0 %1053
        %v1056 = vsel %vm578, 0.0, %v1054
        %v1057 = vadd.f32 %v1051, %v1056
        %1059 = vrot.lane.b32.xlu0 %v1038, 3
        %v1060 = vpop.permute.xlu0 %1059
        %v1062 = vsel %vm585, 0.0, %v1060
        %v1063 = vadd.f32 %v1057, %v1062
        %1065 = vrot.lane.b32.xlu0 %v1043, 4
        %v1066 = vpop.permute.xlu0 %1065
        %v1068 = vsel %vm457, 0.0, %v1066
        %v1069 = vadd.f32 %v1063, %v1068
        %s1070 = scalar_lea.vmem %s440, 20
        %v1071 = vld [vmem:[%s1070] sm:$0xf]
        %v1073 = vsel %vm473, %v1071, 0
        %1075 = vmatprep.subr.mxu0 0.0
        %1076 = vmatpush1.msra.mxu0 %v1073
        %1077 = vmatprep.subr.mxu0 0.0
        %1078 = vmatpush1.msra.mxu0 0.0
        %1079 = vmatprep.subr.mxu0 0.0
        %1080 = vmatpush1.msra.mxu0 0.0
        %1081 = vmatprep.subr.mxu0 0.0
        %1082 = vmatpush1.msra.mxu0 0.0
        %1083 = vmatprep.subr.mxu0 0.0
        %1084 = vmatpush1.msra.mxu0 0.0
        %1085 = vmatprep.subr.mxu0 0.0
        %1086 = vmatpush1.msra.mxu0 0.0
        %1087 = vmatprep.subr.mxu0 0.0
        %1088 = vmatpush1.msra.mxu0 0.0
        %1089 = vmatprep.subr.mxu0 0.0
        %1090 = vmatpush1.msra.mxu0 0.0
        %1091 = vmatprep.subr.mxu0 0.0
        %1092 = vmatpush1.msra.mxu0 0.0
        %1093 = vmatprep.subr.mxu0 0.0
        %1094 = vmatpush1.msra.mxu0 0.0
        %1095 = vmatprep.subr.mxu0 0.0
        %1096 = vmatpush1.msra.mxu0 0.0
        %1097 = vmatprep.subr.mxu0 0.0
        %1098 = vmatpush1.msra.mxu0 0.0
        %1099 = vmatprep.subr.mxu0 0.0
        %1100 = vmatpush1.msra.mxu0 0.0
        %1101 = vmatprep.subr.mxu0 0.0
        %1102 = vmatpush1.msra.mxu0 0.0
        %1103 = vmatprep.subr.mxu0 0.0
        %1104 = vmatpush1.msra.mxu0 0.0
        %1105 = vmatprep.subr.mxu0 0.0
        %1106 = vmatpush1.msra.mxu0 0.0
        %1107 = vmatprep.subr.mxu0 0.0
        %1108 = vmatpush1.msra.mxu0 0.0
        %1109 = vmatprep.subr.mxu0 0.0
        %1110 = vmatpush1.msra.mxu0 0.0
        %1111 = vmatprep.subr.mxu0 0.0
        %1112 = vmatpush1.msra.mxu0 0.0
        %1113 = vmatprep.subr.mxu0 0.0
        %1114 = vmatpush1.msra.mxu0 0.0
        %1115 = vmatprep.subr.mxu0 0.0
        %1116 = vmatpush1.msra.mxu0 0.0
        %1117 = vmatprep.subr.mxu0 0.0
        %1118 = vmatpush1.msra.mxu0 0.0
        %1119 = vmatprep.subr.mxu0 0.0
        %1120 = vmatpush1.msra.mxu0 0.0
        %1121 = vmatprep.subr.mxu0 0.0
        %1122 = vmatpush1.msra.mxu0 0.0
        %1123 = vmatprep.subr.mxu0 0.0
        %1124 = vmatpush1.msra.mxu0 0.0
        %1125 = vmatprep.subr.mxu0 0.0
        %1126 = vmatpush1.msra.mxu0 0.0
        %1127 = vmatprep.subr.mxu0 0.0
        %1128 = vmatpush1.msra.mxu0 0.0
        %1129 = vmatprep.subr.mxu0 0.0
        %1130 = vmatpush1.msra.mxu0 0.0
        %1131 = vmatprep.subr.mxu0 0.0
        %1132 = vmatpush1.msra.mxu0 0.0
        %1133 = vmatprep.subr.mxu0 0.0
        %1134 = vmatpush1.msra.mxu0 0.0
        %1135 = vmatprep.subr.mxu0 0.0
        %1136 = vmatpush1.msra.mxu0 0.0
        %1137 = vmatprep.subr.mxu0 0.0
        %1138 = vmatpush1.msra.mxu0 0.0
        %1139 = vmatprep.mubr.f32.mxu0 0.0
        %1140 = vmatmul.mubr.f32.gmra.mrb[0].mxu0 %v459
        %v1141 = vpop.f32.mrb[0].mxu0
        %v1142 = vadd.f32 0.0, %v1141
        %v1143 = vpop.f32.mrb[0].mxu0
        %1144 = vmatprep.mubr.f32.mxu0 0.0
        %1145 = vmatmul.mubr.f32.gmra.mrb[0].mxu0 %v462
        %v1146 = vpop.f32.mrb[0].mxu0
        %v1147 = vadd.f32 0.0, %v1146
        %v1148 = vpop.f32.mrb[0].mxu0
        %1149 = vmatprep.mubr.f32.mxu0 0.0
        %1150 = vmatmul.mubr.f32.gmra.mrb[0].mxu0 %v465
        %v1151 = vpop.f32.mrb[0].mxu0
        %v1152 = vadd.f32 0.0, %v1151
        %v1153 = vpop.f32.mrb[0].mxu0
        %1154 = vmatprep.mubr.f32.mxu0 0.0
        %1155 = vmatmul.mubr.f32.gmra.mrb[0].mxu0 %v468
        %v1156 = vpop.f32.mrb[0].mxu0
        %v1157 = vadd.f32 0.0, %v1156
        %v1158 = vpop.f32.mrb[0].mxu0
        %1159 = vmatprep.mubr.f32.mxu0 0.0
        %1160 = vmatmul.mubr.f32.gmra.mrb[0].mxu0 %v471
        %v1161 = vpop.f32.mrb[0].mxu0
        %v1162 = vadd.f32 0.0, %v1161
        %v1163 = vpop.f32.mrb[0].mxu0
        %1164 = vdwg.mxu0
        %1166 = vrot.lane.b32.xlu0 %v1147, 1
        %v1167 = vpop.permute.xlu0 %1166
        %v1169 = vsel %vm571, 0.0, %v1167
        %v1170 = vadd.f32 %v1142, %v1169
        %1172 = vrot.lane.b32.xlu0 %v1152, 2
        %v1173 = vpop.permute.xlu0 %1172
        %v1175 = vsel %vm578, 0.0, %v1173
        %v1176 = vadd.f32 %v1170, %v1175
        %1178 = vrot.lane.b32.xlu0 %v1157, 3
        %v1179 = vpop.permute.xlu0 %1178
        %v1181 = vsel %vm585, 0.0, %v1179
        %v1182 = vadd.f32 %v1176, %v1181
        %1184 = vrot.lane.b32.xlu0 %v1162, 4
        %v1185 = vpop.permute.xlu0 %1184
        %v1187 = vsel %vm457, 0.0, %v1185
        %v1188 = vadd.f32 %v1182, %v1187
        %s1189 = scalar_lea.vmem %s440, 24
        %v1190 = vld [vmem:[%s1189] sm:$0xf]
        %v1192 = vsel %vm473, %v1190, 0
        %1194 = vmatprep.subr.mxu0 0.0
        %1195 = vmatpush1.msra.mxu0 %v1192
        %1196 = vmatprep.subr.mxu0 0.0
        %1197 = vmatpush1.msra.mxu0 0.0
        %1198 = vmatprep.subr.mxu0 0.0
        %1199 = vmatpush1.msra.mxu0 0.0
        %1200 = vmatprep.subr.mxu0 0.0
        %1201 = vmatpush1.msra.mxu0 0.0
        %1202 = vmatprep.subr.mxu0 0.0
        %1203 = vmatpush1.msra.mxu0 0.0
        %1204 = vmatprep.subr.mxu0 0.0
        %1205 = vmatpush1.msra.mxu0 0.0
        %1206 = vmatprep.subr.mxu0 0.0
        %1207 = vmatpush1.msra.mxu0 0.0
        %1208 = vmatprep.subr.mxu0 0.0
        %1209 = vmatpush1.msra.mxu0 0.0
        %1210 = vmatprep.subr.mxu0 0.0
        %1211 = vmatpush1.msra.mxu0 0.0
        %1212 = vmatprep.subr.mxu0 0.0
        %1213 = vmatpush1.msra.mxu0 0.0
        %1214 = vmatprep.subr.mxu0 0.0
        %1215 = vmatpush1.msra.mxu0 0.0
        %1216 = vmatprep.subr.mxu0 0.0
        %1217 = vmatpush1.msra.mxu0 0.0
        %1218 = vmatprep.subr.mxu0 0.0
        %1219 = vmatpush1.msra.mxu0 0.0
        %1220 = vmatprep.subr.mxu0 0.0
        %1221 = vmatpush1.msra.mxu0 0.0
        %1222 = vmatprep.subr.mxu0 0.0
        %1223 = vmatpush1.msra.mxu0 0.0
        %1224 = vmatprep.subr.mxu0 0.0
        %1225 = vmatpush1.msra.mxu0 0.0
        %1226 = vmatprep.subr.mxu0 0.0
        %1227 = vmatpush1.msra.mxu0 0.0
        %1228 = vmatprep.subr.mxu0 0.0
        %1229 = vmatpush1.msra.mxu0 0.0
        %1230 = vmatprep.subr.mxu0 0.0
        %1231 = vmatpush1.msra.mxu0 0.0
        %1232 = vmatprep.subr.mxu0 0.0
        %1233 = vmatpush1.msra.mxu0 0.0
        %1234 = vmatprep.subr.mxu0 0.0
        %1235 = vmatpush1.msra.mxu0 0.0
        %1236 = vmatprep.subr.mxu0 0.0
        %1237 = vmatpush1.msra.mxu0 0.0
        %1238 = vmatprep.subr.mxu0 0.0
        %1239 = vmatpush1.msra.mxu0 0.0
        %1240 = vmatprep.subr.mxu0 0.0
        %1241 = vmatpush1.msra.mxu0 0.0
        %1242 = vmatprep.subr.mxu0 0.0
        %1243 = vmatpush1.msra.mxu0 0.0
        %1244 = vmatprep.subr.mxu0 0.0
        %1245 = vmatpush1.msra.mxu0 0.0
        %1246 = vmatprep.subr.mxu0 0.0
        %1247 = vmatpush1.msra.mxu0 0.0
        %1248 = vmatprep.subr.mxu0 0.0
        %1249 = vmatpush1.msra.mxu0 0.0
        %1250 = vmatprep.subr.mxu0 0.0
        %1251 = vmatpush1.msra.mxu0 0.0
        %1252 = vmatprep.subr.mxu0 0.0
        %1253 = vmatpush1.msra.mxu0 0.0
        %1254 = vmatprep.subr.mxu0 0.0
        %1255 = vmatpush1.msra.mxu0 0.0
        %1256 = vmatprep.subr.mxu0 0.0
        %1257 = vmatpush1.msra.mxu0 0.0
        %1258 = vmatprep.mubr.f32.mxu0 0.0
        %1259 = vmatmul.mubr.f32.gmra.mrb[0].mxu0 %v459
        %v1260 = vpop.f32.mrb[0].mxu0
        %v1261 = vadd.f32 0.0, %v1260
        %v1262 = vpop.f32.mrb[0].mxu0
        %1263 = vmatprep.mubr.f32.mxu0 0.0
        %1264 = vmatmul.mubr.f32.gmra.mrb[0].mxu0 %v462
        %v1265 = vpop.f32.mrb[0].mxu0
        %v1266 = vadd.f32 0.0, %v1265
        %v1267 = vpop.f32.mrb[0].mxu0
        %1268 = vmatprep.mubr.f32.mxu0 0.0
        %1269 = vmatmul.mubr.f32.gmra.mrb[0].mxu0 %v465
        %v1270 = vpop.f32.mrb[0].mxu0
        %v1271 = vadd.f32 0.0, %v1270
        %v1272 = vpop.f32.mrb[0].mxu0
        %1273 = vmatprep.mubr.f32.mxu0 0.0
        %1274 = vmatmul.mubr.f32.gmra.mrb[0].mxu0 %v468
        %v1275 = vpop.f32.mrb[0].mxu0
        %v1276 = vadd.f32 0.0, %v1275
        %v1277 = vpop.f32.mrb[0].mxu0
        %1278 = vmatprep.mubr.f32.mxu0 0.0
        %1279 = vmatmul.mubr.f32.gmra.mrb[0].mxu0 %v471
        %v1280 = vpop.f32.mrb[0].mxu0
        %v1281 = vadd.f32 0.0, %v1280
        %v1282 = vpop.f32.mrb[0].mxu0
        %1283 = vdwg.mxu0
        %1285 = vrot.lane.b32.xlu0 %v1266, 1
        %v1286 = vpop.permute.xlu0 %1285
        %v1288 = vsel %vm571, 0.0, %v1286
        %v1289 = vadd.f32 %v1261, %v1288
        %1291 = vrot.lane.b32.xlu0 %v1271, 2
        %v1292 = vpop.permute.xlu0 %1291
        %v1294 = vsel %vm578, 0.0, %v1292
        %v1295 = vadd.f32 %v1289, %v1294
        %1297 = vrot.lane.b32.xlu0 %v1276, 3
        %v1298 = vpop.permute.xlu0 %1297
        %v1300 = vsel %vm585, 0.0, %v1298
        %v1301 = vadd.f32 %v1295, %v1300
        %1303 = vrot.lane.b32.xlu0 %v1281, 4
        %v1304 = vpop.permute.xlu0 %1303
        %v1306 = vsel %vm457, 0.0, %v1304
        %v1307 = vadd.f32 %v1301, %v1306
        %s1308 = scalar_lea.vmem %s440, 28
        %v1309 = vld [vmem:[%s1308] sm:$0xf]
        %v1311 = vsel %vm473, %v1309, 0
        %1313 = vmatprep.subr.mxu0 0.0
        %1314 = vmatpush1.msra.mxu0 %v1311
        %1315 = vmatprep.subr.mxu0 0.0
        %1316 = vmatpush1.msra.mxu0 0.0
        %1317 = vmatprep.subr.mxu0 0.0
        %1318 = vmatpush1.msra.mxu0 0.0
        %1319 = vmatprep.subr.mxu0 0.0
        %1320 = vmatpush1.msra.mxu0 0.0
        %1321 = vmatprep.subr.mxu0 0.0
        %1322 = vmatpush1.msra.mxu0 0.0
        %1323 = vmatprep.subr.mxu0 0.0
        %1324 = vmatpush1.msra.mxu0 0.0
        %1325 = vmatprep.subr.mxu0 0.0
        %1326 = vmatpush1.msra.mxu0 0.0
        %1327 = vmatprep.subr.mxu0 0.0
        %1328 = vmatpush1.msra.mxu0 0.0
        %1329 = vmatprep.subr.mxu0 0.0
        %1330 = vmatpush1.msra.mxu0 0.0
        %1331 = vmatprep.subr.mxu0 0.0
        %1332 = vmatpush1.msra.mxu0 0.0
        %1333 = vmatprep.subr.mxu0 0.0
        %1334 = vmatpush1.msra.mxu0 0.0
        %1335 = vmatprep.subr.mxu0 0.0
        %1336 = vmatpush1.msra.mxu0 0.0
        %1337 = vmatprep.subr.mxu0 0.0
        %1338 = vmatpush1.msra.mxu0 0.0
        %1339 = vmatprep.subr.mxu0 0.0
        %1340 = vmatpush1.msra.mxu0 0.0
        %1341 = vmatprep.subr.mxu0 0.0
        %1342 = vmatpush1.msra.mxu0 0.0
        %1343 = vmatprep.subr.mxu0 0.0
        %1344 = vmatpush1.msra.mxu0 0.0
        %1345 = vmatprep.subr.mxu0 0.0
        %1346 = vmatpush1.msra.mxu0 0.0
        %1347 = vmatprep.subr.mxu0 0.0
        %1348 = vmatpush1.msra.mxu0 0.0
        %1349 = vmatprep.subr.mxu0 0.0
        %1350 = vmatpush1.msra.mxu0 0.0
        %1351 = vmatprep.subr.mxu0 0.0
        %1352 = vmatpush1.msra.mxu0 0.0
        %1353 = vmatprep.subr.mxu0 0.0
        %1354 = vmatpush1.msra.mxu0 0.0
        %1355 = vmatprep.subr.mxu0 0.0
        %1356 = vmatpush1.msra.mxu0 0.0
        %1357 = vmatprep.subr.mxu0 0.0
        %1358 = vmatpush1.msra.mxu0 0.0
        %1359 = vmatprep.subr.mxu0 0.0
        %1360 = vmatpush1.msra.mxu0 0.0
        %1361 = vmatprep.subr.mxu0 0.0
        %1362 = vmatpush1.msra.mxu0 0.0
        %1363 = vmatprep.subr.mxu0 0.0
        %1364 = vmatpush1.msra.mxu0 0.0
        %1365 = vmatprep.subr.mxu0 0.0
        %1366 = vmatpush1.msra.mxu0 0.0
        %1367 = vmatprep.subr.mxu0 0.0
        %1368 = vmatpush1.msra.mxu0 0.0
        %1369 = vmatprep.subr.mxu0 0.0
        %1370 = vmatpush1.msra.mxu0 0.0
        %1371 = vmatprep.subr.mxu0 0.0
        %1372 = vmatpush1.msra.mxu0 0.0
        %1373 = vmatprep.subr.mxu0 0.0
        %1374 = vmatpush1.msra.mxu0 0.0
        %1375 = vmatprep.subr.mxu0 0.0
        %1376 = vmatpush1.msra.mxu0 0.0
        %1377 = vmatprep.mubr.f32.mxu0 0.0
        %1378 = vmatmul.mubr.f32.gmra.mrb[0].mxu0 %v459
        %v1379 = vpop.f32.mrb[0].mxu0
        %v1380 = vadd.f32 0.0, %v1379
        %v1381 = vpop.f32.mrb[0].mxu0
        %1382 = vmatprep.mubr.f32.mxu0 0.0
        %1383 = vmatmul.mubr.f32.gmra.mrb[0].mxu0 %v462
        %v1384 = vpop.f32.mrb[0].mxu0
        %v1385 = vadd.f32 0.0, %v1384
        %v1386 = vpop.f32.mrb[0].mxu0
        %1387 = vmatprep.mubr.f32.mxu0 0.0
        %1388 = vmatmul.mubr.f32.gmra.mrb[0].mxu0 %v465
        %v1389 = vpop.f32.mrb[0].mxu0
        %v1390 = vadd.f32 0.0, %v1389
        %v1391 = vpop.f32.mrb[0].mxu0
        %1392 = vmatprep.mubr.f32.mxu0 0.0
        %1393 = vmatmul.mubr.f32.gmra.mrb[0].mxu0 %v468
        %v1394 = vpop.f32.mrb[0].mxu0
        %v1395 = vadd.f32 0.0, %v1394
        %v1396 = vpop.f32.mrb[0].mxu0
        %1397 = vmatprep.mubr.f32.mxu0 0.0
        %1398 = vmatmul.mubr.f32.gmra.mrb[0].mxu0 %v471
        %v1399 = vpop.f32.mrb[0].mxu0
        %v1400 = vadd.f32 0.0, %v1399
        %v1401 = vpop.f32.mrb[0].mxu0
        %1402 = vdwg.mxu0
        %1404 = vrot.lane.b32.xlu0 %v1385, 1
        %v1405 = vpop.permute.xlu0 %1404
        %v1407 = vsel %vm571, 0.0, %v1405
        %v1408 = vadd.f32 %v1380, %v1407
        %1410 = vrot.lane.b32.xlu0 %v1390, 2
        %v1411 = vpop.permute.xlu0 %1410
        %v1413 = vsel %vm578, 0.0, %v1411
        %v1414 = vadd.f32 %v1408, %v1413
        %1416 = vrot.lane.b32.xlu0 %v1395, 3
        %v1417 = vpop.permute.xlu0 %1416
        %v1419 = vsel %vm585, 0.0, %v1417
        %v1420 = vadd.f32 %v1414, %v1419
        %1422 = vrot.lane.b32.xlu0 %v1400, 4
        %v1423 = vpop.permute.xlu0 %1422
        %v1425 = vsel %vm457, 0.0, %v1423
        %v1426 = vadd.f32 %v1420, %v1425
        %v1427 = vld [vmem:[%s4] sm:$0xff]
        %1429 = vset.pattern.permute.xlu0 0
        %1430 = vperm.xlu0 %1429, %v1427
        %v1431 = vpop.permute.xlu0 %1430
        %v1433 = vadd.f32 %v593, %v1431
        %v1434 = vadd.f32 %v712, %v1431
        %v1435 = vadd.f32 %v831, %v1431
        %v1436 = vadd.f32 %v950, %v1431
        %v1437 = vadd.f32 %v1069, %v1431
        %v1438 = vadd.f32 %v1188, %v1431
        %v1439 = vadd.f32 %v1307, %v1431
        %v1440 = vadd.f32 %v1426, %v1431
        %v1441 = vmax.f32 %v1433, 0.0
        %v1442 = vmax.f32 %v1434, 0.0
        %v1443 = vmax.f32 %v1435, 0.0
        %v1444 = vmax.f32 %v1436, 0.0
        %v1445 = vmax.f32 %v1437, 0.0
        %v1446 = vmax.f32 %v1438, 0.0
        %v1447 = vmax.f32 %v1439, 0.0
        %v1448 = vmax.f32 %v1440, 0.0
        %v1449 = vld [vmem:[%s449] sm:$0xff]
        %v1451 = vcombine.high %v1449, %v1449
        %v1453 = vunpack.c.l.s4 1966171168
        %v1454 = vunpack.c.0.s8 %v1453
        %v1455 = vlaneseq
        %v1456 = vshrl.u32 %v1455, 7
        %v1457 = vsub.s32 %v1454, %v1456
        %v1458 = vrot.slane %v1449, %v1457
        %v1460 = vunpack.c.l.s4 1966171168
        %v1461 = vunpack.c.0.s8 %v1460
        %v1462 = vlaneseq
        %v1463 = vshrl.u32 %v1462, 7
        %v1464 = vsub.s32 %v1461, %v1463
        %v1465 = vrot.slane %v1451, %v1464
        %v1466 = vcombine.high %v1458, %v1458
        %v1467 = vcombine.high %v1465, %v1465
        %v1469 = vunpack.c.l.s4 1966171168
        %v1470 = vunpack.c.0.s8 %v1469
        %v1471 = vlaneseq
        %v1472 = vshrl.u32 %v1471, 7
        %v1473 = vsub.s32 %v1470, %v1472
        %v1474 = vrot.slane %v1458, %v1473
        %v1476 = vunpack.c.l.s4 1966171168
        %v1477 = vunpack.c.0.s8 %v1476
        %v1478 = vlaneseq
        %v1479 = vshrl.u32 %v1478, 7
        %v1480 = vsub.s32 %v1477, %v1479
        %v1481 = vrot.slane %v1465, %v1480
        %v1483 = vunpack.c.l.s4 1966171168
        %v1484 = vunpack.c.0.s8 %v1483
        %v1485 = vlaneseq
        %v1486 = vshrl.u32 %v1485, 7
        %v1487 = vsub.s32 %v1484, %v1486
        %v1488 = vrot.slane %v1466, %v1487
        %v1490 = vunpack.c.l.s4 1966171168
        %v1491 = vunpack.c.0.s8 %v1490
        %v1492 = vlaneseq
        %v1493 = vshrl.u32 %v1492, 7
        %v1494 = vsub.s32 %v1491, %v1493
        %v1495 = vrot.slane %v1467, %v1494
        %v1496 = vcombine.high %v1474, %v1474
        %v1497 = vcombine.high %v1481, %v1481
        %v1498 = vcombine.high %v1488, %v1488
        %v1499 = vcombine.high %v1495, %v1495
        %v1500 = vld [vmem:[%s5] sm:$0xff]
        %v1501 = vlaneseq
        %v1502 = vshrl.u32 %v1501, 7
        %v1503 = vsub.s32 0, %v1502
        %v1504 = vrot.slane %v1474, %v1503
        %v1505 = vlaneseq
        %v1506 = vshrl.u32 %v1505, 7
        %v1507 = vsub.s32 0, %v1506
        %v1508 = vrot.slane %v1488, %v1507
        %v1509 = vlaneseq
        %v1510 = vshrl.u32 %v1509, 7
        %v1511 = vsub.s32 0, %v1510
        %v1512 = vrot.slane %v1496, %v1511
        %v1513 = vlaneseq
        %v1514 = vshrl.u32 %v1513, 7
        %v1515 = vsub.s32 0, %v1514
        %v1516 = vrot.slane %v1498, %v1515
        %v1517 = vlaneseq
        %v1518 = vshrl.u32 %v1517, 7
        %v1519 = vsub.s32 0, %v1518
        %v1520 = vrot.slane %v1481, %v1519
        %v1521 = vlaneseq
        %v1522 = vshrl.u32 %v1521, 7
        %v1523 = vsub.s32 0, %v1522
        %v1524 = vrot.slane %v1495, %v1523
        %v1525 = vlaneseq
        %v1526 = vshrl.u32 %v1525, 7
        %v1527 = vsub.s32 0, %v1526
        %v1528 = vrot.slane %v1497, %v1527
        %v1529 = vlaneseq
        %v1530 = vshrl.u32 %v1529, 7
        %v1531 = vsub.s32 0, %v1530
        %v1532 = vrot.slane %v1499, %v1531
        %v1541 = vmul.f32 %v1504, %v1500
        %v1542 = vmul.f32 %v1508, %v1500
        %v1543 = vmul.f32 %v1512, %v1500
        %v1544 = vmul.f32 %v1516, %v1500
        %v1545 = vmul.f32 %v1520, %v1500
        %v1546 = vmul.f32 %v1524, %v1500
        %v1547 = vmul.f32 %v1528, %v1500
        %v1548 = vmul.f32 %v1532, %v1500
        %v1549 = vld [vmem:[%s6] sm:$0xff]
        %v1550 = vadd.f32 %v1541, %v1549
        %v1551 = vadd.f32 %v1542, %v1549
        %v1552 = vadd.f32 %v1543, %v1549
        %v1553 = vadd.f32 %v1544, %v1549
        %v1554 = vadd.f32 %v1545, %v1549
        %v1555 = vadd.f32 %v1546, %v1549
        %v1556 = vadd.f32 %v1547, %v1549
        %v1557 = vadd.f32 %v1548, %v1549
        %v1558 = vxor.u32 %v1550, 2147483648
        %v1559 = vxor.u32 %v1551, 2147483648
        %v1560 = vxor.u32 %v1552, 2147483648
        %v1561 = vxor.u32 %v1553, 2147483648
        %v1562 = vxor.u32 %v1554, 2147483648
        %v1563 = vxor.u32 %v1555, 2147483648
        %v1564 = vxor.u32 %v1556, 2147483648
        %v1565 = vxor.u32 %v1557, 2147483648
        %v1566 = vmul.f32 %v1558, 1.442695
        %v1567 = vpow.pop %v1566
        %v1568 = vmul.f32 %v1559, 1.442695
        %v1569 = vpow.pop %v1568
        %v1570 = vmul.f32 %v1560, 1.442695
        %v1571 = vpow.pop %v1570
        %v1572 = vmul.f32 %v1561, 1.442695
        %v1573 = vpow.pop %v1572
        %v1574 = vmul.f32 %v1562, 1.442695
        %v1575 = vpow.pop %v1574
        %v1576 = vmul.f32 %v1563, 1.442695
        %v1577 = vpow.pop %v1576
        %v1578 = vmul.f32 %v1564, 1.442695
        %v1579 = vpow.pop %v1578
        %v1580 = vmul.f32 %v1565, 1.442695
        %v1581 = vpow.pop %v1580
        %v1582 = vadd.f32 %v1567, 1.0
        %v1583 = vadd.f32 %v1569, 1.0
        %v1584 = vadd.f32 %v1571, 1.0
        %v1585 = vadd.f32 %v1573, 1.0
        %v1586 = vadd.f32 %v1575, 1.0
        %v1587 = vadd.f32 %v1577, 1.0
        %v1588 = vadd.f32 %v1579, 1.0
        %v1589 = vadd.f32 %v1581, 1.0
        %v1590 = vrcp.pop %v1582
        %v1591 = vmul.f32 1.0, %v1590
        %v1592 = vrcp.pop %v1583
        %v1593 = vmul.f32 1.0, %v1592
        %v1594 = vrcp.pop %v1584
        %v1595 = vmul.f32 1.0, %v1594
        %v1596 = vrcp.pop %v1585
        %v1597 = vmul.f32 1.0, %v1596
        %v1598 = vrcp.pop %v1586
        %v1599 = vmul.f32 1.0, %v1598
        %v1600 = vrcp.pop %v1587
        %v1601 = vmul.f32 1.0, %v1600
        %v1602 = vrcp.pop %v1588
        %v1603 = vmul.f32 1.0, %v1602
        %v1604 = vrcp.pop %v1589
        %v1605 = vmul.f32 1.0, %v1604
        %v1606 = vld [vmem:[%s445] sm:$0xff]
        %v1607 = vmin.f32 %v1606, 1.0
        %s1608 = sld [smem:[#allocation4]]
        %v1609 = vstv %s1608
        %v1610 = vmul.f32 %v1609, %v1607
        %s1611 = sld [smem:[#allocation4 + $0x1]]
        %1613 = vrot.lane.b32.xlu0 %v1607, 1
        %v1614 = vpop.permute.xlu0 %1613
        %v1616 = vsel %vm571, 0.0, %v1614
        %v1617 = vstv %s1611
        %v1618 = vmul.f32 %v1617, %v1616
        %v1619 = vadd.f32 %v1610, %v1618
        %s1620 = sld [smem:[#allocation4 + $0x2]]
        %1621 = vrot.lane.b32.xlu0 %v1607, 2
        %v1622 = vpop.permute.xlu0 %1621
        %v1624 = vsel %vm578, 0.0, %v1622
        %v1625 = vstv %s1620
        %v1626 = vmul.f32 %v1625, %v1624
        %v1627 = vadd.f32 %v1619, %v1626
        %s1628 = sld [smem:[#allocation4 + $0x3]]
        %1629 = vrot.lane.b32.xlu0 %v1607, 3
        %v1630 = vpop.permute.xlu0 %1629
        %v1632 = vsel %vm585, 0.0, %v1630
        %v1633 = vstv %s1628
        %v1634 = vmul.f32 %v1633, %v1632
        %v1635 = vadd.f32 %v1627, %v1634
        %s1636 = sld [smem:[#allocation4 + $0x4]]
        %1637 = vrot.lane.b32.xlu0 %v1607, 4
        %v1638 = vpop.permute.xlu0 %1637
        %v1640 = vsel %vm457, 0.0, %v1638
        %v1641 = vstv %s1636
        %v1642 = vmul.f32 %v1641, %v1640
        %v1643 = vadd.f32 %v1635, %v1642
        %s1644 = sld [smem:[#allocation4 + $0x5]]
        %1645 = vrot.lane.b32.xlu0 %v1607, 5
        %v1646 = vpop.permute.xlu0 %1645
        %vm1648 = vcmask 39936
        %v1649 = vsel %vm1648, 0.0, %v1646
        %v1650 = vstv %s1644
        %v1651 = vmul.f32 %v1650, %v1649
        %v1652 = vadd.f32 %v1643, %v1651
        %s1653 = sld [smem:[#allocation4 + $0x6]]
        %1654 = vrot.lane.b32.xlu0 %v1607, 6
        %v1655 = vpop.permute.xlu0 %1654
        %vm1657 = vcmask 48128
        %v1658 = vsel %vm1657, 0.0, %v1655
        %v1659 = vstv %s1653
        %v1660 = vmul.f32 %v1659, %v1658
        %v1661 = vadd.f32 %v1652, %v1660
        %s1662 = sld [smem:[#allocation4 + $0x7]]
        %1663 = vrot.lane.b32.xlu0 %v1607, 7
        %v1664 = vpop.permute.xlu0 %1663
        %vm1666 = vcmask 56320
        %v1667 = vsel %vm1666, 0.0, %v1664
        %v1668 = vstv %s1662
        %v1669 = vmul.f32 %v1668, %v1667
        %v1670 = vadd.f32 %v1661, %v1669
        %s1671 = sld [smem:[#allocation4 + $0x8]]
        %1672 = vrot.lane.b32.xlu0 %v1607, 8
        %v1673 = vpop.permute.xlu0 %1672
        %vm1675 = vcmask 64512
        %v1676 = vsel %vm1675, 0.0, %v1673
        %v1677 = vstv %s1671
        %v1678 = vmul.f32 %v1677, %v1676
        %v1679 = vadd.f32 %v1670, %v1678
        %s1680 = sld [smem:[#allocation4 + $0x9]]
        %1681 = vrot.lane.b32.xlu0 %v1607, 9
        %v1682 = vpop.permute.xlu0 %1681
        %vm1684 = vcmask 72704
        %v1685 = vsel %vm1684, 0.0, %v1682
        %v1686 = vstv %s1680
        %v1687 = vmul.f32 %v1686, %v1685
        %v1688 = vadd.f32 %v1679, %v1687
        %s1689 = sld [smem:[#allocation4 + $0xa]]
        %1690 = vrot.lane.b32.xlu0 %v1607, 10
        %v1691 = vpop.permute.xlu0 %1690
        %vm1693 = vcmask 80896
        %v1694 = vsel %vm1693, 0.0, %v1691
        %v1695 = vstv %s1689
        %v1696 = vmul.f32 %v1695, %v1694
        %v1697 = vadd.f32 %v1688, %v1696
        %s1698 = sld [smem:[#allocation4 + $0xb]]
        %1699 = vrot.lane.b32.xlu0 %v1607, 11
        %v1700 = vpop.permute.xlu0 %1699
        %vm1702 = vcmask 89088
        %v1703 = vsel %vm1702, 0.0, %v1700
        %v1704 = vstv %s1698
        %v1705 = vmul.f32 %v1704, %v1703
        %v1706 = vadd.f32 %v1697, %v1705
        %s1707 = sld [smem:[#allocation4 + $0xc]]
        %1708 = vrot.lane.b32.xlu0 %v1607, 12
        %v1709 = vpop.permute.xlu0 %1708
        %vm1711 = vcmask 97280
        %v1712 = vsel %vm1711, 0.0, %v1709
        %v1713 = vstv %s1707
        %v1714 = vmul.f32 %v1713, %v1712
        %v1715 = vadd.f32 %v1706, %v1714
        %s1716 = sld [smem:[#allocation4 + $0xd]]
        %1717 = vrot.lane.b32.xlu0 %v1607, 13
        %v1718 = vpop.permute.xlu0 %1717
        %vm1720 = vcmask 105472
        %v1721 = vsel %vm1720, 0.0, %v1718
        %v1722 = vstv %s1716
        %v1723 = vmul.f32 %v1722, %v1721
        %v1724 = vadd.f32 %v1715, %v1723
        %s1725 = sld [smem:[#allocation4 + $0xe]]
        %1726 = vrot.lane.b32.xlu0 %v1607, 14
        %v1727 = vpop.permute.xlu0 %1726
        %vm1729 = vcmask 113664
        %v1730 = vsel %vm1729, 0.0, %v1727
        %v1731 = vstv %s1725
        %v1732 = vmul.f32 %v1731, %v1730
        %v1733 = vadd.f32 %v1724, %v1732
        %s1734 = sld [smem:[#allocation4 + $0xf]]
        %1735 = vrot.lane.b32.xlu0 %v1607, 15
        %v1736 = vpop.permute.xlu0 %1735
        %vm1738 = vcmask 121856
        %v1739 = vsel %vm1738, 0.0, %v1736
        %v1740 = vstv %s1734
        %v1741 = vmul.f32 %v1740, %v1739
        %v1742 = vadd.f32 %v1733, %v1741
        %s1743 = sld [smem:[#allocation4 + $0x10]]
        %1744 = vrot.lane.b32.xlu0 %v1607, 16
        %v1745 = vpop.permute.xlu0 %1744
        %vm1747 = vcmask 130048
        %v1748 = vsel %vm1747, 0.0, %v1745
        %v1749 = vstv %s1743
        %v1750 = vmul.f32 %v1749, %v1748
        %v1751 = vadd.f32 %v1742, %v1750
        %s1752 = sld [smem:[#allocation4 + $0x11]]
        %1753 = vrot.lane.b32.xlu0 %v1607, 17
        %v1754 = vpop.permute.xlu0 %1753
        %vm1756 = vcmask 138240
        %v1757 = vsel %vm1756, 0.0, %v1754
        %v1758 = vstv %s1752
        %v1759 = vmul.f32 %v1758, %v1757
        %v1760 = vadd.f32 %v1751, %v1759
        %s1761 = sld [smem:[#allocation4 + $0x12]]
        %1762 = vrot.lane.b32.xlu0 %v1607, 18
        %v1763 = vpop.permute.xlu0 %1762
        %vm1765 = vcmask 146432
        %v1766 = vsel %vm1765, 0.0, %v1763
        %v1767 = vstv %s1761
        %v1768 = vmul.f32 %v1767, %v1766
        %v1769 = vadd.f32 %v1760, %v1768
        %s1770 = sld [smem:[#allocation4 + $0x13]]
        %1771 = vrot.lane.b32.xlu0 %v1607, 19
        %v1772 = vpop.permute.xlu0 %1771
        %vm1774 = vcmask 154624
        %v1775 = vsel %vm1774, 0.0, %v1772
        %v1776 = vstv %s1770
        %v1777 = vmul.f32 %v1776, %v1775
        %v1778 = vadd.f32 %v1769, %v1777
        %s1779 = sld [smem:[#allocation4 + $0x14]]
        %1780 = vrot.lane.b32.xlu0 %v1607, 20
        %v1781 = vpop.permute.xlu0 %1780
        %vm1783 = vcmask 162816
        %v1784 = vsel %vm1783, 0.0, %v1781
        %v1785 = vstv %s1779
        %v1786 = vmul.f32 %v1785, %v1784
        %v1787 = vadd.f32 %v1778, %v1786
        %s1788 = sld [smem:[#allocation4 + $0x15]]
        %1789 = vrot.lane.b32.xlu0 %v1607, 21
        %v1790 = vpop.permute.xlu0 %1789
        %vm1792 = vcmask 171008
        %v1793 = vsel %vm1792, 0.0, %v1790
        %v1794 = vstv %s1788
        %v1795 = vmul.f32 %v1794, %v1793
        %v1796 = vadd.f32 %v1787, %v1795
        %s1797 = sld [smem:[#allocation4 + $0x16]]
        %1798 = vrot.lane.b32.xlu0 %v1607, 22
        %v1799 = vpop.permute.xlu0 %1798
        %vm1801 = vcmask 179200
        %v1802 = vsel %vm1801, 0.0, %v1799
        %v1803 = vstv %s1797
        %v1804 = vmul.f32 %v1803, %v1802
        %v1805 = vadd.f32 %v1796, %v1804
        %s1806 = sld [smem:[#allocation4 + $0x17]]
        %1807 = vrot.lane.b32.xlu0 %v1607, 23
        %v1808 = vpop.permute.xlu0 %1807
        %vm1810 = vcmask 187392
        %v1811 = vsel %vm1810, 0.0, %v1808
        %v1812 = vstv %s1806
        %v1813 = vmul.f32 %v1812, %v1811
        %v1814 = vadd.f32 %v1805, %v1813
        %s1815 = sld [smem:[#allocation4 + $0x18]]
        %1816 = vrot.lane.b32.xlu0 %v1607, 24
        %v1817 = vpop.permute.xlu0 %1816
        %vm1819 = vcmask 195584
        %v1820 = vsel %vm1819, 0.0, %v1817
        %v1821 = vstv %s1815
        %v1822 = vmul.f32 %v1821, %v1820
        %v1823 = vadd.f32 %v1814, %v1822
        %s1824 = sld [smem:[#allocation4 + $0x19]]
        %1825 = vrot.lane.b32.xlu0 %v1607, 25
        %v1826 = vpop.permute.xlu0 %1825
        %vm1828 = vcmask 203776
        %v1829 = vsel %vm1828, 0.0, %v1826
        %v1830 = vstv %s1824
        %v1831 = vmul.f32 %v1830, %v1829
        %v1832 = vadd.f32 %v1823, %v1831
        %s1833 = sld [smem:[#allocation4 + $0x1a]]
        %1834 = vrot.lane.b32.xlu0 %v1607, 26
        %v1835 = vpop.permute.xlu0 %1834
        %vm1837 = vcmask 211968
        %v1838 = vsel %vm1837, 0.0, %v1835
        %v1839 = vstv %s1833
        %v1840 = vmul.f32 %v1839, %v1838
        %v1841 = vadd.f32 %v1832, %v1840
        %s1842 = sld [smem:[#allocation4 + $0x1b]]
        %1843 = vrot.lane.b32.xlu0 %v1607, 27
        %v1844 = vpop.permute.xlu0 %1843
        %vm1846 = vcmask 220160
        %v1847 = vsel %vm1846, 0.0, %v1844
        %v1848 = vstv %s1842
        %v1849 = vmul.f32 %v1848, %v1847
        %v1850 = vadd.f32 %v1841, %v1849
        %s1851 = sld [smem:[#allocation4 + $0x1c]]
        %1852 = vrot.lane.b32.xlu0 %v1607, 28
        %v1853 = vpop.permute.xlu0 %1852
        %vm1855 = vcmask 228352
        %v1856 = vsel %vm1855, 0.0, %v1853
        %v1857 = vstv %s1851
        %v1858 = vmul.f32 %v1857, %v1856
        %v1859 = vadd.f32 %v1850, %v1858
        %s1860 = sld [smem:[#allocation4 + $0x1d]]
        %1861 = vrot.lane.b32.xlu0 %v1607, 29
        %v1862 = vpop.permute.xlu0 %1861
        %vm1864 = vcmask 236544
        %v1865 = vsel %vm1864, 0.0, %v1862
        %v1866 = vstv %s1860
        %v1867 = vmul.f32 %v1866, %v1865
        %v1868 = vadd.f32 %v1859, %v1867
        %s1869 = sld [smem:[#allocation2]]
        %v1870 = vstv %s1869
        %v1871 = vadd.f32 %v1868, %v1870
        %v1872 = vmax.f32 %v1871, 0.0
        %v1874 = vcombine.high %v1872, %v1872
        %v1876 = vunpack.c.l.s4 1966171168
        %v1877 = vunpack.c.0.s8 %v1876
        %v1878 = vlaneseq
        %v1879 = vshrl.u32 %v1878, 7
        %v1880 = vsub.s32 %v1877, %v1879
        %v1881 = vrot.slane %v1872, %v1880
        %v1883 = vunpack.c.l.s4 1966171168
        %v1884 = vunpack.c.0.s8 %v1883
        %v1885 = vlaneseq
        %v1886 = vshrl.u32 %v1885, 7
        %v1887 = vsub.s32 %v1884, %v1886
        %v1888 = vrot.slane %v1874, %v1887
        %v1889 = vcombine.high %v1881, %v1881
        %v1890 = vcombine.high %v1888, %v1888
        %v1892 = vunpack.c.l.s4 1966171168
        %v1893 = vunpack.c.0.s8 %v1892
        %v1894 = vlaneseq
        %v1895 = vshrl.u32 %v1894, 7
        %v1896 = vsub.s32 %v1893, %v1895
        %v1897 = vrot.slane %v1881, %v1896
        %v1899 = vunpack.c.l.s4 1966171168
        %v1900 = vunpack.c.0.s8 %v1899
        %v1901 = vlaneseq
        %v1902 = vshrl.u32 %v1901, 7
        %v1903 = vsub.s32 %v1900, %v1902
        %v1904 = vrot.slane %v1888, %v1903
        %v1906 = vunpack.c.l.s4 1966171168
        %v1907 = vunpack.c.0.s8 %v1906
        %v1908 = vlaneseq
        %v1909 = vshrl.u32 %v1908, 7
        %v1910 = vsub.s32 %v1907, %v1909
        %v1911 = vrot.slane %v1889, %v1910
        %v1913 = vunpack.c.l.s4 1966171168
        %v1914 = vunpack.c.0.s8 %v1913
        %v1915 = vlaneseq
        %v1916 = vshrl.u32 %v1915, 7
        %v1917 = vsub.s32 %v1914, %v1916
        %v1918 = vrot.slane %v1890, %v1917
        %v1919 = vcombine.high %v1897, %v1897
        %v1920 = vcombine.high %v1904, %v1904
        %v1921 = vcombine.high %v1911, %v1911
        %v1922 = vcombine.high %v1918, %v1918
        %1924 = vset.pattern.permute.xlu0 0
        %1925 = vperm.xlu0 %1924, %v1591
        %v1926 = vpop.permute.xlu0 %1925
        %1929 = vset.pattern.permute.xlu0 0
        %1930 = vperm.xlu0 %1929, %v1593
        %v1931 = vpop.permute.xlu0 %1930
        %1934 = vset.pattern.permute.xlu0 0
        %1935 = vperm.xlu0 %1934, %v1595
        %v1936 = vpop.permute.xlu0 %1935
        %1939 = vset.pattern.permute.xlu0 0
        %1940 = vperm.xlu0 %1939, %v1597
        %v1941 = vpop.permute.xlu0 %1940
        %1944 = vset.pattern.permute.xlu0 0
        %1945 = vperm.xlu0 %1944, %v1599
        %v1946 = vpop.permute.xlu0 %1945
        %1949 = vset.pattern.permute.xlu0 0
        %1950 = vperm.xlu0 %1949, %v1601
        %v1951 = vpop.permute.xlu0 %1950
        %1954 = vset.pattern.permute.xlu0 0
        %1955 = vperm.xlu0 %1954, %v1603
        %v1956 = vpop.permute.xlu0 %1955
        %1959 = vset.pattern.permute.xlu0 0
        %1960 = vperm.xlu0 %1959, %v1605
        %v1961 = vpop.permute.xlu0 %1960
        %v1963 = vlaneseq
        %v1964 = vshrl.u32 %v1963, 7
        %v1965 = vsub.s32 0, %v1964
        %v1966 = vrot.slane %v1897, %v1965
        %v1967 = vlaneseq
        %v1968 = vshrl.u32 %v1967, 7
        %v1969 = vsub.s32 0, %v1968
        %v1970 = vrot.slane %v1911, %v1969
        %v1971 = vlaneseq
        %v1972 = vshrl.u32 %v1971, 7
        %v1973 = vsub.s32 0, %v1972
        %v1974 = vrot.slane %v1919, %v1973
        %v1975 = vlaneseq
        %v1976 = vshrl.u32 %v1975, 7
        %v1977 = vsub.s32 0, %v1976
        %v1978 = vrot.slane %v1921, %v1977
        %v1979 = vlaneseq
        %v1980 = vshrl.u32 %v1979, 7
        %v1981 = vsub.s32 0, %v1980
        %v1982 = vrot.slane %v1904, %v1981
        %v1983 = vlaneseq
        %v1984 = vshrl.u32 %v1983, 7
        %v1985 = vsub.s32 0, %v1984
        %v1986 = vrot.slane %v1918, %v1985
        %v1987 = vlaneseq
        %v1988 = vshrl.u32 %v1987, 7
        %v1989 = vsub.s32 0, %v1988
        %v1990 = vrot.slane %v1920, %v1989
        %v1991 = vlaneseq
        %v1992 = vshrl.u32 %v1991, 7
        %v1993 = vsub.s32 0, %v1992
        %v1994 = vrot.slane %v1922, %v1993
        %v2003 = vmul.f32 %v1926, %v1966
        %v2004 = vmul.f32 %v1931, %v1970
        %v2005 = vmul.f32 %v1936, %v1974
        %v2006 = vmul.f32 %v1941, %v1978
        %v2007 = vmul.f32 %v1946, %v1982
        %v2008 = vmul.f32 %v1951, %v1986
        %v2009 = vmul.f32 %v1956, %v1990
        %v2010 = vmul.f32 %v1961, %v1994
        %s2011 = sld [smem:[#allocation7]]
        %v2012 = vstv %s2011
        %v2013 = vmul.f32 %v2012, %v2003
        %v2014 = vmul.f32 %v2012, %v2004
        %v2015 = vmul.f32 %v2012, %v2005
        %v2016 = vmul.f32 %v2012, %v2006
        %v2017 = vmul.f32 %v2012, %v2007
        %v2018 = vmul.f32 %v2012, %v2008
        %v2019 = vmul.f32 %v2012, %v2009
        %v2020 = vmul.f32 %v2012, %v2010
        %s2021 = sld [smem:[#allocation7 + $0x1]]
        %2030 = vrot.lane.b32.xlu0 %v2003, 1
        %v2031 = vpop.permute.xlu0 %2030
        %2032 = vrot.lane.b32.xlu0 %v2004, 1
        %v2033 = vpop.permute.xlu0 %2032
        %2034 = vrot.lane.b32.xlu0 %v2005, 1
        %v2035 = vpop.permute.xlu0 %2034
        %2036 = vrot.lane.b32.xlu0 %v2006, 1
        %v2037 = vpop.permute.xlu0 %2036
        %2038 = vrot.lane.b32.xlu0 %v2007, 1
        %v2039 = vpop.permute.xlu0 %2038
        %2040 = vrot.lane.b32.xlu0 %v2008, 1
        %v2041 = vpop.permute.xlu0 %2040
        %2042 = vrot.lane.b32.xlu0 %v2009, 1
        %v2043 = vpop.permute.xlu0 %2042
        %2044 = vrot.lane.b32.xlu0 %v2010, 1
        %v2045 = vpop.permute.xlu0 %2044
        %v2054 = vsel %vm571, 0.0, %v2031
        %v2055 = vsel %vm571, 0.0, %v2033
        %v2056 = vsel %vm571, 0.0, %v2035
        %v2057 = vsel %vm571, 0.0, %v2037
        %v2058 = vsel %vm571, 0.0, %v2039
        %v2059 = vsel %vm571, 0.0, %v2041
        %v2060 = vsel %vm571, 0.0, %v2043
        %v2061 = vsel %vm571, 0.0, %v2045
        %v2062 = vstv %s2021
        %v2063 = vmul.f32 %v2062, %v2054
        %v2064 = vmul.f32 %v2062, %v2055
        %v2065 = vmul.f32 %v2062, %v2056
        %v2066 = vmul.f32 %v2062, %v2057
        %v2067 = vmul.f32 %v2062, %v2058
        %v2068 = vmul.f32 %v2062, %v2059
        %v2069 = vmul.f32 %v2062, %v2060
        %v2070 = vmul.f32 %v2062, %v2061
        %v2071 = vadd.f32 %v2013, %v2063
        %v2072 = vadd.f32 %v2014, %v2064
        %v2073 = vadd.f32 %v2015, %v2065
        %v2074 = vadd.f32 %v2016, %v2066
        %v2075 = vadd.f32 %v2017, %v2067
        %v2076 = vadd.f32 %v2018, %v2068
        %v2077 = vadd.f32 %v2019, %v2069
        %v2078 = vadd.f32 %v2020, %v2070
        %s2079 = sld [smem:[#allocation7 + $0x2]]
        %2080 = vrot.lane.b32.xlu0 %v2003, 2
        %v2081 = vpop.permute.xlu0 %2080
        %2082 = vrot.lane.b32.xlu0 %v2004, 2
        %v2083 = vpop.permute.xlu0 %2082
        %2084 = vrot.lane.b32.xlu0 %v2005, 2
        %v2085 = vpop.permute.xlu0 %2084
        %2086 = vrot.lane.b32.xlu0 %v2006, 2
        %v2087 = vpop.permute.xlu0 %2086
        %2088 = vrot.lane.b32.xlu0 %v2007, 2
        %v2089 = vpop.permute.xlu0 %2088
        %2090 = vrot.lane.b32.xlu0 %v2008, 2
        %v2091 = vpop.permute.xlu0 %2090
        %2092 = vrot.lane.b32.xlu0 %v2009, 2
        %v2093 = vpop.permute.xlu0 %2092
        %2094 = vrot.lane.b32.xlu0 %v2010, 2
        %v2095 = vpop.permute.xlu0 %2094
        %v2104 = vsel %vm578, 0.0, %v2081
        %v2105 = vsel %vm578, 0.0, %v2083
        %v2106 = vsel %vm578, 0.0, %v2085
        %v2107 = vsel %vm578, 0.0, %v2087
        %v2108 = vsel %vm578, 0.0, %v2089
        %v2109 = vsel %vm578, 0.0, %v2091
        %v2110 = vsel %vm578, 0.0, %v2093
        %v2111 = vsel %vm578, 0.0, %v2095
        %v2112 = vstv %s2079
        %v2113 = vmul.f32 %v2112, %v2104
        %v2114 = vmul.f32 %v2112, %v2105
        %v2115 = vmul.f32 %v2112, %v2106
        %v2116 = vmul.f32 %v2112, %v2107
        %v2117 = vmul.f32 %v2112, %v2108
        %v2118 = vmul.f32 %v2112, %v2109
        %v2119 = vmul.f32 %v2112, %v2110
        %v2120 = vmul.f32 %v2112, %v2111
        %v2121 = vadd.f32 %v2071, %v2113
        %v2122 = vadd.f32 %v2072, %v2114
        %v2123 = vadd.f32 %v2073, %v2115
        %v2124 = vadd.f32 %v2074, %v2116
        %v2125 = vadd.f32 %v2075, %v2117
        %v2126 = vadd.f32 %v2076, %v2118
        %v2127 = vadd.f32 %v2077, %v2119
        %v2128 = vadd.f32 %v2078, %v2120
        %s2129 = sld [smem:[#allocation7 + $0x3]]
        %2130 = vrot.lane.b32.xlu0 %v2003, 3
        %v2131 = vpop.permute.xlu0 %2130
        %2132 = vrot.lane.b32.xlu0 %v2004, 3
        %v2133 = vpop.permute.xlu0 %2132
        %2134 = vrot.lane.b32.xlu0 %v2005, 3
        %v2135 = vpop.permute.xlu0 %2134
        %2136 = vrot.lane.b32.xlu0 %v2006, 3
        %v2137 = vpop.permute.xlu0 %2136
        %2138 = vrot.lane.b32.xlu0 %v2007, 3
        %v2139 = vpop.permute.xlu0 %2138
        %2140 = vrot.lane.b32.xlu0 %v2008, 3
        %v2141 = vpop.permute.xlu0 %2140
        %2142 = vrot.lane.b32.xlu0 %v2009, 3
        %v2143 = vpop.permute.xlu0 %2142
        %2144 = vrot.lane.b32.xlu0 %v2010, 3
        %v2145 = vpop.permute.xlu0 %2144
        %v2154 = vsel %vm585, 0.0, %v2131
        %v2155 = vsel %vm585, 0.0, %v2133
        %v2156 = vsel %vm585, 0.0, %v2135
        %v2157 = vsel %vm585, 0.0, %v2137
        %v2158 = vsel %vm585, 0.0, %v2139
        %v2159 = vsel %vm585, 0.0, %v2141
        %v2160 = vsel %vm585, 0.0, %v2143
        %v2161 = vsel %vm585, 0.0, %v2145
        %v2162 = vstv %s2129
        %v2163 = vmul.f32 %v2162, %v2154
        %v2164 = vmul.f32 %v2162, %v2155
        %v2165 = vmul.f32 %v2162, %v2156
        %v2166 = vmul.f32 %v2162, %v2157
        %v2167 = vmul.f32 %v2162, %v2158
        %v2168 = vmul.f32 %v2162, %v2159
        %v2169 = vmul.f32 %v2162, %v2160
        %v2170 = vmul.f32 %v2162, %v2161
        %v2171 = vadd.f32 %v2121, %v2163
        %v2172 = vadd.f32 %v2122, %v2164
        %v2173 = vadd.f32 %v2123, %v2165
        %v2174 = vadd.f32 %v2124, %v2166
        %v2175 = vadd.f32 %v2125, %v2167
        %v2176 = vadd.f32 %v2126, %v2168
        %v2177 = vadd.f32 %v2127, %v2169
        %v2178 = vadd.f32 %v2128, %v2170
        %s2179 = sld [smem:[#allocation7 + $0x4]]
        %2180 = vrot.lane.b32.xlu0 %v2003, 4
        %v2181 = vpop.permute.xlu0 %2180
        %2182 = vrot.lane.b32.xlu0 %v2004, 4
        %v2183 = vpop.permute.xlu0 %2182
        %2184 = vrot.lane.b32.xlu0 %v2005, 4
        %v2185 = vpop.permute.xlu0 %2184
        %2186 = vrot.lane.b32.xlu0 %v2006, 4
        %v2187 = vpop.permute.xlu0 %2186
        %2188 = vrot.lane.b32.xlu0 %v2007, 4
        %v2189 = vpop.permute.xlu0 %2188
        %2190 = vrot.lane.b32.xlu0 %v2008, 4
        %v2191 = vpop.permute.xlu0 %2190
        %2192 = vrot.lane.b32.xlu0 %v2009, 4
        %v2193 = vpop.permute.xlu0 %2192
        %2194 = vrot.lane.b32.xlu0 %v2010, 4
        %v2195 = vpop.permute.xlu0 %2194
        %v2204 = vsel %vm457, 0.0, %v2181
        %v2205 = vsel %vm457, 0.0, %v2183
        %v2206 = vsel %vm457, 0.0, %v2185
        %v2207 = vsel %vm457, 0.0, %v2187
        %v2208 = vsel %vm457, 0.0, %v2189
        %v2209 = vsel %vm457, 0.0, %v2191
        %v2210 = vsel %vm457, 0.0, %v2193
        %v2211 = vsel %vm457, 0.0, %v2195
        %v2212 = vstv %s2179
        %v2213 = vmul.f32 %v2212, %v2204
        %v2214 = vmul.f32 %v2212, %v2205
        %v2215 = vmul.f32 %v2212, %v2206
        %v2216 = vmul.f32 %v2212, %v2207
        %v2217 = vmul.f32 %v2212, %v2208
        %v2218 = vmul.f32 %v2212, %v2209
        %v2219 = vmul.f32 %v2212, %v2210
        %v2220 = vmul.f32 %v2212, %v2211
        %v2221 = vadd.f32 %v2171, %v2213
        %v2222 = vadd.f32 %v2172, %v2214
        %v2223 = vadd.f32 %v2173, %v2215
        %v2224 = vadd.f32 %v2174, %v2216
        %v2225 = vadd.f32 %v2175, %v2217
        %v2226 = vadd.f32 %v2176, %v2218
        %v2227 = vadd.f32 %v2177, %v2219
        %v2228 = vadd.f32 %v2178, %v2220
        %s2229 = sld [smem:[#allocation7 + $0x5]]
        %2230 = vrot.lane.b32.xlu0 %v2003, 5
        %v2231 = vpop.permute.xlu0 %2230
        %2232 = vrot.lane.b32.xlu0 %v2004, 5
        %v2233 = vpop.permute.xlu0 %2232
        %2234 = vrot.lane.b32.xlu0 %v2005, 5
        %v2235 = vpop.permute.xlu0 %2234
        %2236 = vrot.lane.b32.xlu0 %v2006, 5
        %v2237 = vpop.permute.xlu0 %2236
        %2238 = vrot.lane.b32.xlu0 %v2007, 5
        %v2239 = vpop.permute.xlu0 %2238
        %2240 = vrot.lane.b32.xlu0 %v2008, 5
        %v2241 = vpop.permute.xlu0 %2240
        %2242 = vrot.lane.b32.xlu0 %v2009, 5
        %v2243 = vpop.permute.xlu0 %2242
        %2244 = vrot.lane.b32.xlu0 %v2010, 5
        %v2245 = vpop.permute.xlu0 %2244
        %v2254 = vsel %vm1648, 0.0, %v2231
        %v2255 = vsel %vm1648, 0.0, %v2233
        %v2256 = vsel %vm1648, 0.0, %v2235
        %v2257 = vsel %vm1648, 0.0, %v2237
        %v2258 = vsel %vm1648, 0.0, %v2239
        %v2259 = vsel %vm1648, 0.0, %v2241
        %v2260 = vsel %vm1648, 0.0, %v2243
        %v2261 = vsel %vm1648, 0.0, %v2245
        %v2262 = vstv %s2229
        %v2263 = vmul.f32 %v2262, %v2254
        %v2264 = vmul.f32 %v2262, %v2255
        %v2265 = vmul.f32 %v2262, %v2256
        %v2266 = vmul.f32 %v2262, %v2257
        %v2267 = vmul.f32 %v2262, %v2258
        %v2268 = vmul.f32 %v2262, %v2259
        %v2269 = vmul.f32 %v2262, %v2260
        %v2270 = vmul.f32 %v2262, %v2261
        %v2271 = vadd.f32 %v2221, %v2263
        %v2272 = vadd.f32 %v2222, %v2264
        %v2273 = vadd.f32 %v2223, %v2265
        %v2274 = vadd.f32 %v2224, %v2266
        %v2275 = vadd.f32 %v2225, %v2267
        %v2276 = vadd.f32 %v2226, %v2268
        %v2277 = vadd.f32 %v2227, %v2269
        %v2278 = vadd.f32 %v2228, %v2270
        %s2279 = sld [smem:[#allocation7 + $0x6]]
        %2280 = vrot.lane.b32.xlu0 %v2003, 6
        %v2281 = vpop.permute.xlu0 %2280
        %2282 = vrot.lane.b32.xlu0 %v2004, 6
        %v2283 = vpop.permute.xlu0 %2282
        %2284 = vrot.lane.b32.xlu0 %v2005, 6
        %v2285 = vpop.permute.xlu0 %2284
        %2286 = vrot.lane.b32.xlu0 %v2006, 6
        %v2287 = vpop.permute.xlu0 %2286
        %2288 = vrot.lane.b32.xlu0 %v2007, 6
        %v2289 = vpop.permute.xlu0 %2288
        %2290 = vrot.lane.b32.xlu0 %v2008, 6
        %v2291 = vpop.permute.xlu0 %2290
        %2292 = vrot.lane.b32.xlu0 %v2009, 6
        %v2293 = vpop.permute.xlu0 %2292
        %2294 = vrot.lane.b32.xlu0 %v2010, 6
        %v2295 = vpop.permute.xlu0 %2294
        %v2304 = vsel %vm1657, 0.0, %v2281
        %v2305 = vsel %vm1657, 0.0, %v2283
        %v2306 = vsel %vm1657, 0.0, %v2285
        %v2307 = vsel %vm1657, 0.0, %v2287
        %v2308 = vsel %vm1657, 0.0, %v2289
        %v2309 = vsel %vm1657, 0.0, %v2291
        %v2310 = vsel %vm1657, 0.0, %v2293
        %v2311 = vsel %vm1657, 0.0, %v2295
        %v2312 = vstv %s2279
        %v2313 = vmul.f32 %v2312, %v2304
        %v2314 = vmul.f32 %v2312, %v2305
        %v2315 = vmul.f32 %v2312, %v2306
        %v2316 = vmul.f32 %v2312, %v2307
        %v2317 = vmul.f32 %v2312, %v2308
        %v2318 = vmul.f32 %v2312, %v2309
        %v2319 = vmul.f32 %v2312, %v2310
        %v2320 = vmul.f32 %v2312, %v2311
        %v2321 = vadd.f32 %v2271, %v2313
        %v2322 = vadd.f32 %v2272, %v2314
        %v2323 = vadd.f32 %v2273, %v2315
        %v2324 = vadd.f32 %v2274, %v2316
        %v2325 = vadd.f32 %v2275, %v2317
        %v2326 = vadd.f32 %v2276, %v2318
        %v2327 = vadd.f32 %v2277, %v2319
        %v2328 = vadd.f32 %v2278, %v2320
        %s2329 = sld [smem:[#allocation7 + $0x7]]
        %2330 = vrot.lane.b32.xlu0 %v2003, 7
        %v2331 = vpop.permute.xlu0 %2330
        %2332 = vrot.lane.b32.xlu0 %v2004, 7
        %v2333 = vpop.permute.xlu0 %2332
        %2334 = vrot.lane.b32.xlu0 %v2005, 7
        %v2335 = vpop.permute.xlu0 %2334
        %2336 = vrot.lane.b32.xlu0 %v2006, 7
        %v2337 = vpop.permute.xlu0 %2336
        %2338 = vrot.lane.b32.xlu0 %v2007, 7
        %v2339 = vpop.permute.xlu0 %2338
        %2340 = vrot.lane.b32.xlu0 %v2008, 7
        %v2341 = vpop.permute.xlu0 %2340
        %2342 = vrot.lane.b32.xlu0 %v2009, 7
        %v2343 = vpop.permute.xlu0 %2342
        %2344 = vrot.lane.b32.xlu0 %v2010, 7
        %v2345 = vpop.permute.xlu0 %2344
        %v2354 = vsel %vm1666, 0.0, %v2331
        %v2355 = vsel %vm1666, 0.0, %v2333
        %v2356 = vsel %vm1666, 0.0, %v2335
        %v2357 = vsel %vm1666, 0.0, %v2337
        %v2358 = vsel %vm1666, 0.0, %v2339
        %v2359 = vsel %vm1666, 0.0, %v2341
        %v2360 = vsel %vm1666, 0.0, %v2343
        %v2361 = vsel %vm1666, 0.0, %v2345
        %v2362 = vstv %s2329
        %v2363 = vmul.f32 %v2362, %v2354
        %v2364 = vmul.f32 %v2362, %v2355
        %v2365 = vmul.f32 %v2362, %v2356
        %v2366 = vmul.f32 %v2362, %v2357
        %v2367 = vmul.f32 %v2362, %v2358
        %v2368 = vmul.f32 %v2362, %v2359
        %v2369 = vmul.f32 %v2362, %v2360
        %v2370 = vmul.f32 %v2362, %v2361
        %v2371 = vadd.f32 %v2321, %v2363
        %v2372 = vadd.f32 %v2322, %v2364
        %v2373 = vadd.f32 %v2323, %v2365
        %v2374 = vadd.f32 %v2324, %v2366
        %v2375 = vadd.f32 %v2325, %v2367
        %v2376 = vadd.f32 %v2326, %v2368
        %v2377 = vadd.f32 %v2327, %v2369
        %v2378 = vadd.f32 %v2328, %v2370
        %s2379 = sld [smem:[#allocation7 + $0x8]]
        %2380 = vrot.lane.b32.xlu0 %v2003, 8
        %v2381 = vpop.permute.xlu0 %2380
        %2382 = vrot.lane.b32.xlu0 %v2004, 8
        %v2383 = vpop.permute.xlu0 %2382
        %2384 = vrot.lane.b32.xlu0 %v2005, 8
        %v2385 = vpop.permute.xlu0 %2384
        %2386 = vrot.lane.b32.xlu0 %v2006, 8
        %v2387 = vpop.permute.xlu0 %2386
        %2388 = vrot.lane.b32.xlu0 %v2007, 8
        %v2389 = vpop.permute.xlu0 %2388
        %2390 = vrot.lane.b32.xlu0 %v2008, 8
        %v2391 = vpop.permute.xlu0 %2390
        %2392 = vrot.lane.b32.xlu0 %v2009, 8
        %v2393 = vpop.permute.xlu0 %2392
        %2394 = vrot.lane.b32.xlu0 %v2010, 8
        %v2395 = vpop.permute.xlu0 %2394
        %v2404 = vsel %vm1675, 0.0, %v2381
        %v2405 = vsel %vm1675, 0.0, %v2383
        %v2406 = vsel %vm1675, 0.0, %v2385
        %v2407 = vsel %vm1675, 0.0, %v2387
        %v2408 = vsel %vm1675, 0.0, %v2389
        %v2409 = vsel %vm1675, 0.0, %v2391
        %v2410 = vsel %vm1675, 0.0, %v2393
        %v2411 = vsel %vm1675, 0.0, %v2395
        %v2412 = vstv %s2379
        %v2413 = vmul.f32 %v2412, %v2404
        %v2414 = vmul.f32 %v2412, %v2405
        %v2415 = vmul.f32 %v2412, %v2406
        %v2416 = vmul.f32 %v2412, %v2407
        %v2417 = vmul.f32 %v2412, %v2408
        %v2418 = vmul.f32 %v2412, %v2409
        %v2419 = vmul.f32 %v2412, %v2410
        %v2420 = vmul.f32 %v2412, %v2411
        %v2421 = vadd.f32 %v2371, %v2413
        %v2422 = vadd.f32 %v2372, %v2414
        %v2423 = vadd.f32 %v2373, %v2415
        %v2424 = vadd.f32 %v2374, %v2416
        %v2425 = vadd.f32 %v2375, %v2417
        %v2426 = vadd.f32 %v2376, %v2418
        %v2427 = vadd.f32 %v2377, %v2419
        %v2428 = vadd.f32 %v2378, %v2420
        %s2429 = sld [smem:[#allocation7 + $0x9]]
        %2430 = vrot.lane.b32.xlu0 %v2003, 9
        %v2431 = vpop.permute.xlu0 %2430
        %2432 = vrot.lane.b32.xlu0 %v2004, 9
        %v2433 = vpop.permute.xlu0 %2432
        %2434 = vrot.lane.b32.xlu0 %v2005, 9
        %v2435 = vpop.permute.xlu0 %2434
        %2436 = vrot.lane.b32.xlu0 %v2006, 9
        %v2437 = vpop.permute.xlu0 %2436
        %2438 = vrot.lane.b32.xlu0 %v2007, 9
        %v2439 = vpop.permute.xlu0 %2438
        %2440 = vrot.lane.b32.xlu0 %v2008, 9
        %v2441 = vpop.permute.xlu0 %2440
        %2442 = vrot.lane.b32.xlu0 %v2009, 9
        %v2443 = vpop.permute.xlu0 %2442
        %2444 = vrot.lane.b32.xlu0 %v2010, 9
        %v2445 = vpop.permute.xlu0 %2444
        %v2454 = vsel %vm1684, 0.0, %v2431
        %v2455 = vsel %vm1684, 0.0, %v2433
        %v2456 = vsel %vm1684, 0.0, %v2435
        %v2457 = vsel %vm1684, 0.0, %v2437
        %v2458 = vsel %vm1684, 0.0, %v2439
        %v2459 = vsel %vm1684, 0.0, %v2441
        %v2460 = vsel %vm1684, 0.0, %v2443
        %v2461 = vsel %vm1684, 0.0, %v2445
        %v2462 = vstv %s2429
        %v2463 = vmul.f32 %v2462, %v2454
        %v2464 = vmul.f32 %v2462, %v2455
        %v2465 = vmul.f32 %v2462, %v2456
        %v2466 = vmul.f32 %v2462, %v2457
        %v2467 = vmul.f32 %v2462, %v2458
        %v2468 = vmul.f32 %v2462, %v2459
        %v2469 = vmul.f32 %v2462, %v2460
        %v2470 = vmul.f32 %v2462, %v2461
        %v2471 = vadd.f32 %v2421, %v2463
        %v2472 = vadd.f32 %v2422, %v2464
        %v2473 = vadd.f32 %v2423, %v2465
        %v2474 = vadd.f32 %v2424, %v2466
        %v2475 = vadd.f32 %v2425, %v2467
        %v2476 = vadd.f32 %v2426, %v2468
        %v2477 = vadd.f32 %v2427, %v2469
        %v2478 = vadd.f32 %v2428, %v2470
        %s2479 = sld [smem:[#allocation7 + $0xa]]
        %2480 = vrot.lane.b32.xlu0 %v2003, 10
        %v2481 = vpop.permute.xlu0 %2480
        %2482 = vrot.lane.b32.xlu0 %v2004, 10
        %v2483 = vpop.permute.xlu0 %2482
        %2484 = vrot.lane.b32.xlu0 %v2005, 10
        %v2485 = vpop.permute.xlu0 %2484
        %2486 = vrot.lane.b32.xlu0 %v2006, 10
        %v2487 = vpop.permute.xlu0 %2486
        %2488 = vrot.lane.b32.xlu0 %v2007, 10
        %v2489 = vpop.permute.xlu0 %2488
        %2490 = vrot.lane.b32.xlu0 %v2008, 10
        %v2491 = vpop.permute.xlu0 %2490
        %2492 = vrot.lane.b32.xlu0 %v2009, 10
        %v2493 = vpop.permute.xlu0 %2492
        %2494 = vrot.lane.b32.xlu0 %v2010, 10
        %v2495 = vpop.permute.xlu0 %2494
        %v2504 = vsel %vm1693, 0.0, %v2481
        %v2505 = vsel %vm1693, 0.0, %v2483
        %v2506 = vsel %vm1693, 0.0, %v2485
        %v2507 = vsel %vm1693, 0.0, %v2487
        %v2508 = vsel %vm1693, 0.0, %v2489
        %v2509 = vsel %vm1693, 0.0, %v2491
        %v2510 = vsel %vm1693, 0.0, %v2493
        %v2511 = vsel %vm1693, 0.0, %v2495
        %v2512 = vstv %s2479
        %v2513 = vmul.f32 %v2512, %v2504
        %v2514 = vmul.f32 %v2512, %v2505
        %v2515 = vmul.f32 %v2512, %v2506
        %v2516 = vmul.f32 %v2512, %v2507
        %v2517 = vmul.f32 %v2512, %v2508
        %v2518 = vmul.f32 %v2512, %v2509
        %v2519 = vmul.f32 %v2512, %v2510
        %v2520 = vmul.f32 %v2512, %v2511
        %v2521 = vadd.f32 %v2471, %v2513
        %v2522 = vadd.f32 %v2472, %v2514
        %v2523 = vadd.f32 %v2473, %v2515
        %v2524 = vadd.f32 %v2474, %v2516
        %v2525 = vadd.f32 %v2475, %v2517
        %v2526 = vadd.f32 %v2476, %v2518
        %v2527 = vadd.f32 %v2477, %v2519
        %v2528 = vadd.f32 %v2478, %v2520
        %s2529 = sld [smem:[#allocation7 + $0xb]]
        %2530 = vrot.lane.b32.xlu0 %v2003, 11
        %v2531 = vpop.permute.xlu0 %2530
        %2532 = vrot.lane.b32.xlu0 %v2004, 11
        %v2533 = vpop.permute.xlu0 %2532
        %2534 = vrot.lane.b32.xlu0 %v2005, 11
        %v2535 = vpop.permute.xlu0 %2534
        %2536 = vrot.lane.b32.xlu0 %v2006, 11
        %v2537 = vpop.permute.xlu0 %2536
        %2538 = vrot.lane.b32.xlu0 %v2007, 11
        %v2539 = vpop.permute.xlu0 %2538
        %2540 = vrot.lane.b32.xlu0 %v2008, 11
        %v2541 = vpop.permute.xlu0 %2540
        %2542 = vrot.lane.b32.xlu0 %v2009, 11
        %v2543 = vpop.permute.xlu0 %2542
        %2544 = vrot.lane.b32.xlu0 %v2010, 11
        %v2545 = vpop.permute.xlu0 %2544
        %v2554 = vsel %vm1702, 0.0, %v2531
        %v2555 = vsel %vm1702, 0.0, %v2533
        %v2556 = vsel %vm1702, 0.0, %v2535
        %v2557 = vsel %vm1702, 0.0, %v2537
        %v2558 = vsel %vm1702, 0.0, %v2539
        %v2559 = vsel %vm1702, 0.0, %v2541
        %v2560 = vsel %vm1702, 0.0, %v2543
        %v2561 = vsel %vm1702, 0.0, %v2545
        %v2562 = vstv %s2529
        %v2563 = vmul.f32 %v2562, %v2554
        %v2564 = vmul.f32 %v2562, %v2555
        %v2565 = vmul.f32 %v2562, %v2556
        %v2566 = vmul.f32 %v2562, %v2557
        %v2567 = vmul.f32 %v2562, %v2558
        %v2568 = vmul.f32 %v2562, %v2559
        %v2569 = vmul.f32 %v2562, %v2560
        %v2570 = vmul.f32 %v2562, %v2561
        %v2571 = vadd.f32 %v2521, %v2563
        %v2572 = vadd.f32 %v2522, %v2564
        %v2573 = vadd.f32 %v2523, %v2565
        %v2574 = vadd.f32 %v2524, %v2566
        %v2575 = vadd.f32 %v2525, %v2567
        %v2576 = vadd.f32 %v2526, %v2568
        %v2577 = vadd.f32 %v2527, %v2569
        %v2578 = vadd.f32 %v2528, %v2570
        %s2579 = sld [smem:[#allocation7 + $0xc]]
        %2580 = vrot.lane.b32.xlu0 %v2003, 12
        %v2581 = vpop.permute.xlu0 %2580
        %2582 = vrot.lane.b32.xlu0 %v2004, 12
        %v2583 = vpop.permute.xlu0 %2582
        %2584 = vrot.lane.b32.xlu0 %v2005, 12
        %v2585 = vpop.permute.xlu0 %2584
        %2586 = vrot.lane.b32.xlu0 %v2006, 12
        %v2587 = vpop.permute.xlu0 %2586
        %2588 = vrot.lane.b32.xlu0 %v2007, 12
        %v2589 = vpop.permute.xlu0 %2588
        %2590 = vrot.lane.b32.xlu0 %v2008, 12
        %v2591 = vpop.permute.xlu0 %2590
        %2592 = vrot.lane.b32.xlu0 %v2009, 12
        %v2593 = vpop.permute.xlu0 %2592
        %2594 = vrot.lane.b32.xlu0 %v2010, 12
        %v2595 = vpop.permute.xlu0 %2594
        %v2604 = vsel %vm1711, 0.0, %v2581
        %v2605 = vsel %vm1711, 0.0, %v2583
        %v2606 = vsel %vm1711, 0.0, %v2585
        %v2607 = vsel %vm1711, 0.0, %v2587
        %v2608 = vsel %vm1711, 0.0, %v2589
        %v2609 = vsel %vm1711, 0.0, %v2591
        %v2610 = vsel %vm1711, 0.0, %v2593
        %v2611 = vsel %vm1711, 0.0, %v2595
        %v2612 = vstv %s2579
        %v2613 = vmul.f32 %v2612, %v2604
        %v2614 = vmul.f32 %v2612, %v2605
        %v2615 = vmul.f32 %v2612, %v2606
        %v2616 = vmul.f32 %v2612, %v2607
        %v2617 = vmul.f32 %v2612, %v2608
        %v2618 = vmul.f32 %v2612, %v2609
        %v2619 = vmul.f32 %v2612, %v2610
        %v2620 = vmul.f32 %v2612, %v2611
        %v2621 = vadd.f32 %v2571, %v2613
        %v2622 = vadd.f32 %v2572, %v2614
        %v2623 = vadd.f32 %v2573, %v2615
        %v2624 = vadd.f32 %v2574, %v2616
        %v2625 = vadd.f32 %v2575, %v2617
        %v2626 = vadd.f32 %v2576, %v2618
        %v2627 = vadd.f32 %v2577, %v2619
        %v2628 = vadd.f32 %v2578, %v2620
        %s2629 = sld [smem:[#allocation7 + $0xd]]
        %2630 = vrot.lane.b32.xlu0 %v2003, 13
        %v2631 = vpop.permute.xlu0 %2630
        %2632 = vrot.lane.b32.xlu0 %v2004, 13
        %v2633 = vpop.permute.xlu0 %2632
        %2634 = vrot.lane.b32.xlu0 %v2005, 13
        %v2635 = vpop.permute.xlu0 %2634
        %2636 = vrot.lane.b32.xlu0 %v2006, 13
        %v2637 = vpop.permute.xlu0 %2636
        %2638 = vrot.lane.b32.xlu0 %v2007, 13
        %v2639 = vpop.permute.xlu0 %2638
        %2640 = vrot.lane.b32.xlu0 %v2008, 13
        %v2641 = vpop.permute.xlu0 %2640
        %2642 = vrot.lane.b32.xlu0 %v2009, 13
        %v2643 = vpop.permute.xlu0 %2642
        %2644 = vrot.lane.b32.xlu0 %v2010, 13
        %v2645 = vpop.permute.xlu0 %2644
        %v2654 = vsel %vm1720, 0.0, %v2631
        %v2655 = vsel %vm1720, 0.0, %v2633
        %v2656 = vsel %vm1720, 0.0, %v2635
        %v2657 = vsel %vm1720, 0.0, %v2637
        %v2658 = vsel %vm1720, 0.0, %v2639
        %v2659 = vsel %vm1720, 0.0, %v2641
        %v2660 = vsel %vm1720, 0.0, %v2643
        %v2661 = vsel %vm1720, 0.0, %v2645
        %v2662 = vstv %s2629
        %v2663 = vmul.f32 %v2662, %v2654
        %v2664 = vmul.f32 %v2662, %v2655
        %v2665 = vmul.f32 %v2662, %v2656
        %v2666 = vmul.f32 %v2662, %v2657
        %v2667 = vmul.f32 %v2662, %v2658
        %v2668 = vmul.f32 %v2662, %v2659
        %v2669 = vmul.f32 %v2662, %v2660
        %v2670 = vmul.f32 %v2662, %v2661
        %v2671 = vadd.f32 %v2621, %v2663
        %v2672 = vadd.f32 %v2622, %v2664
        %v2673 = vadd.f32 %v2623, %v2665
        %v2674 = vadd.f32 %v2624, %v2666
        %v2675 = vadd.f32 %v2625, %v2667
        %v2676 = vadd.f32 %v2626, %v2668
        %v2677 = vadd.f32 %v2627, %v2669
        %v2678 = vadd.f32 %v2628, %v2670
        %s2679 = sld [smem:[#allocation7 + $0xe]]
        %2680 = vrot.lane.b32.xlu0 %v2003, 14
        %v2681 = vpop.permute.xlu0 %2680
        %2682 = vrot.lane.b32.xlu0 %v2004, 14
        %v2683 = vpop.permute.xlu0 %2682
        %2684 = vrot.lane.b32.xlu0 %v2005, 14
        %v2685 = vpop.permute.xlu0 %2684
        %2686 = vrot.lane.b32.xlu0 %v2006, 14
        %v2687 = vpop.permute.xlu0 %2686
        %2688 = vrot.lane.b32.xlu0 %v2007, 14
        %v2689 = vpop.permute.xlu0 %2688
        %2690 = vrot.lane.b32.xlu0 %v2008, 14
        %v2691 = vpop.permute.xlu0 %2690
        %2692 = vrot.lane.b32.xlu0 %v2009, 14
        %v2693 = vpop.permute.xlu0 %2692
        %2694 = vrot.lane.b32.xlu0 %v2010, 14
        %v2695 = vpop.permute.xlu0 %2694
        %v2704 = vsel %vm1729, 0.0, %v2681
        %v2705 = vsel %vm1729, 0.0, %v2683
        %v2706 = vsel %vm1729, 0.0, %v2685
        %v2707 = vsel %vm1729, 0.0, %v2687
        %v2708 = vsel %vm1729, 0.0, %v2689
        %v2709 = vsel %vm1729, 0.0, %v2691
        %v2710 = vsel %vm1729, 0.0, %v2693
        %v2711 = vsel %vm1729, 0.0, %v2695
        %v2712 = vstv %s2679
        %v2713 = vmul.f32 %v2712, %v2704
        %v2714 = vmul.f32 %v2712, %v2705
        %v2715 = vmul.f32 %v2712, %v2706
        %v2716 = vmul.f32 %v2712, %v2707
        %v2717 = vmul.f32 %v2712, %v2708
        %v2718 = vmul.f32 %v2712, %v2709
        %v2719 = vmul.f32 %v2712, %v2710
        %v2720 = vmul.f32 %v2712, %v2711
        %v2721 = vadd.f32 %v2671, %v2713
        %v2722 = vadd.f32 %v2672, %v2714
        %v2723 = vadd.f32 %v2673, %v2715
        %v2724 = vadd.f32 %v2674, %v2716
        %v2725 = vadd.f32 %v2675, %v2717
        %v2726 = vadd.f32 %v2676, %v2718
        %v2727 = vadd.f32 %v2677, %v2719
        %v2728 = vadd.f32 %v2678, %v2720
        %s2729 = sld [smem:[#allocation7 + $0xf]]
        %2730 = vrot.lane.b32.xlu0 %v2003, 15
        %v2731 = vpop.permute.xlu0 %2730
        %2732 = vrot.lane.b32.xlu0 %v2004, 15
        %v2733 = vpop.permute.xlu0 %2732
        %2734 = vrot.lane.b32.xlu0 %v2005, 15
        %v2735 = vpop.permute.xlu0 %2734
        %2736 = vrot.lane.b32.xlu0 %v2006, 15
        %v2737 = vpop.permute.xlu0 %2736
        %2738 = vrot.lane.b32.xlu0 %v2007, 15
        %v2739 = vpop.permute.xlu0 %2738
        %2740 = vrot.lane.b32.xlu0 %v2008, 15
        %v2741 = vpop.permute.xlu0 %2740
        %2742 = vrot.lane.b32.xlu0 %v2009, 15
        %v2743 = vpop.permute.xlu0 %2742
        %2744 = vrot.lane.b32.xlu0 %v2010, 15
        %v2745 = vpop.permute.xlu0 %2744
        %v2754 = vsel %vm1738, 0.0, %v2731
        %v2755 = vsel %vm1738, 0.0, %v2733
        %v2756 = vsel %vm1738, 0.0, %v2735
        %v2757 = vsel %vm1738, 0.0, %v2737
        %v2758 = vsel %vm1738, 0.0, %v2739
        %v2759 = vsel %vm1738, 0.0, %v2741
        %v2760 = vsel %vm1738, 0.0, %v2743
        %v2761 = vsel %vm1738, 0.0, %v2745
        %v2762 = vstv %s2729
        %v2763 = vmul.f32 %v2762, %v2754
        %v2764 = vmul.f32 %v2762, %v2755
        %v2765 = vmul.f32 %v2762, %v2756
        %v2766 = vmul.f32 %v2762, %v2757
        %v2767 = vmul.f32 %v2762, %v2758
        %v2768 = vmul.f32 %v2762, %v2759
        %v2769 = vmul.f32 %v2762, %v2760
        %v2770 = vmul.f32 %v2762, %v2761
        %v2771 = vadd.f32 %v2721, %v2763
        %v2772 = vadd.f32 %v2722, %v2764
        %v2773 = vadd.f32 %v2723, %v2765
        %v2774 = vadd.f32 %v2724, %v2766
        %v2775 = vadd.f32 %v2725, %v2767
        %v2776 = vadd.f32 %v2726, %v2768
        %v2777 = vadd.f32 %v2727, %v2769
        %v2778 = vadd.f32 %v2728, %v2770
        %s2779 = sld [smem:[#allocation7 + $0x10]]
        %2780 = vrot.lane.b32.xlu0 %v2003, 16
        %v2781 = vpop.permute.xlu0 %2780
        %2782 = vrot.lane.b32.xlu0 %v2004, 16
        %v2783 = vpop.permute.xlu0 %2782
        %2784 = vrot.lane.b32.xlu0 %v2005, 16
        %v2785 = vpop.permute.xlu0 %2784
        %2786 = vrot.lane.b32.xlu0 %v2006, 16
        %v2787 = vpop.permute.xlu0 %2786
        %2788 = vrot.lane.b32.xlu0 %v2007, 16
        %v2789 = vpop.permute.xlu0 %2788
        %2790 = vrot.lane.b32.xlu0 %v2008, 16
        %v2791 = vpop.permute.xlu0 %2790
        %2792 = vrot.lane.b32.xlu0 %v2009, 16
        %v2793 = vpop.permute.xlu0 %2792
        %2794 = vrot.lane.b32.xlu0 %v2010, 16
        %v2795 = vpop.permute.xlu0 %2794
        %v2804 = vsel %vm1747, 0.0, %v2781
        %v2805 = vsel %vm1747, 0.0, %v2783
        %v2806 = vsel %vm1747, 0.0, %v2785
        %v2807 = vsel %vm1747, 0.0, %v2787
        %v2808 = vsel %vm1747, 0.0, %v2789
        %v2809 = vsel %vm1747, 0.0, %v2791
        %v2810 = vsel %vm1747, 0.0, %v2793
        %v2811 = vsel %vm1747, 0.0, %v2795
        %v2812 = vstv %s2779
        %v2813 = vmul.f32 %v2812, %v2804
        %v2814 = vmul.f32 %v2812, %v2805
        %v2815 = vmul.f32 %v2812, %v2806
        %v2816 = vmul.f32 %v2812, %v2807
        %v2817 = vmul.f32 %v2812, %v2808
        %v2818 = vmul.f32 %v2812, %v2809
        %v2819 = vmul.f32 %v2812, %v2810
        %v2820 = vmul.f32 %v2812, %v2811
        %v2821 = vadd.f32 %v2771, %v2813
        %v2822 = vadd.f32 %v2772, %v2814
        %v2823 = vadd.f32 %v2773, %v2815
        %v2824 = vadd.f32 %v2774, %v2816
        %v2825 = vadd.f32 %v2775, %v2817
        %v2826 = vadd.f32 %v2776, %v2818
        %v2827 = vadd.f32 %v2777, %v2819
        %v2828 = vadd.f32 %v2778, %v2820
        %s2829 = sld [smem:[#allocation7 + $0x11]]
        %2830 = vrot.lane.b32.xlu0 %v2003, 17
        %v2831 = vpop.permute.xlu0 %2830
        %2832 = vrot.lane.b32.xlu0 %v2004, 17
        %v2833 = vpop.permute.xlu0 %2832
        %2834 = vrot.lane.b32.xlu0 %v2005, 17
        %v2835 = vpop.permute.xlu0 %2834
        %2836 = vrot.lane.b32.xlu0 %v2006, 17
        %v2837 = vpop.permute.xlu0 %2836
        %2838 = vrot.lane.b32.xlu0 %v2007, 17
        %v2839 = vpop.permute.xlu0 %2838
        %2840 = vrot.lane.b32.xlu0 %v2008, 17
        %v2841 = vpop.permute.xlu0 %2840
        %2842 = vrot.lane.b32.xlu0 %v2009, 17
        %v2843 = vpop.permute.xlu0 %2842
        %2844 = vrot.lane.b32.xlu0 %v2010, 17
        %v2845 = vpop.permute.xlu0 %2844
        %v2854 = vsel %vm1756, 0.0, %v2831
        %v2855 = vsel %vm1756, 0.0, %v2833
        %v2856 = vsel %vm1756, 0.0, %v2835
        %v2857 = vsel %vm1756, 0.0, %v2837
        %v2858 = vsel %vm1756, 0.0, %v2839
        %v2859 = vsel %vm1756, 0.0, %v2841
        %v2860 = vsel %vm1756, 0.0, %v2843
        %v2861 = vsel %vm1756, 0.0, %v2845
        %v2862 = vstv %s2829
        %v2863 = vmul.f32 %v2862, %v2854
        %v2864 = vmul.f32 %v2862, %v2855
        %v2865 = vmul.f32 %v2862, %v2856
        %v2866 = vmul.f32 %v2862, %v2857
        %v2867 = vmul.f32 %v2862, %v2858
        %v2868 = vmul.f32 %v2862, %v2859
        %v2869 = vmul.f32 %v2862, %v2860
        %v2870 = vmul.f32 %v2862, %v2861
        %v2871 = vadd.f32 %v2821, %v2863
        %v2872 = vadd.f32 %v2822, %v2864
        %v2873 = vadd.f32 %v2823, %v2865
        %v2874 = vadd.f32 %v2824, %v2866
        %v2875 = vadd.f32 %v2825, %v2867
        %v2876 = vadd.f32 %v2826, %v2868
        %v2877 = vadd.f32 %v2827, %v2869
        %v2878 = vadd.f32 %v2828, %v2870
        %s2879 = sld [smem:[#allocation7 + $0x12]]
        %2880 = vrot.lane.b32.xlu0 %v2003, 18
        %v2881 = vpop.permute.xlu0 %2880
        %2882 = vrot.lane.b32.xlu0 %v2004, 18
        %v2883 = vpop.permute.xlu0 %2882
        %2884 = vrot.lane.b32.xlu0 %v2005, 18
        %v2885 = vpop.permute.xlu0 %2884
        %2886 = vrot.lane.b32.xlu0 %v2006, 18
        %v2887 = vpop.permute.xlu0 %2886
        %2888 = vrot.lane.b32.xlu0 %v2007, 18
        %v2889 = vpop.permute.xlu0 %2888
        %2890 = vrot.lane.b32.xlu0 %v2008, 18
        %v2891 = vpop.permute.xlu0 %2890
        %2892 = vrot.lane.b32.xlu0 %v2009, 18
        %v2893 = vpop.permute.xlu0 %2892
        %2894 = vrot.lane.b32.xlu0 %v2010, 18
        %v2895 = vpop.permute.xlu0 %2894
        %v2904 = vsel %vm1765, 0.0, %v2881
        %v2905 = vsel %vm1765, 0.0, %v2883
        %v2906 = vsel %vm1765, 0.0, %v2885
        %v2907 = vsel %vm1765, 0.0, %v2887
        %v2908 = vsel %vm1765, 0.0, %v2889
        %v2909 = vsel %vm1765, 0.0, %v2891
        %v2910 = vsel %vm1765, 0.0, %v2893
        %v2911 = vsel %vm1765, 0.0, %v2895
        %v2912 = vstv %s2879
        %v2913 = vmul.f32 %v2912, %v2904
        %v2914 = vmul.f32 %v2912, %v2905
        %v2915 = vmul.f32 %v2912, %v2906
        %v2916 = vmul.f32 %v2912, %v2907
        %v2917 = vmul.f32 %v2912, %v2908
        %v2918 = vmul.f32 %v2912, %v2909
        %v2919 = vmul.f32 %v2912, %v2910
        %v2920 = vmul.f32 %v2912, %v2911
        %v2921 = vadd.f32 %v2871, %v2913
        %v2922 = vadd.f32 %v2872, %v2914
        %v2923 = vadd.f32 %v2873, %v2915
        %v2924 = vadd.f32 %v2874, %v2916
        %v2925 = vadd.f32 %v2875, %v2917
        %v2926 = vadd.f32 %v2876, %v2918
        %v2927 = vadd.f32 %v2877, %v2919
        %v2928 = vadd.f32 %v2878, %v2920
        %s2929 = sld [smem:[#allocation7 + $0x13]]
        %2930 = vrot.lane.b32.xlu0 %v2003, 19
        %v2931 = vpop.permute.xlu0 %2930
        %2932 = vrot.lane.b32.xlu0 %v2004, 19
        %v2933 = vpop.permute.xlu0 %2932
        %2934 = vrot.lane.b32.xlu0 %v2005, 19
        %v2935 = vpop.permute.xlu0 %2934
        %2936 = vrot.lane.b32.xlu0 %v2006, 19
        %v2937 = vpop.permute.xlu0 %2936
        %2938 = vrot.lane.b32.xlu0 %v2007, 19
        %v2939 = vpop.permute.xlu0 %2938
        %2940 = vrot.lane.b32.xlu0 %v2008, 19
        %v2941 = vpop.permute.xlu0 %2940
        %2942 = vrot.lane.b32.xlu0 %v2009, 19
        %v2943 = vpop.permute.xlu0 %2942
        %2944 = vrot.lane.b32.xlu0 %v2010, 19
        %v2945 = vpop.permute.xlu0 %2944
        %v2954 = vsel %vm1774, 0.0, %v2931
        %v2955 = vsel %vm1774, 0.0, %v2933
        %v2956 = vsel %vm1774, 0.0, %v2935
        %v2957 = vsel %vm1774, 0.0, %v2937
        %v2958 = vsel %vm1774, 0.0, %v2939
        %v2959 = vsel %vm1774, 0.0, %v2941
        %v2960 = vsel %vm1774, 0.0, %v2943
        %v2961 = vsel %vm1774, 0.0, %v2945
        %v2962 = vstv %s2929
        %v2963 = vmul.f32 %v2962, %v2954
        %v2964 = vmul.f32 %v2962, %v2955
        %v2965 = vmul.f32 %v2962, %v2956
        %v2966 = vmul.f32 %v2962, %v2957
        %v2967 = vmul.f32 %v2962, %v2958
        %v2968 = vmul.f32 %v2962, %v2959
        %v2969 = vmul.f32 %v2962, %v2960
        %v2970 = vmul.f32 %v2962, %v2961
        %v2971 = vadd.f32 %v2921, %v2963
        %v2972 = vadd.f32 %v2922, %v2964
        %v2973 = vadd.f32 %v2923, %v2965
        %v2974 = vadd.f32 %v2924, %v2966
        %v2975 = vadd.f32 %v2925, %v2967
        %v2976 = vadd.f32 %v2926, %v2968
        %v2977 = vadd.f32 %v2927, %v2969
        %v2978 = vadd.f32 %v2928, %v2970
        %s2979 = sld [smem:[#allocation3]]
        %v2980 = vstv %s2979
        %v2981 = vadd.f32 %v2971, %v2980
        %v2982 = vadd.f32 %v2972, %v2980
        %v2983 = vadd.f32 %v2973, %v2980
        %v2984 = vadd.f32 %v2974, %v2980
        %v2985 = vadd.f32 %v2975, %v2980
        %v2986 = vadd.f32 %v2976, %v2980
        %v2987 = vadd.f32 %v2977, %v2980
        %v2988 = vadd.f32 %v2978, %v2980
        %v2989 = vmax.f32 %v2981, 0.0
        %v2990 = vmax.f32 %v2982, 0.0
        %v2991 = vmax.f32 %v2983, 0.0
        %v2992 = vmax.f32 %v2984, 0.0
        %v2993 = vmax.f32 %v2985, 0.0
        %v2994 = vmax.f32 %v2986, 0.0
        %v2995 = vmax.f32 %v2987, 0.0
        %v2996 = vmax.f32 %v2988, 0.0
        %v2997 = vsub.f32 %v1441, %v2989
        %v2998 = vsub.f32 %v1442, %v2990
        %v2999 = vsub.f32 %v1443, %v2991
        %v3000 = vsub.f32 %v1444, %v2992
        %v3001 = vsub.f32 %v1445, %v2993
        %v3002 = vsub.f32 %v1446, %v2994
        %v3003 = vsub.f32 %v1447, %v2995
        %v3004 = vsub.f32 %v1448, %v2996
        %v3005 = vmax.f32 %v2997, 0.0
        %v3006 = vmax.f32 %v2998, 0.0
        %v3007 = vmax.f32 %v2999, 0.0
        %v3008 = vmax.f32 %v3000, 0.0
        %v3009 = vmax.f32 %v3001, 0.0
        %v3010 = vmax.f32 %v3002, 0.0
        %v3011 = vmax.f32 %v3003, 0.0
        %v3012 = vmax.f32 %v3004, 0.0
        %v3013 = vadd.f32 %v2003, %v3005
        %v3014 = vadd.f32 %v2004, %v3006
        %v3015 = vadd.f32 %v2005, %v3007
        %v3016 = vadd.f32 %v2006, %v3008
        %v3017 = vadd.f32 %v2007, %v3009
        %v3018 = vadd.f32 %v2008, %v3010
        %v3019 = vadd.f32 %v2009, %v3011
        %v3020 = vadd.f32 %v2010, %v3012
        %3021 = vst [vmem:[%s435] sm:$0xff] %v3013
        %3022 = vst [vmem:[%s435 + $0x8] sm:$0xff] %v3014
        %3023 = vst [vmem:[%s435 + $0x10] sm:$0xff] %v3015
        %3024 = vst [vmem:[%s435 + $0x18] sm:$0xff] %v3016
        %3025 = vst [vmem:[%s435 + $0x20] sm:$0xff] %v3017
        %3026 = vst [vmem:[%s435 + $0x28] sm:$0xff] %v3018
        %3027 = vst [vmem:[%s435 + $0x30] sm:$0xff] %v3019
        %3028 = vst [vmem:[%s435 + $0x38] sm:$0xff] %v3020
        %s3029 = sand.u32 %s283, 1
        %s3030 = scalar_lea.sflag [#allocation5], %s3029
        %s3031 = sand.u32 %s283, 1
        %s3032 = smul.addr %s3031, 64
        %s3033 = scalar_lea.vmem [#allocation9], %s3032
        // Predicated region
        $region73: #{tpu_custom_call.1} parent=63 // pred_check
          %p3034 = pneg %p293
        $region74: #{tpu_custom_call.1} parent=63 // pred_check_branch
          %3036 = sbr.rel (%p3034) target = $region76
        $region75: #{tpu_custom_call.1} parent=63 // pred_region
          %s3037 = smul.u32 8, %s29
          %s3039 = ssub.s32 1024, 1024
          %3040 = vsyncadd %s3030, %s3039
          %s3041 = smul.addr %s3037, 128
          %s3042 = scalar_lea.hbm %s11, %s3041
          %s3043 = sshll.u32 %s3033, 4
          %s3044 = int_to_ptr.vmem [resolvable:$true] %s3043
          %3049 = dma.vmem_to_hbm [thread:$0]  %s3044, 1024, %s3042, %s3030, 128, 128, 8
        $region76: #{tpu_custom_call.1} parent=63 // pred_fallthru
          _
      $region64: #{tpu_custom_call.1} parent=5 // pred_fallthru
        _
      %p3050 = scmp.le.s32.totalorder 2, %s24
      // Predicated region
      $region77: #{tpu_custom_call.1} parent=5 // pred_check
        %p3051 = pneg %p3050
      $region78: #{tpu_custom_call.1} parent=5 // pred_check_branch
        %3053 = sbr.rel (%p3051) target = $region80
      $region79: #{tpu_custom_call.1} parent=5 // pred_region
        %s3054 = ssub.s32 %s24, 2
        // Predicated region
        $region81: #{tpu_custom_call.1} parent=79 // pred_check
          %p3055 = pneg %p299
        $region82: #{tpu_custom_call.1} parent=79 // pred_check_branch
          %3057 = sbr.rel (%p3055) target = $region84
        $region83: #{tpu_custom_call.1} parent=79 // pred_region
          %s3058 = sand.u32 %s284, 1
          %s3059 = scalar_lea.sflag [#allocation5], %s3058
          %s3060 = sand.u32 %s284, 1
          %s3061 = smul.addr %s3060, 64
          %s3062 = scalar_lea.vmem [#allocation9], %s3061
          %3063 = dma.done %s3059, 1024
        $region84: #{tpu_custom_call.1} parent=79 // pred_fallthru
          _
      $region80: #{tpu_custom_call.1} parent=5 // pred_fallthru
        _
    $region6: #{tpu_custom_call.1} parent=1 // loop_footer
      %s28 = sadd.s32 1, %s24
    $region7: #{tpu_custom_call.1} parent=1 // loop_footer_branch
      %23 = sbr.rel target = $region3
    $region8: #{tpu_custom_call.1} parent=1 // loop_exit
      _
    %3064 = vsyncpa [#allocation5], 1
    %s3065 = scalar_lea.sflag [#allocation5], 1
    %3066 = vsyncpa %s3065, 1
    %3067 = vsyncpa [#allocation6], 1
    %s3068 = scalar_lea.sflag [#allocation6], 1
    %3069 = vsyncpa %s3068, 1
    %3070 = vsyncpa [#allocation8], 1

</llo_original>
